<compile_context>
chip_gen: v7x
topology: tpu7x:2x2x1
jax: 0.10.0
libtpu: 0.0.40
codegen_flags: <defaults>
</compile_context>

<pallas_src>
import functools

import jax
import jax.numpy as jnp
from jax import lax
from jax.experimental import pallas as pl
from jax.experimental.pallas import tpu as pltpu


# ---------------- GELU helpers ----------------

_SQRT_HALF = 0.7071067811865476


def _gelu_erf(x):
    # Exact (erf) GELU, matching F.gelu's default.  erf via Abramowitz-Stegun
    # 7.1.26 (|error| < 1.5e-7), built only from exp/mul/add/where so it
    # lowers on every TPU generation (no dependence on a native erf lowering).
    z = x * _SQRT_HALF
    az = jnp.abs(z)
    t = 1.0 / (1.0 + 0.3275911 * az)
    poly = t * (0.254829592 + t * (-0.284496736 + t * (1.421413741 +
             t * (-1.453152027 + t * 1.061405429))))
    erf_az = 1.0 - poly * jnp.exp(-az * az)
    erf_z = jnp.where(z < 0, -erf_az, erf_az)
    return 0.5 * x * (1.0 + erf_z)


def _gelu_tanh(x):
    # Approximate GELU: the transcendental moves to the EUP slot (free
    # alongside the VALU-heavy conv epilogue).  Changes numerics vs PyTorch's
    # exact GELU, so it is opt-in.
    c = 0.7978845608028654  # sqrt(2/pi)
    return 0.5 * x * (1.0 + jnp.tanh(c * (x + 0.044715 * x * x * x)))


# ---------------- fused kernel ----------------

def _mlp_fused_kernel(x_ref, w1_ref, b1_ref, wdw_ref, bdw_ref, w2_ref, b2_ref,
                      o_ref, h_ref, *, W, TH, NT, approximate_gelu):
    # x_ref:   (1, N, dim)           full image for this batch element (resident)
    # w1_ref:  (dim, hidden)         resident (single-buffered when supported)
    # b1_ref:  (1, hidden)
    # wdw_ref: (9, hidden)           3x3 depthwise taps, row-major (dy*3 + dx)
    # bdw_ref: (1, hidden)
    # w2_ref:  (hidden, out_dim)
    # b2_ref:  (1, out_dim)
    # o_ref:   (1, TH*W, out_dim)    this tile's output tokens
    # h_ref:   ((TH+2)*W, hidden)    scratch: fc1 of tile rows + 1-row halo
    t = pl.program_id(1)
    M = TH * W
    L = (TH + 2) * W
    hidden = h_ref.shape[1]
    h_dtype = h_ref.dtype

    w1 = w1_ref[...]
    b1 = b1_ref[...].astype(jnp.float32)

    def fc1(xtok):
        y = jnp.dot(xtok.astype(w1.dtype), w1,
                    preferred_element_type=jnp.float32) + b1
        return y.astype(h_dtype)

    zeros_row = jnp.zeros((W, hidden), h_dtype)
    tok0 = pl.multiple_of(t * M, M)          # first token of this row tile

    # ---- fc1 for tile + 1-row halo, in a single matmul per branch ----
    if NT == 1:
        h_ref[0:W, :] = zeros_row                               # pad row -1
        h_ref[W:W + M, :] = fc1(x_ref[0, pl.ds(tok0, M), :])
        h_ref[W + M:L, :] = zeros_row                           # pad row H
    else:
        @pl.when(t == 0)
        def _():
            h_ref[0:W, :] = zeros_row
            h_ref[W:L, :] = fc1(x_ref[0, pl.ds(tok0, M + W), :])

        @pl.when(t == NT - 1)
        def _():
            h_ref[0:W + M, :] = fc1(x_ref[0, pl.ds(tok0 - W, M + W), :])
            h_ref[W + M:L, :] = zeros_row

        if NT > 2:
            @pl.when(jnp.logical_and(t > 0, t < NT - 1))
            def _():
                h_ref[0:L, :] = fc1(x_ref[0, pl.ds(tok0 - W, L), :])

    # ---- depthwise 3x3 conv (stride 1, pad 1), entirely in VMEM ----
    wdw = wdw_ref[...].astype(jnp.float32)   # (9, hidden)
    bdw = bdw_ref[...].astype(jnp.float32)   # (1, hidden)

    h_c = h_ref[...]                         # (L, hidden), h_dtype
    # Column-edge masks (built once; multiply instead of full-buffer where).
    col = lax.broadcasted_iota(jnp.int32, (L, 1), 0) % W
    mask_l = (col > 0).astype(h_dtype)       # zero at image column 0
    mask_r = (col < W - 1).astype(h_dtype)   # zero at image column W-1
    zrow = jnp.zeros((1, hidden), h_dtype)
    # +-1 shift along W via static shifted slices; the masks also kill the
    # cross-image-row contamination introduced by the flat shift.
    h_l = jnp.concatenate([zrow, h_c[:L - 1, :]], axis=0) * mask_l   # h[.., c-1]
    h_r = jnp.concatenate([h_c[1:, :], zrow], axis=0) * mask_r       # h[.., c+1]

    acc = jnp.zeros((M, hidden), jnp.float32)
    for dy in range(3):                      # contribution from image row r+dy-1
        off = dy * W                         # static row-shifted slice
        acc = acc + h_l[off:off + M, :].astype(jnp.float32) * wdw[dy * 3 + 0:dy * 3 + 1, :]
        acc = acc + h_c[off:off + M, :].astype(jnp.float32) * wdw[dy * 3 + 1:dy * 3 + 2, :]
        acc = acc + h_r[off:off + M, :].astype(jnp.float32) * wdw[dy * 3 + 2:dy * 3 + 3, :]
    acc = acc + bdw

    g = _gelu_tanh(acc) if approximate_gelu else _gelu_erf(acc)

    w2 = w2_ref[...]
    b2 = b2_ref[...].astype(jnp.float32)
    y = jnp.dot(g.astype(w2.dtype), w2, preferred_element_type=jnp.float32) + b2
    o_ref[0] = y.astype(o_ref.dtype)


# ---------------- VMEM accounting & tile selection ----------------

def _phys_vmem_bytes():
    phys = 64 * 1024 * 1024            # conservative default (v7x per-core)
    try:
        phys = int(pltpu.get_tpu_info().vmem_capacity_bytes)
    except Exception:
        pass
    return max(phys, 32 * 1024 * 1024)


def _weights_bytes(dim, hidden, out_dim, itemsize):
    return (dim * hidden + hidden + 9 * hidden + hidden +
            hidden * out_dim + out_dim) * itemsize


def _choose_row_tile(H, W, dim, hidden, out_dim, itemsize, h_itemsize,
                     budget_bytes, weight_copies=1):
    """Largest aligned divisor TH of H whose *real* VMEM footprint fits.

    Footprint counts: weights (single-buffered), 2x-buffered x block,
    h scratch + its loaded/shifted copies (h_c, h_l, h_r), f32 conv
    accumulator + GELU value, and the 2x-buffered output block.
    Largest TH also maximises the MXU M dimension (prefer M >= 256).
    """
    N = H * W
    fixed = (weight_copies * _weights_bytes(dim, hidden, out_dim, itemsize)
             + 2 * N * dim * itemsize)
    candidates = [th for th in range(1, H + 1)
                  if H % th == 0 and (th == H or (th * W) % 8 == 0)]
    best = candidates[0]
    for th in candidates:                       # ascending -> keep largest fit
        m = th * W
        scratch = (th + 2) * W * hidden * h_itemsize     # h_ref
        temps = 3 * scratch                              # h_c value + h_l + h_r
        acc_b = 2 * m * hidden * 4                       # f32 acc + gelu value
        out_b = 2 * m * out_dim * itemsize               # 2x-buffered out block
        if fixed + scratch + temps + acc_b + out_b <= budget_bytes:
            best = th
    return best


# ---------------- wrapper ----------------

def mlp_forward(x, H, W, params, *, row_tile=None, approximate_gelu=False):
    """x: (B, N, dim) with N == H*W. Returns (B, N, out_dim)."""
    B, N, dim = x.shape
    assert N == H * W, (N, H, W)
    hidden = params["w1"].shape[1]
    out_dim = params["w2"].shape[1]
    itemsize = jnp.dtype(x.dtype).itemsize
    # Keep the dominant scratch in bf16 when the caller computes in bf16
    # (v6e/v7x have bf16 VALU); the conv taps still accumulate in f32.
    h_dtype = jnp.bfloat16 if x.dtype == jnp.bfloat16 else jnp.float32
    h_itemsize = jnp.dtype(h_dtype).itemsize

    # Generation-aware budget: <= 3/4 of physical VMEM, capped for headroom.
    vmem_budget = (_phys_vmem_bytes() * 3) // 4
    vmem_budget = max(32 * 1024 * 1024, min(vmem_budget, 96 * 1024 * 1024))

    if row_tile is None:
        TH = _choose_row_tile(H, W, dim, hidden, out_dim, itemsize,
                              h_itemsize, vmem_budget)
    else:
        TH = row_tile
    assert H % TH == 0, (H, TH)
    assert TH == H or (TH * W) % 8 == 0, (
        "row_tile must keep the output token block sublane-aligned", TH, W)
    NT = H // TH
    grid = (B, NT)
    # TODO(synk): for late PVT stages (N = 196 / 49) pack several batch images
    # per grid step to fill the MXU M dimension; current grid is (B, H//TH).

    kernel = functools.partial(_mlp_fused_kernel, W=W, TH=TH, NT=NT,
                               approximate_gelu=approximate_gelu)

    # Megacore: shard over batch when possible so each core keeps its own
    # resident x block; "arbitrary" on t is safe (scratch fully rewritten).
    dim_sem = ("parallel", "arbitrary") if B >= 2 else ("parallel", "parallel")

    args = (
        x,
        params["w1"],
        params["b1"].reshape(1, hidden),
        params["wdw"].reshape(9, hidden),
        params["bdw"].reshape(1, hidden),
        params["w2"],
        params["b2"].reshape(1, out_dim),
    )

    def build(single_buffer_weights):
        def wspec(shape):
            idx = lambda b, t, _s=shape: (0,) * len(_s)
            if single_buffer_weights:
                # Constant-index weights never change across the grid: one
                # VMEM buffer is enough (saves up to ~half the weight VMEM).
                return pl.BlockSpec(shape, idx, pipeline_mode=pl.Buffered(1))
            return pl.BlockSpec(shape, idx)

        return pl.pallas_call(
            kernel,
            out_shape=jax.ShapeDtypeStruct((B, N, out_dim), x.dtype),
            grid=grid,
            in_specs=[
                pl.BlockSpec((1, N, dim), lambda b, t: (b, 0, 0)),  # x (per-b)
                wspec((dim, hidden)),                               # w1
                wspec((1, hidden)),                                 # b1
                wspec((9, hidden)),                                 # dw taps
                wspec((1, hidden)),                                 # dw bias
                wspec((hidden, out_dim)),                           # w2
                wspec((1, out_dim)),                                # b2
            ],
            out_specs=pl.BlockSpec((1, TH * W, out_dim), lambda b, t: (b, t, 0)),
            scratch_shapes=[pltpu.VMEM(((TH + 2) * W, hidden), h_dtype)],
            compiler_params=pltpu.CompilerParams(
                dimension_semantics=dim_sem,
                vmem_limit_bytes=int(vmem_budget)),
        )

    try:
        out = build(True)(*args)
        jax.block_until_ready(out)
        return out
    except Exception:
        # pipeline_mode / pl.Buffered(1) unsupported on this jax version:
        # fall back to default (double) buffering of the constant weights.
        return build(False)(*args)


# ---------------- reference (plain JAX) ----------------

def ref_mlp(x, H, W, p):
    B, N, _ = x.shape
    hidden = p["w1"].shape[1]
    h = x @ p["w1"] + p["b1"]
    hc = h.reshape(B, H, W, hidden)
    conv = lax.conv_general_dilated(
        hc,
        p["wdw"].reshape(3, 3, 1, hidden),
        window_strides=(1, 1),
        padding=((1, 1), (1, 1)),
        dimension_numbers=("NHWC", "HWIO", "NHWC"),
        feature_group_count=hidden,
    ) + p["bdw"]
    g = jax.nn.gelu(conv.reshape(B, N, hidden), approximate=False)
    return g @ p["w2"] + p["b2"]


# ---------------- main ----------------

if __name__ == "__main__":
    B, H, W = 2, 8, 8
    N = H * W
    dim, hidden, out_dim = 16, 32, 16

    key = jax.random.PRNGKey(0)
    ks = jax.random.split(key, 7)
    params = {
        "w1": jax.random.normal(ks[0], (dim, hidden), jnp.float32) * 0.1,
        "b1": jax.random.normal(ks[1], (hidden,), jnp.float32) * 0.1,
        "wdw": jax.random.normal(ks[2], (3, 3, hidden), jnp.float32) * 0.1,
        "bdw": jax.random.normal(ks[3], (hidden,), jnp.float32) * 0.1,
        "w2": jax.random.normal(ks[4], (hidden, out_dim), jnp.float32) * 0.1,
        "b2": jax.random.normal(ks[5], (out_dim,), jnp.float32) * 0.1,
    }
    x = jax.random.normal(ks[6], (B, N, dim), jnp.float32)

    ref = jax.block_until_ready(ref_mlp(x, H, W, params))

    # f32, auto-chosen row tile (TH == H for these shapes: single-tile path).
    out_a = jax.block_until_ready(mlp_forward(x, H, W, params))
    assert out_a.shape == (B, N, out_dim), out_a.shape
    assert jnp.allclose(out_a, ref, atol=2e-3, rtol=2e-3), float(
        jnp.max(jnp.abs(out_a - ref)))

    # f32, two-tile path (exercises the first/last-tile halo branches).
    out_b = jax.block_until_ready(mlp_forward(x, H, W, params, row_tile=4))
    assert jnp.allclose(out_b, ref, atol=2e-3, rtol=2e-3), float(
        jnp.max(jnp.abs(out_b - ref)))

    # f32, four-tile path (exercises the interior single-dot halo branch).
    out_c = jax.block_until_ready(mlp_forward(x, H, W, params, row_tile=2))
    assert jnp.allclose(out_c, ref, atol=2e-3, rtol=2e-3), float(
        jnp.max(jnp.abs(out_c - ref)))

    # bf16 MXU path (bf16 operands + bf16 h scratch, f32 accumulation).
    params_bf16 = jax.tree_util.tree_map(
        lambda a: a.astype(jnp.bfloat16), params)
    out_d = jax.block_until_ready(
        mlp_forward(x.astype(jnp.bfloat16), H, W, params_bf16, row_tile=4))
    assert out_d.shape == (B, N, out_dim)
    assert jnp.allclose(out_d.astype(jnp.float32), ref, atol=1e-1, rtol=1e-1), \
        float(jnp.max(jnp.abs(out_d.astype(jnp.float32) - ref)))

    print("KERNEL_OK")
</pallas_src>

<mosaic_0001>
module attributes {stable_mosaic.version = 11 : i64} {
  func.func @_mlp_fused_kernel(%arg0: i32, %arg1: i32, %arg2: memref<1x64x16xf32, #tpu.memory_space<vmem>>, %arg3: memref<16x32xf32, #tpu.memory_space<vmem>>, %arg4: memref<1x32xf32, #tpu.memory_space<vmem>>, %arg5: memref<9x32xf32, #tpu.memory_space<vmem>>, %arg6: memref<1x32xf32, #tpu.memory_space<vmem>>, %arg7: memref<32x16xf32, #tpu.memory_space<vmem>>, %arg8: memref<1x16xf32, #tpu.memory_space<vmem>>, %arg9: memref<1x64x16xf32, #tpu.memory_space<vmem>>, %arg10: memref<80x32xf32, #tpu.memory_space<vmem>>) attributes {dimension_semantics = [#tpu.dimension_semantics<parallel>, #tpu.dimension_semantics<arbitrary>], iteration_bounds = array<i64: 2, 1>, scalar_prefetch = 0 : i64, scratch_operands = 1 : i64, tpu.core_type = #tpu.core_type<tc>, window_params = [{transform_indices = @transform_0, window_bounds = array<i64: 1, 64, 16>}, {pipeline_mode = #tpu.pipeline_mode<synchronous>, transform_indices = @transform_1, window_bounds = array<i64: 16, 32>}, {pipeline_mode = #tpu.pipeline_mode<synchronous>, transform_indices = @transform_2, window_bounds = array<i64: 1, 32>}, {pipeline_mode = #tpu.pipeline_mode<synchronous>, transform_indices = @transform_3, window_bounds = array<i64: 9, 32>}, {pipeline_mode = #tpu.pipeline_mode<synchronous>, transform_indices = @transform_4, window_bounds = array<i64: 1, 32>}, {pipeline_mode = #tpu.pipeline_mode<synchronous>, transform_indices = @transform_5, window_bounds = array<i64: 32, 16>}, {pipeline_mode = #tpu.pipeline_mode<synchronous>, transform_indices = @transform_6, window_bounds = array<i64: 1, 16>}, {transform_indices = @transform_7, window_bounds = array<i64: 1, 64, 16>}]} {
    %c0 = arith.constant 0 : index
    %c0_0 = arith.constant 0 : index
    %0 = vector.load %arg3[%c0, %c0_0] : memref<16x32xf32, #tpu.memory_space<vmem>>, vector<16x32xf32>
    %c0_1 = arith.constant 0 : index
    %c0_2 = arith.constant 0 : index
    %1 = vector.load %arg4[%c0_1, %c0_2] : memref<1x32xf32, #tpu.memory_space<vmem>>, vector<1x32xf32>
    %cst = arith.constant 0.000000e+00 : f32
    %2 = vector.broadcast %cst : f32 to vector<8x32xf32>
    %c64_i32 = arith.constant 64 : i32
    %3 = arith.muli %arg1, %c64_i32 : i32
    %4 = tpu.assume_multiple %3, 64 : i32
    %c0_3 = arith.constant 0 : index
    %c0_4 = arith.constant 0 : index
    %5 = vector.load %arg10[%c0_3, %c0_4] : memref<80x32xf32, #tpu.memory_space<vmem>>, vector<8x32xf32>
    tpu.vector_store %arg10[%c0_3, %c0_4], %2 {strides = array<i32>} : memref<80x32xf32, #tpu.memory_space<vmem>>, vector<8x32xf32>,
    %c0_5 = arith.constant 0 : index
    %6 = arith.index_cast %4 : i32 to index
    %c0_6 = arith.constant 0 : index
    %7 = vector.load %arg2[%c0_5, %6, %c0_6] : memref<1x64x16xf32, #tpu.memory_space<vmem>>, vector<1x64x16xf32>
    %8 = vector.shape_cast %7 : vector<1x64x16xf32> to vector<64x16xf32>
    %cst_7 = arith.constant dense<0.000000e+00> : vector<64x32xf32>
    %9 = tpu.matmul %8, %0, %cst_7 {dimension_numbers = #tpu.dot_dimension_numbers<[1], [0], [0], [1], [0, 0, 1, 1], [], []>} : vector<64x16xf32>, vector<16x32xf32>, vector<64x32xf32> -> vector<64x32xf32>
    %10 = vector.broadcast %1 : vector<1x32xf32> to vector<64x32xf32>
    %11 = arith.addf %9, %10 : vector<64x32xf32>
    %c8 = arith.constant 8 : index
    %c0_8 = arith.constant 0 : index
    %12 = vector.load %arg10[%c8, %c0_8] : memref<80x32xf32, #tpu.memory_space<vmem>>, vector<64x32xf32>
    tpu.vector_store %arg10[%c8, %c0_8], %11 {strides = array<i32>} : memref<80x32xf32, #tpu.memory_space<vmem>>, vector<64x32xf32>,
    %c72 = arith.constant 72 : index
    %c0_9 = arith.constant 0 : index
    %13 = vector.load %arg10[%c72, %c0_9] : memref<80x32xf32, #tpu.memory_space<vmem>>, vector<8x32xf32>
    tpu.vector_store %arg10[%c72, %c0_9], %2 {strides = array<i32>} : memref<80x32xf32, #tpu.memory_space<vmem>>, vector<8x32xf32>,
    %c0_10 = arith.constant 0 : index
    %c0_11 = arith.constant 0 : index
    %14 = vector.load %arg5[%c0_10, %c0_11] : memref<9x32xf32, #tpu.memory_space<vmem>>, vector<9x32xf32>
    %c0_12 = arith.constant 0 : index
    %c0_13 = arith.constant 0 : index
    %15 = vector.load %arg6[%c0_12, %c0_13] : memref<1x32xf32, #tpu.memory_space<vmem>>, vector<1x32xf32>
    %c0_14 = arith.constant 0 : index
    %c0_15 = arith.constant 0 : index
    %16 = vector.load %arg10[%c0_14, %c0_15] : memref<80x32xf32, #tpu.memory_space<vmem>>, vector<80x32xf32>
    %17 = tpu.iota {dimensions = array<i32: 0>} : vector<80x1xi32>
    %c8_i32 = arith.constant 8 : i32
    %c0_i32 = arith.constant 0 : i32
    %18 = arith.cmpi eq, %c8_i32, %c0_i32 : i32
    %c1_i32 = arith.constant 1 : i32
    %19 = arith.select %18, %c1_i32, %c8_i32 : i32
    %20 = vector.broadcast %19 : i32 to vector<80x1xi32>
    %21 = arith.remsi %17, %20 : vector<80x1xi32>
    %c0_i32_16 = arith.constant 0 : i32
    %22 = vector.broadcast %c0_i32_16 : i32 to vector<80x1xi32>
    %23 = arith.cmpi ne, %21, %22 : vector<80x1xi32>
    %c0_i32_17 = arith.constant 0 : i32
    %24 = vector.broadcast %c0_i32_17 : i32 to vector<80x1xi32>
    %25 = arith.cmpi slt, %21, %24 : vector<80x1xi32>
    %c0_i32_18 = arith.constant 0 : i32
    %26 = arith.cmpi slt, %19, %c0_i32_18 : i32
    %27 = vector.broadcast %26 : i1 to vector<80x1xi1>
    %28 = vector.broadcast %27 : vector<80x1xi1> to vector<80x1xi1>
    %29 = arith.xori %25, %28 : vector<80x1xi1>
    %30 = arith.andi %29, %23 : vector<80x1xi1>
    %31 = vector.broadcast %19 : i32 to vector<80x1xi32>
    %32 = arith.addi %21, %31 : vector<80x1xi32>
    %33 = arith.select %30, %32, %21 : vector<80x1xi1>, vector<80x1xi32>
    %c0_i32_19 = arith.constant 0 : i32
    %34 = vector.broadcast %c0_i32_19 : i32 to vector<80x1xi32>
    %35 = arith.cmpi sgt, %33, %34 : vector<80x1xi32>
    %36 = arith.extui %35 : vector<80x1xi1> to vector<80x1xi32>
    %37 = arith.sitofp %36 : vector<80x1xi32> to vector<80x1xf32>
    %c7_i32 = arith.constant 7 : i32
    %38 = vector.broadcast %c7_i32 : i32 to vector<80x1xi32>
    %39 = arith.cmpi slt, %33, %38 : vector<80x1xi32>
    %40 = arith.extui %39 : vector<80x1xi1> to vector<80x1xi32>
    %41 = arith.sitofp %40 : vector<80x1xi32> to vector<80x1xf32>
    %cst_20 = arith.constant 0.000000e+00 : f32
    %42 = vector.broadcast %cst_20 : f32 to vector<1x32xf32>
    %43 = vector.extract_strided_slice %16 {offsets = [0, 0], sizes = [79, 32], strides = [1, 1]} : vector<80x32xf32> to vector<79x32xf32>
    %44 = tpu.concatenate %42, %43 in 0 : vector<1x32xf32>, vector<79x32xf32> -> vector<80x32xf32>
    %45 = vector.broadcast %37 : vector<80x1xf32> to vector<80x32xf32>
    %46 = arith.mulf %44, %45 : vector<80x32xf32>
    %47 = vector.extract_strided_slice %16 {offsets = [1, 0], sizes = [79, 32], strides = [1, 1]} : vector<80x32xf32> to vector<79x32xf32>
    %48 = tpu.concatenate %47, %42 in 0 : vector<79x32xf32>, vector<1x32xf32> -> vector<80x32xf32>
    %49 = vector.broadcast %41 : vector<80x1xf32> to vector<80x32xf32>
    %50 = arith.mulf %48, %49 : vector<80x32xf32>
    %cst_21 = arith.constant 0.000000e+00 : f32
    %51 = vector.broadcast %cst_21 : f32 to vector<64x32xf32>
    %52 = vector.extract_strided_slice %46 {offsets = [0, 0], sizes = [64, 32], strides = [1, 1]} : vector<80x32xf32> to vector<64x32xf32>
    %53 = vector.extract_strided_slice %14 {offsets = [0, 0], sizes = [1, 32], strides = [1, 1]} : vector<9x32xf32> to vector<1x32xf32>
    %54 = vector.broadcast %53 : vector<1x32xf32> to vector<64x32xf32>
    %55 = arith.mulf %52, %54 : vector<64x32xf32>
    %56 = arith.addf %51, %55 : vector<64x32xf32>
    %57 = vector.extract_strided_slice %16 {offsets = [0, 0], sizes = [64, 32], strides = [1, 1]} : vector<80x32xf32> to vector<64x32xf32>
    %58 = vector.extract_strided_slice %14 {offsets = [1, 0], sizes = [1, 32], strides = [1, 1]} : vector<9x32xf32> to vector<1x32xf32>
    %59 = vector.broadcast %58 : vector<1x32xf32> to vector<64x32xf32>
    %60 = arith.mulf %57, %59 : vector<64x32xf32>
    %61 = arith.addf %56, %60 : vector<64x32xf32>
    %62 = vector.extract_strided_slice %50 {offsets = [0, 0], sizes = [64, 32], strides = [1, 1]} : vector<80x32xf32> to vector<64x32xf32>
    %63 = vector.extract_strided_slice %14 {offsets = [2, 0], sizes = [1, 32], strides = [1, 1]} : vector<9x32xf32> to vector<1x32xf32>
    %64 = vector.broadcast %63 : vector<1x32xf32> to vector<64x32xf32>
    %65 = arith.mulf %62, %64 : vector<64x32xf32>
    %66 = arith.addf %61, %65 : vector<64x32xf32>
    %67 = vector.extract_strided_slice %46 {offsets = [8, 0], sizes = [64, 32], strides = [1, 1]} : vector<80x32xf32> to vector<64x32xf32>
    %68 = vector.extract_strided_slice %14 {offsets = [3, 0], sizes = [1, 32], strides = [1, 1]} : vector<9x32xf32> to vector<1x32xf32>
    %69 = vector.broadcast %68 : vector<1x32xf32> to vector<64x32xf32>
    %70 = arith.mulf %67, %69 : vector<64x32xf32>
    %71 = arith.addf %66, %70 : vector<64x32xf32>
    %72 = vector.extract_strided_slice %16 {offsets = [8, 0], sizes = [64, 32], strides = [1, 1]} : vector<80x32xf32> to vector<64x32xf32>
    %73 = vector.extract_strided_slice %14 {offsets = [4, 0], sizes = [1, 32], strides = [1, 1]} : vector<9x32xf32> to vector<1x32xf32>
    %74 = vector.broadcast %73 : vector<1x32xf32> to vector<64x32xf32>
    %75 = arith.mulf %72, %74 : vector<64x32xf32>
    %76 = arith.addf %71, %75 : vector<64x32xf32>
    %77 = vector.extract_strided_slice %50 {offsets = [8, 0], sizes = [64, 32], strides = [1, 1]} : vector<80x32xf32> to vector<64x32xf32>
    %78 = vector.extract_strided_slice %14 {offsets = [5, 0], sizes = [1, 32], strides = [1, 1]} : vector<9x32xf32> to vector<1x32xf32>
    %79 = vector.broadcast %78 : vector<1x32xf32> to vector<64x32xf32>
    %80 = arith.mulf %77, %79 : vector<64x32xf32>
    %81 = arith.addf %76, %80 : vector<64x32xf32>
    %82 = vector.extract_strided_slice %46 {offsets = [16, 0], sizes = [64, 32], strides = [1, 1]} : vector<80x32xf32> to vector<64x32xf32>
    %83 = vector.extract_strided_slice %14 {offsets = [6, 0], sizes = [1, 32], strides = [1, 1]} : vector<9x32xf32> to vector<1x32xf32>
    %84 = vector.broadcast %83 : vector<1x32xf32> to vector<64x32xf32>
    %85 = arith.mulf %82, %84 : vector<64x32xf32>
    %86 = arith.addf %81, %85 : vector<64x32xf32>
    %87 = vector.extract_strided_slice %16 {offsets = [16, 0], sizes = [64, 32], strides = [1, 1]} : vector<80x32xf32> to vector<64x32xf32>
    %88 = vector.extract_strided_slice %14 {offsets = [7, 0], sizes = [1, 32], strides = [1, 1]} : vector<9x32xf32> to vector<1x32xf32>
    %89 = vector.broadcast %88 : vector<1x32xf32> to vector<64x32xf32>
    %90 = arith.mulf %87, %89 : vector<64x32xf32>
    %91 = arith.addf %86, %90 : vector<64x32xf32>
    %92 = vector.extract_strided_slice %50 {offsets = [16, 0], sizes = [64, 32], strides = [1, 1]} : vector<80x32xf32> to vector<64x32xf32>
    %93 = vector.extract_strided_slice %14 {offsets = [8, 0], sizes = [1, 32], strides = [1, 1]} : vector<9x32xf32> to vector<1x32xf32>
    %94 = vector.broadcast %93 : vector<1x32xf32> to vector<64x32xf32>
    %95 = arith.mulf %92, %94 : vector<64x32xf32>
    %96 = arith.addf %91, %95 : vector<64x32xf32>
    %97 = vector.broadcast %15 : vector<1x32xf32> to vector<64x32xf32>
    %98 = arith.addf %96, %97 : vector<64x32xf32>
    %cst_22 = arith.constant 0.707106769 : f32
    %99 = vector.broadcast %cst_22 : f32 to vector<64x32xf32>
    %100 = arith.mulf %98, %99 : vector<64x32xf32>
    %101 = math.absf %100 : vector<64x32xf32>
    %cst_23 = arith.constant 0.327591091 : f32
    %102 = vector.broadcast %cst_23 : f32 to vector<64x32xf32>
    %103 = arith.mulf %102, %101 : vector<64x32xf32>
    %cst_24 = arith.constant 1.000000e+00 : f32
    %104 = vector.broadcast %cst_24 : f32 to vector<64x32xf32>
    %105 = arith.addf %104, %103 : vector<64x32xf32>
    %cst_25 = arith.constant 1.000000e+00 : f32
    %106 = vector.broadcast %cst_25 : f32 to vector<64x32xf32>
    %107 = arith.divf %106, %105 : vector<64x32xf32>
    %cst_26 = arith.constant 1.06140542 : f32
    %108 = vector.broadcast %cst_26 : f32 to vector<64x32xf32>
    %109 = arith.mulf %107, %108 : vector<64x32xf32>
    %cst_27 = arith.constant -1.45315206 : f32
    %110 = vector.broadcast %cst_27 : f32 to vector<64x32xf32>
    %111 = arith.addf %110, %109 : vector<64x32xf32>
    %112 = arith.mulf %107, %111 : vector<64x32xf32>
    %cst_28 = arith.constant 1.42141378 : f32
    %113 = vector.broadcast %cst_28 : f32 to vector<64x32xf32>
    %114 = arith.addf %113, %112 : vector<64x32xf32>
    %115 = arith.mulf %107, %114 : vector<64x32xf32>
    %cst_29 = arith.constant -0.284496725 : f32
    %116 = vector.broadcast %cst_29 : f32 to vector<64x32xf32>
    %117 = arith.addf %116, %115 : vector<64x32xf32>
    %118 = arith.mulf %107, %117 : vector<64x32xf32>
    %cst_30 = arith.constant 0.254829586 : f32
    %119 = vector.broadcast %cst_30 : f32 to vector<64x32xf32>
    %120 = arith.addf %119, %118 : vector<64x32xf32>
    %121 = arith.mulf %107, %120 : vector<64x32xf32>
    %cst_31 = arith.constant 0.000000e+00 : f32
    %122 = vector.broadcast %cst_31 : f32 to vector<64x32xf32>
    %123 = arith.subf %122, %101 : vector<64x32xf32>
    %124 = arith.mulf %123, %101 : vector<64x32xf32>
    %125 = math.exp %124 : vector<64x32xf32>
    %126 = arith.mulf %121, %125 : vector<64x32xf32>
    %cst_32 = arith.constant 1.000000e+00 : f32
    %127 = vector.broadcast %cst_32 : f32 to vector<64x32xf32>
    %128 = arith.subf %127, %126 : vector<64x32xf32>
    %cst_33 = arith.constant 0.000000e+00 : f32
    %129 = vector.broadcast %cst_33 : f32 to vector<64x32xf32>
    %130 = arith.cmpf olt, %100, %129 : vector<64x32xf32>
    %cst_34 = arith.constant 0.000000e+00 : f32
    %131 = vector.broadcast %cst_34 : f32 to vector<64x32xf32>
    %132 = arith.subf %131, %128 : vector<64x32xf32>
    %133 = arith.select %130, %132, %128 : vector<64x32xi1>, vector<64x32xf32>
    %cst_35 = arith.constant 5.000000e-01 : f32
    %134 = vector.broadcast %cst_35 : f32 to vector<64x32xf32>
    %135 = arith.mulf %134, %98 : vector<64x32xf32>
    %cst_36 = arith.constant 1.000000e+00 : f32
    %136 = vector.broadcast %cst_36 : f32 to vector<64x32xf32>
    %137 = arith.addf %136, %133 : vector<64x32xf32>
    %138 = arith.mulf %135, %137 : vector<64x32xf32>
    %c0_37 = arith.constant 0 : index
    %c0_38 = arith.constant 0 : index
    %139 = vector.load %arg7[%c0_37, %c0_38] : memref<32x16xf32, #tpu.memory_space<vmem>>, vector<32x16xf32>
    %c0_39 = arith.constant 0 : index
    %c0_40 = arith.constant 0 : index
    %140 = vector.load %arg8[%c0_39, %c0_40] : memref<1x16xf32, #tpu.memory_space<vmem>>, vector<1x16xf32>
    %cst_41 = arith.constant dense<0.000000e+00> : vector<64x16xf32>
    %141 = tpu.matmul %138, %139, %cst_41 {dimension_numbers = #tpu.dot_dimension_numbers<[1], [0], [0], [1], [0, 0, 1, 1], [], []>} : vector<64x32xf32>, vector<32x16xf32>, vector<64x16xf32> -> vector<64x16xf32>
    %142 = vector.broadcast %140 : vector<1x16xf32> to vector<64x16xf32>
    %143 = arith.addf %141, %142 : vector<64x16xf32>
    %c0_42 = arith.constant 0 : index
    %c0_43 = arith.constant 0 : index
    %c0_44 = arith.constant 0 : index
    %144 = vector.load %arg9[%c0_42, %c0_43, %c0_44] : memref<1x64x16xf32, #tpu.memory_space<vmem>>, vector<1x64x16xf32>
    %145 = vector.shape_cast %144 : vector<1x64x16xf32> to vector<64x16xf32>
    %146 = vector.shape_cast %143 : vector<64x16xf32> to vector<1x64x16xf32>
    tpu.vector_store %arg9[%c0_42, %c0_43, %c0_44], %146 {strides = array<i32>} : memref<1x64x16xf32, #tpu.memory_space<vmem>>, vector<1x64x16xf32>,
    return
  }
  func.func @transform_0(%arg0: i32, %arg1: i32) -> (i32, i32, i32) {
    %c0_i32 = arith.constant 0 : i32
    %c0_i32_0 = arith.constant 0 : i32
    %c0_i32_1 = arith.constant 0 : i32
    return %arg0, %c0_i32, %c0_i32_0 : i32, i32, i32
  }
  func.func @transform_1(%arg0: i32, %arg1: i32) -> (i32, i32) {
    %c0_i32 = arith.constant 0 : i32
    %c0_i32_0 = arith.constant 0 : i32
    %c0_i32_1 = arith.constant 0 : i32
    return %c0_i32, %c0_i32_0 : i32, i32
  }
  func.func @transform_2(%arg0: i32, %arg1: i32) -> (i32, i32) {
    %c0_i32 = arith.constant 0 : i32
    %c0_i32_0 = arith.constant 0 : i32
    %c0_i32_1 = arith.constant 0 : i32
    return %c0_i32, %c0_i32_0 : i32, i32
  }
  func.func @transform_3(%arg0: i32, %arg1: i32) -> (i32, i32) {
    %c0_i32 = arith.constant 0 : i32
    %c0_i32_0 = arith.constant 0 : i32
    %c0_i32_1 = arith.constant 0 : i32
    return %c0_i32, %c0_i32_0 : i32, i32
  }
  func.func @transform_4(%arg0: i32, %arg1: i32) -> (i32, i32) {
    %c0_i32 = arith.constant 0 : i32
    %c0_i32_0 = arith.constant 0 : i32
    %c0_i32_1 = arith.constant 0 : i32
    return %c0_i32, %c0_i32_0 : i32, i32
  }
  func.func @transform_5(%arg0: i32, %arg1: i32) -> (i32, i32) {
    %c0_i32 = arith.constant 0 : i32
    %c0_i32_0 = arith.constant 0 : i32
    %c0_i32_1 = arith.constant 0 : i32
    return %c0_i32, %c0_i32_0 : i32, i32
  }
  func.func @transform_6(%arg0: i32, %arg1: i32) -> (i32, i32) {
    %c0_i32 = arith.constant 0 : i32
    %c0_i32_0 = arith.constant 0 : i32
    %c0_i32_1 = arith.constant 0 : i32
    return %c0_i32, %c0_i32_0 : i32, i32
  }
  func.func @transform_7(%arg0: i32, %arg1: i32) -> (i32, i32, i32) {
    %c0_i32 = arith.constant 0 : i32
    %c0_i32_0 = arith.constant 0 : i32
    return %arg0, %arg1, %c0_i32 : i32, i32, i32
  }
}

module attributes {stable_mosaic.version = 11 : i64} {
  func.func @_mlp_fused_kernel(%arg0: i32, %arg1: i32, %arg2: memref<1x64x16xf32, #tpu.memory_space<vmem>>, %arg3: memref<16x32xf32, #tpu.memory_space<vmem>>, %arg4: memref<1x32xf32, #tpu.memory_space<vmem>>, %arg5: memref<9x32xf32, #tpu.memory_space<vmem>>, %arg6: memref<1x32xf32, #tpu.memory_space<vmem>>, %arg7: memref<32x16xf32, #tpu.memory_space<vmem>>, %arg8: memref<1x16xf32, #tpu.memory_space<vmem>>, %arg9: memref<1x64x16xf32, #tpu.memory_space<vmem>>, %arg10: memref<80x32xf32, #tpu.memory_space<vmem>>) attributes {dimension_semantics = [#tpu.dimension_semantics<parallel>, #tpu.dimension_semantics<arbitrary>], iteration_bounds = array<i64: 2, 1>, scalar_prefetch = 0 : i64, scratch_operands = 1 : i64, tpu.core_type = #tpu.core_type<tc>, window_params = [{transform_indices = @transform_0, window_bounds = array<i64: 1, 64, 16>}, {pipeline_mode = #tpu.pipeline_mode<synchronous>, transform_indices = @transform_1, window_bounds = array<i64: 16, 32>}, {pipeline_mode = #tpu.pipeline_mode<synchronous>, transform_indices = @transform_2, window_bounds = array<i64: 1, 32>}, {pipeline_mode = #tpu.pipeline_mode<synchronous>, transform_indices = @transform_3, window_bounds = array<i64: 9, 32>}, {pipeline_mode = #tpu.pipeline_mode<synchronous>, transform_indices = @transform_4, window_bounds = array<i64: 1, 32>}, {pipeline_mode = #tpu.pipeline_mode<synchronous>, transform_indices = @transform_5, window_bounds = array<i64: 32, 16>}, {pipeline_mode = #tpu.pipeline_mode<synchronous>, transform_indices = @transform_6, window_bounds = array<i64: 1, 16>}, {transform_indices = @transform_7, window_bounds = array<i64: 1, 64, 16>}]} {
    %c0 = arith.constant 0 : index
    %c0_0 = arith.constant 0 : index
    %0 = vector.load %arg3[%c0, %c0_0] : memref<16x32xf32, #tpu.memory_space<vmem>>, vector<16x32xf32>
    %c0_1 = arith.constant 0 : index
    %c0_2 = arith.constant 0 : index
    %1 = vector.load %arg4[%c0_1, %c0_2] : memref<1x32xf32, #tpu.memory_space<vmem>>, vector<1x32xf32>
    %cst = arith.constant 0.000000e+00 : f32
    %2 = vector.broadcast %cst : f32 to vector<8x32xf32>
    %c64_i32 = arith.constant 64 : i32
    %3 = arith.muli %arg1, %c64_i32 : i32
    %4 = tpu.assume_multiple %3, 64 : i32
    %c0_3 = arith.constant 0 : index
    %c0_4 = arith.constant 0 : index
    %5 = vector.load %arg10[%c0_3, %c0_4] : memref<80x32xf32, #tpu.memory_space<vmem>>, vector<8x32xf32>
    tpu.vector_store %arg10[%c0_3, %c0_4], %2 {strides = array<i32>} : memref<80x32xf32, #tpu.memory_space<vmem>>, vector<8x32xf32>,
    %c0_5 = arith.constant 0 : index
    %6 = arith.index_cast %4 : i32 to index
    %c0_6 = arith.constant 0 : index
    %7 = vector.load %arg2[%c0_5, %6, %c0_6] : memref<1x64x16xf32, #tpu.memory_space<vmem>>, vector<1x64x16xf32>
    %8 = vector.shape_cast %7 : vector<1x64x16xf32> to vector<64x16xf32>
    %cst_7 = arith.constant dense<0.000000e+00> : vector<64x32xf32>
    %9 = tpu.matmul %8, %0, %cst_7 {dimension_numbers = #tpu.dot_dimension_numbers<[1], [0], [0], [1], [0, 0, 1, 1], [], []>} : vector<64x16xf32>, vector<16x32xf32>, vector<64x32xf32> -> vector<64x32xf32>
    %10 = vector.broadcast %1 : vector<1x32xf32> to vector<64x32xf32>
    %11 = arith.addf %9, %10 : vector<64x32xf32>
    %c8 = arith.constant 8 : index
    %c0_8 = arith.constant 0 : index
    %12 = vector.load %arg10[%c8, %c0_8] : memref<80x32xf32, #tpu.memory_space<vmem>>, vector<64x32xf32>
    tpu.vector_store %arg10[%c8, %c0_8], %11 {strides = array<i32>} : memref<80x32xf32, #tpu.memory_space<vmem>>, vector<64x32xf32>,
    %c72 = arith.constant 72 : index
    %c0_9 = arith.constant 0 : index
    %13 = vector.load %arg10[%c72, %c0_9] : memref<80x32xf32, #tpu.memory_space<vmem>>, vector<8x32xf32>
    tpu.vector_store %arg10[%c72, %c0_9], %2 {strides = array<i32>} : memref<80x32xf32, #tpu.memory_space<vmem>>, vector<8x32xf32>,
    %c0_10 = arith.constant 0 : index
    %c0_11 = arith.constant 0 : index
    %14 = vector.load %arg5[%c0_10, %c0_11] : memref<9x32xf32, #tpu.memory_space<vmem>>, vector<9x32xf32>
    %c0_12 = arith.constant 0 : index
    %c0_13 = arith.constant 0 : index
    %15 = vector.load %arg6[%c0_12, %c0_13] : memref<1x32xf32, #tpu.memory_space<vmem>>, vector<1x32xf32>
    %c0_14 = arith.constant 0 : index
    %c0_15 = arith.constant 0 : index
    %16 = vector.load %arg10[%c0_14, %c0_15] : memref<80x32xf32, #tpu.memory_space<vmem>>, vector<80x32xf32>
    %17 = tpu.iota {dimensions = array<i32: 0>} : vector<80x1xi32>
    %c8_i32 = arith.constant 8 : i32
    %c0_i32 = arith.constant 0 : i32
    %18 = arith.cmpi eq, %c8_i32, %c0_i32 : i32
    %c1_i32 = arith.constant 1 : i32
    %19 = arith.select %18, %c1_i32, %c8_i32 : i32
    %20 = vector.broadcast %19 : i32 to vector<80x1xi32>
    %21 = arith.remsi %17, %20 : vector<80x1xi32>
    %c0_i32_16 = arith.constant 0 : i32
    %22 = vector.broadcast %c0_i32_16 : i32 to vector<80x1xi32>
    %23 = arith.cmpi ne, %21, %22 : vector<80x1xi32>
    %c0_i32_17 = arith.constant 0 : i32
    %24 = vector.broadcast %c0_i32_17 : i32 to vector<80x1xi32>
    %25 = arith.cmpi slt, %21, %24 : vector<80x1xi32>
    %c0_i32_18 = arith.constant 0 : i32
    %26 = arith.cmpi slt, %19, %c0_i32_18 : i32
    %27 = vector.broadcast %26 : i1 to vector<80x1xi1>
    %28 = vector.broadcast %27 : vector<80x1xi1> to vector<80x1xi1>
    %29 = arith.xori %25, %28 : vector<80x1xi1>
    %30 = arith.andi %29, %23 : vector<80x1xi1>
    %31 = vector.broadcast %19 : i32 to vector<80x1xi32>
    %32 = arith.addi %21, %31 : vector<80x1xi32>
    %33 = arith.select %30, %32, %21 : vector<80x1xi1>, vector<80x1xi32>
    %c0_i32_19 = arith.constant 0 : i32
    %34 = vector.broadcast %c0_i32_19 : i32 to vector<80x1xi32>
    %35 = arith.cmpi sgt, %33, %34 : vector<80x1xi32>
    %36 = arith.extui %35 : vector<80x1xi1> to vector<80x1xi32>
    %37 = arith.sitofp %36 : vector<80x1xi32> to vector<80x1xf32>
    %c7_i32 = arith.constant 7 : i32
    %38 = vector.broadcast %c7_i32 : i32 to vector<80x1xi32>
    %39 = arith.cmpi slt, %33, %38 : vector<80x1xi32>
    %40 = arith.extui %39 : vector<80x1xi1> to vector<80x1xi32>
    %41 = arith.sitofp %40 : vector<80x1xi32> to vector<80x1xf32>
    %cst_20 = arith.constant 0.000000e+00 : f32
    %42 = vector.broadcast %cst_20 : f32 to vector<1x32xf32>
    %43 = vector.extract_strided_slice %16 {offsets = [0, 0], sizes = [79, 32], strides = [1, 1]} : vector<80x32xf32> to vector<79x32xf32>
    %44 = tpu.concatenate %42, %43 in 0 : vector<1x32xf32>, vector<79x32xf32> -> vector<80x32xf32>
    %45 = vector.broadcast %37 : vector<80x1xf32> to vector<80x32xf32>
    %46 = arith.mulf %44, %45 : vector<80x32xf32>
    %47 = vector.extract_strided_slice %16 {offsets = [1, 0], sizes = [79, 32], strides = [1, 1]} : vector<80x32xf32> to vector<79x32xf32>
    %48 = tpu.concatenate %47, %42 in 0 : vector<79x32xf32>, vector<1x32xf32> -> vector<80x32xf32>
    %49 = vector.broadcast %41 : vector<80x1xf32> to vector<80x32xf32>
    %50 = arith.mulf %48, %49 : vector<80x32xf32>
    %cst_21 = arith.constant 0.000000e+00 : f32
    %51 = vector.broadcast %cst_21 : f32 to vector<64x32xf32>
    %52 = vector.extract_strided_slice %46 {offsets = [0, 0], sizes = [64, 32], strides = [1, 1]} : vector<80x32xf32> to vector<64x32xf32>
    %53 = vector.extract_strided_slice %14 {offsets = [0, 0], sizes = [1, 32], strides = [1, 1]} : vector<9x32xf32> to vector<1x32xf32>
    %54 = vector.broadcast %53 : vector<1x32xf32> to vector<64x32xf32>
    %55 = arith.mulf %52, %54 : vector<64x32xf32>
    %56 = arith.addf %51, %55 : vector<64x32xf32>
    %57 = vector.extract_strided_slice %16 {offsets = [0, 0], sizes = [64, 32], strides = [1, 1]} : vector<80x32xf32> to vector<64x32xf32>
    %58 = vector.extract_strided_slice %14 {offsets = [1, 0], sizes = [1, 32], strides = [1, 1]} : vector<9x32xf32> to vector<1x32xf32>
    %59 = vector.broadcast %58 : vector<1x32xf32> to vector<64x32xf32>
    %60 = arith.mulf %57, %59 : vector<64x32xf32>
    %61 = arith.addf %56, %60 : vector<64x32xf32>
    %62 = vector.extract_strided_slice %50 {offsets = [0, 0], sizes = [64, 32], strides = [1, 1]} : vector<80x32xf32> to vector<64x32xf32>
    %63 = vector.extract_strided_slice %14 {offsets = [2, 0], sizes = [1, 32], strides = [1, 1]} : vector<9x32xf32> to vector<1x32xf32>
    %64 = vector.broadcast %63 : vector<1x32xf32> to vector<64x32xf32>
    %65 = arith.mulf %62, %64 : vector<64x32xf32>
    %66 = arith.addf %61, %65 : vector<64x32xf32>
    %67 = vector.extract_strided_slice %46 {offsets = [8, 0], sizes = [64, 32], strides = [1, 1]} : vector<80x32xf32> to vector<64x32xf32>
    %68 = vector.extract_strided_slice %14 {offsets = [3, 0], sizes = [1, 32], strides = [1, 1]} : vector<9x32xf32> to vector<1x32xf32>
    %69 = vector.broadcast %68 : vector<1x32xf32> to vector<64x32xf32>
    %70 = arith.mulf %67, %69 : vector<64x32xf32>
    %71 = arith.addf %66, %70 : vector<64x32xf32>
    %72 = vector.extract_strided_slice %16 {offsets = [8, 0], sizes = [64, 32], strides = [1, 1]} : vector<80x32xf32> to vector<64x32xf32>
    %73 = vector.extract_strided_slice %14 {offsets = [4, 0], sizes = [1, 32], strides = [1, 1]} : vector<9x32xf32> to vector<1x32xf32>
    %74 = vector.broadcast %73 : vector<1x32xf32> to vector<64x32xf32>
    %75 = arith.mulf %72, %74 : vector<64x32xf32>
    %76 = arith.addf %71, %75 : vector<64x32xf32>
    %77 = vector.extract_strided_slice %50 {offsets = [8, 0], sizes = [64, 32], strides = [1, 1]} : vector<80x32xf32> to vector<64x32xf32>
    %78 = vector.extract_strided_slice %14 {offsets = [5, 0], sizes = [1, 32], strides = [1, 1]} : vector<9x32xf32> to vector<1x32xf32>
    %79 = vector.broadcast %78 : vector<1x32xf32> to vector<64x32xf32>
    %80 = arith.mulf %77, %79 : vector<64x32xf32>
    %81 = arith.addf %76, %80 : vector<64x32xf32>
    %82 = vector.extract_strided_slice %46 {offsets = [16, 0], sizes = [64, 32], strides = [1, 1]} : vector<80x32xf32> to vector<64x32xf32>
    %83 = vector.extract_strided_slice %14 {offsets = [6, 0], sizes = [1, 32], strides = [1, 1]} : vector<9x32xf32> to vector<1x32xf32>
    %84 = vector.broadcast %83 : vector<1x32xf32> to vector<64x32xf32>
    %85 = arith.mulf %82, %84 : vector<64x32xf32>
    %86 = arith.addf %81, %85 : vector<64x32xf32>
    %87 = vector.extract_strided_slice %16 {offsets = [16, 0], sizes = [64, 32], strides = [1, 1]} : vector<80x32xf32> to vector<64x32xf32>
    %88 = vector.extract_strided_slice %14 {offsets = [7, 0], sizes = [1, 32], strides = [1, 1]} : vector<9x32xf32> to vector<1x32xf32>
    %89 = vector.broadcast %88 : vector<1x32xf32> to vector<64x32xf32>
    %90 = arith.mulf %87, %89 : vector<64x32xf32>
    %91 = arith.addf %86, %90 : vector<64x32xf32>
    %92 = vector.extract_strided_slice %50 {offsets = [16, 0], sizes = [64, 32], strides = [1, 1]} : vector<80x32xf32> to vector<64x32xf32>
    %93 = vector.extract_strided_slice %14 {offsets = [8, 0], sizes = [1, 32], strides = [1, 1]} : vector<9x32xf32> to vector<1x32xf32>
    %94 = vector.broadcast %93 : vector<1x32xf32> to vector<64x32xf32>
    %95 = arith.mulf %92, %94 : vector<64x32xf32>
    %96 = arith.addf %91, %95 : vector<64x32xf32>
    %97 = vector.broadcast %15 : vector<1x32xf32> to vector<64x32xf32>
    %98 = arith.addf %96, %97 : vector<64x32xf32>
    %cst_22 = arith.constant 0.707106769 : f32
    %99 = vector.broadcast %cst_22 : f32 to vector<64x32xf32>
    %100 = arith.mulf %98, %99 : vector<64x32xf32>
    %101 = math.absf %100 : vector<64x32xf32>
    %cst_23 = arith.constant 0.327591091 : f32
    %102 = vector.broadcast %cst_23 : f32 to vector<64x32xf32>
    %103 = arith.mulf %102, %101 : vector<64x32xf32>
    %cst_24 = arith.constant 1.000000e+00 : f32
    %104 = vector.broadcast %cst_24 : f32 to vector<64x32xf32>
    %105 = arith.addf %104, %103 : vector<64x32xf32>
    %cst_25 = arith.constant 1.000000e+00 : f32
    %106 = vector.broadcast %cst_25 : f32 to vector<64x32xf32>
    %107 = arith.divf %106, %105 : vector<64x32xf32>
    %cst_26 = arith.constant 1.06140542 : f32
    %108 = vector.broadcast %cst_26 : f32 to vector<64x32xf32>
    %109 = arith.mulf %107, %108 : vector<64x32xf32>
    %cst_27 = arith.constant -1.45315206 : f32
    %110 = vector.broadcast %cst_27 : f32 to vector<64x32xf32>
    %111 = arith.addf %110, %109 : vector<64x32xf32>
    %112 = arith.mulf %107, %111 : vector<64x32xf32>
    %cst_28 = arith.constant 1.42141378 : f32
    %113 = vector.broadcast %cst_28 : f32 to vector<64x32xf32>
    %114 = arith.addf %113, %112 : vector<64x32xf32>
    %115 = arith.mulf %107, %114 : vector<64x32xf32>
    %cst_29 = arith.constant -0.284496725 : f32
    %116 = vector.broadcast %cst_29 : f32 to vector<64x32xf32>
    %117 = arith.addf %116, %115 : vector<64x32xf32>
    %118 = arith.mulf %107, %117 : vector<64x32xf32>
    %cst_30 = arith.constant 0.254829586 : f32
    %119 = vector.broadcast %cst_30 : f32 to vector<64x32xf32>
    %120 = arith.addf %119, %118 : vector<64x32xf32>
    %121 = arith.mulf %107, %120 : vector<64x32xf32>
    %cst_31 = arith.constant 0.000000e+00 : f32
    %122 = vector.broadcast %cst_31 : f32 to vector<64x32xf32>
    %123 = arith.subf %122, %101 : vector<64x32xf32>
    %124 = arith.mulf %123, %101 : vector<64x32xf32>
    %125 = math.exp %124 : vector<64x32xf32>
    %126 = arith.mulf %121, %125 : vector<64x32xf32>
    %cst_32 = arith.constant 1.000000e+00 : f32
    %127 = vector.broadcast %cst_32 : f32 to vector<64x32xf32>
    %128 = arith.subf %127, %126 : vector<64x32xf32>
    %cst_33 = arith.constant 0.000000e+00 : f32
    %129 = vector.broadcast %cst_33 : f32 to vector<64x32xf32>
    %130 = arith.cmpf olt, %100, %129 : vector<64x32xf32>
    %cst_34 = arith.constant 0.000000e+00 : f32
    %131 = vector.broadcast %cst_34 : f32 to vector<64x32xf32>
    %132 = arith.subf %131, %128 : vector<64x32xf32>
    %133 = arith.select %130, %132, %128 : vector<64x32xi1>, vector<64x32xf32>
    %cst_35 = arith.constant 5.000000e-01 : f32
    %134 = vector.broadcast %cst_35 : f32 to vector<64x32xf32>
    %135 = arith.mulf %134, %98 : vector<64x32xf32>
    %cst_36 = arith.constant 1.000000e+00 : f32
    %136 = vector.broadcast %cst_36 : f32 to vector<64x32xf32>
    %137 = arith.addf %136, %133 : vector<64x32xf32>
    %138 = arith.mulf %135, %137 : vector<64x32xf32>
    %c0_37 = arith.constant 0 : index
    %c0_38 = arith.constant 0 : index
    %139 = vector.load %arg7[%c0_37, %c0_38] : memref<32x16xf32, #tpu.memory_space<vmem>>, vector<32x16xf32>
    %c0_39 = arith.constant 0 : index
    %c0_40 = arith.constant 0 : index
    %140 = vector.load %arg8[%c0_39, %c0_40] : memref<1x16xf32, #tpu.memory_space<vmem>>, vector<1x16xf32>
    %cst_41 = arith.constant dense<0.000000e+00> : vector<64x16xf32>
    %141 = tpu.matmul %138, %139, %cst_41 {dimension_numbers = #tpu.dot_dimension_numbers<[1], [0], [0], [1], [0, 0, 1, 1], [], []>} : vector<64x32xf32>, vector<32x16xf32>, vector<64x16xf32> -> vector<64x16xf32>
    %142 = vector.broadcast %140 : vector<1x16xf32> to vector<64x16xf32>
    %143 = arith.addf %141, %142 : vector<64x16xf32>
    %c0_42 = arith.constant 0 : index
    %c0_43 = arith.constant 0 : index
    %c0_44 = arith.constant 0 : index
    %144 = vector.load %arg9[%c0_42, %c0_43, %c0_44] : memref<1x64x16xf32, #tpu.memory_space<vmem>>, vector<1x64x16xf32>
    %145 = vector.shape_cast %144 : vector<1x64x16xf32> to vector<64x16xf32>
    %146 = vector.shape_cast %143 : vector<64x16xf32> to vector<1x64x16xf32>
    tpu.vector_store %arg9[%c0_42, %c0_43, %c0_44], %146 {strides = array<i32>} : memref<1x64x16xf32, #tpu.memory_space<vmem>>, vector<1x64x16xf32>,
    return
  }
  func.func @transform_0(%arg0: i32, %arg1: i32) -> (i32, i32, i32) {
    %c0_i32 = arith.constant 0 : i32
    %c0_i32_0 = arith.constant 0 : i32
    %c0_i32_1 = arith.constant 0 : i32
    return %arg0, %c0_i32, %c0_i32_0 : i32, i32, i32
  }
  func.func @transform_1(%arg0: i32, %arg1: i32) -> (i32, i32) {
    %c0_i32 = arith.constant 0 : i32
    %c0_i32_0 = arith.constant 0 : i32
    %c0_i32_1 = arith.constant 0 : i32
    return %c0_i32, %c0_i32_0 : i32, i32
  }
  func.func @transform_2(%arg0: i32, %arg1: i32) -> (i32, i32) {
    %c0_i32 = arith.constant 0 : i32
    %c0_i32_0 = arith.constant 0 : i32
    %c0_i32_1 = arith.constant 0 : i32
    return %c0_i32, %c0_i32_0 : i32, i32
  }
  func.func @transform_3(%arg0: i32, %arg1: i32) -> (i32, i32) {
    %c0_i32 = arith.constant 0 : i32
    %c0_i32_0 = arith.constant 0 : i32
    %c0_i32_1 = arith.constant 0 : i32
    return %c0_i32, %c0_i32_0 : i32, i32
  }
  func.func @transform_4(%arg0: i32, %arg1: i32) -> (i32, i32) {
    %c0_i32 = arith.constant 0 : i32
    %c0_i32_0 = arith.constant 0 : i32
    %c0_i32_1 = arith.constant 0 : i32
    return %c0_i32, %c0_i32_0 : i32, i32
  }
  func.func @transform_5(%arg0: i32, %arg1: i32) -> (i32, i32) {
    %c0_i32 = arith.constant 0 : i32
    %c0_i32_0 = arith.constant 0 : i32
    %c0_i32_1 = arith.constant 0 : i32
    return %c0_i32, %c0_i32_0 : i32, i32
  }
  func.func @transform_6(%arg0: i32, %arg1: i32) -> (i32, i32) {
    %c0_i32 = arith.constant 0 : i32
    %c0_i32_0 = arith.constant 0 : i32
    %c0_i32_1 = arith.constant 0 : i32
    return %c0_i32, %c0_i32_0 : i32, i32
  }
  func.func @transform_7(%arg0: i32, %arg1: i32) -> (i32, i32, i32) {
    %c0_i32 = arith.constant 0 : i32
    %c0_i32_0 = arith.constant 0 : i32
    return %arg0, %arg1, %c0_i32 : i32, i32, i32
  }
}

</mosaic_0001>

<llo_original>
// kernel: tpu_custom_call.1
$region0: #{tpu_custom_call.1}
  #allocation0 [shape = 'u32[]', space=smem, size = 0x4, offset = 0x4, fixed_abs, tag = 'smem constant byte address 0x4 - core index']
  #allocation1 [shape = 'u32[144,128]{1,0:T(1,128)}', space=vmem, size = 0x12000, scoped, tag = 'internal scratch']
  #allocation2 [shape = 'f32[80,32]{1,0:T(8,128)}', space=vmem, size = 0xa000, scoped, tag = 'scratch operand']
  %s0 = inlined_call_operand.vmem [shape: f32[2,64,16], index: 0, kind: input, shape index: {}]
  %s1 = inlined_call_operand.vmem [shape: f32[16,32], index: 1, kind: input, shape index: {}]
  %s2 = inlined_call_operand.vmem [shape: f32[1,32], index: 2, kind: input, shape index: {}]
  %s3 = inlined_call_operand.vmem [shape: f32[9,32], index: 3, kind: input, shape index: {}]
  %s4 = inlined_call_operand.vmem [shape: f32[1,32], index: 4, kind: input, shape index: {}]
  %s5 = inlined_call_operand.vmem [shape: f32[32,16], index: 5, kind: input, shape index: {}]
  %s6 = inlined_call_operand.vmem [shape: f32[1,16], index: 6, kind: input, shape index: {}]
  %s7 = inlined_call_operand.vmem [shape: f32[2,64,16], index: 7, kind: output, shape index: {}]
  %s8 = sld [smem:[#allocation0]]
  $region61: #{tpu_custom_call.1} parent=0
    _
  %s10 = ssub.s32 1, %s8
  %s11 = scalar_select 0, %s10, %s8
  loop: start=0, step=1, limit=4
  $region2: #{tpu_custom_call.1} parent=0 // loop_pre_header
    _
  $region3: #{tpu_custom_call.1} parent=0 // loop_header
    %s13 = sphi 0, %s17
    %p14 = scmp.ge.s32.totalorder %s13, 4
    %s20 = sphi 0, %s32
    %s21 = sphi 0, %s28
    %s22 = sphi 0, %s20
    %s23 = sphi 0, %s21
    %s24 = sphi 0, %s22
    %s25 = sphi 0, %s23
    %s35 = sphi 0, %s37
    %s38 = sphi 0, %s35
    %s39 = sphi 0, %s38
    %s55 = sphi 0, %s39
    %s59 = sphi 0, %s59
    %s61 = sphi 0, %s59
    %s62 = sphi 0, %s61
    %s76 = sphi 0, %s62
    %s80 = sphi 0, %s80
    %s82 = sphi 0, %s80
    %s83 = sphi 0, %s82
    %s97 = sphi 0, %s83
    %s101 = sphi 0, %s101
    %s103 = sphi 0, %s101
    %s104 = sphi 0, %s103
    %s118 = sphi 0, %s104
    %s122 = sphi 0, %s122
    %s124 = sphi 0, %s122
    %s125 = sphi 0, %s124
    %s139 = sphi 0, %s125
    %s143 = sphi 0, %s143
    %s145 = sphi 0, %s143
    %s146 = sphi 0, %s145
    %s160 = sphi 0, %s146
    %s164 = sphi 0, %s164
    %s166 = sphi 0, %s164
    %s167 = sphi 0, %s166
    %s181 = sphi 0, %s167
    %s189 = sphi 0, %s191
    %s192 = sphi 0, %s189
    %s193 = sphi 0, %s192
    %s209 = sphi 0, %s193
  $region4: #{tpu_custom_call.1} parent=0 // loop_header_branch
    %16 = sbr.rel (%p14) target = $region8
  $region5: #{tpu_custom_call.1} parent=0 // loop_body
    %s18 = ssub.s32 %s13, 1
    %s19 = ssub.s32 %s13, 2
    %s26 = sadd.s32 1, %s21
    %p27 = scmp.ge.s32.totalorder %s26, 1
    %s28 = scalar_select %p27, 0, %s26
    %s29 = sadd.s32 1, %s20
    %s30 = scalar_select %p27, %s29, %s20
    %p31 = scmp.ge.s32.totalorder %s30, 2
    %s32 = scalar_select %p31, 0, %s30
    %s33 = ssub.s32 %s20, %s32
    %p34 = scmp.eq.s32.totalorder %s33, 0
    %s36 = sadd.s32 %s35, 1
    %s37 = scalar_select %p34, %s35, %s36
    %p40 = pneg %p34
    %p41 = scmp.eq.s32.totalorder %s13, 1
    %p42 = por %p40, %p41
    %p43 = scmp.ne.s32.totalorder %s35, %s38
    %p44 = scmp.eq.s32.totalorder %s13, 0
    %p45 = por %p43, %p44
    %p46 = scmp.ne.s32.totalorder %s35, %s38
    %p47 = scmp.eq.s32.totalorder %s18, 1
    %p48 = por %p46, %p47
    %p49 = scmp.ne.s32.totalorder %s38, %s39
    %p50 = scmp.eq.s32.totalorder %s18, 0
    %p51 = por %p49, %p50
    %p52 = scmp.ne.s32.totalorder %s38, %s39
    %p53 = scmp.eq.s32.totalorder %s19, 1
    %p54 = por %p52, %p53
    %p56 = scmp.ne.s32.totalorder %s39, %s55
    %p57 = scmp.eq.s32.totalorder %s19, 0
    %p58 = por %p56, %p57
    %s60 = sadd.s32 %s59, 1
    %p63 = scmp.eq.s32.totalorder %s13, 1
    %p64 = scmp.ne.s32.totalorder %s59, %s61
    %p65 = scmp.eq.s32.totalorder %s13, 0
    %p66 = por %p64, %p65
    %p67 = scmp.ne.s32.totalorder %s59, %s61
    %p68 = scmp.eq.s32.totalorder %s18, 1
    %p69 = por %p67, %p68
    %p70 = scmp.ne.s32.totalorder %s61, %s62
    %p71 = scmp.eq.s32.totalorder %s18, 0
    %p72 = por %p70, %p71
    %p73 = scmp.ne.s32.totalorder %s61, %s62
    %p74 = scmp.eq.s32.totalorder %s19, 1
    %p75 = por %p73, %p74
    %p77 = scmp.ne.s32.totalorder %s62, %s76
    %p78 = scmp.eq.s32.totalorder %s19, 0
    %p79 = por %p77, %p78
    %s81 = sadd.s32 %s80, 1
    %p84 = scmp.eq.s32.totalorder %s13, 1
    %p85 = scmp.ne.s32.totalorder %s80, %s82
    %p86 = scmp.eq.s32.totalorder %s13, 0
    %p87 = por %p85, %p86
    %p88 = scmp.ne.s32.totalorder %s80, %s82
    %p89 = scmp.eq.s32.totalorder %s18, 1
    %p90 = por %p88, %p89
    %p91 = scmp.ne.s32.totalorder %s82, %s83
    %p92 = scmp.eq.s32.totalorder %s18, 0
    %p93 = por %p91, %p92
    %p94 = scmp.ne.s32.totalorder %s82, %s83
    %p95 = scmp.eq.s32.totalorder %s19, 1
    %p96 = por %p94, %p95
    %p98 = scmp.ne.s32.totalorder %s83, %s97
    %p99 = scmp.eq.s32.totalorder %s19, 0
    %p100 = por %p98, %p99
    %s102 = sadd.s32 %s101, 1
    %p105 = scmp.eq.s32.totalorder %s13, 1
    %p106 = scmp.ne.s32.totalorder %s101, %s103
    %p107 = scmp.eq.s32.totalorder %s13, 0
    %p108 = por %p106, %p107
    %p109 = scmp.ne.s32.totalorder %s101, %s103
    %p110 = scmp.eq.s32.totalorder %s18, 1
    %p111 = por %p109, %p110
    %p112 = scmp.ne.s32.totalorder %s103, %s104
    %p113 = scmp.eq.s32.totalorder %s18, 0
    %p114 = por %p112, %p113
    %p115 = scmp.ne.s32.totalorder %s103, %s104
    %p116 = scmp.eq.s32.totalorder %s19, 1
    %p117 = por %p115, %p116
    %p119 = scmp.ne.s32.totalorder %s104, %s118
    %p120 = scmp.eq.s32.totalorder %s19, 0
    %p121 = por %p119, %p120
    %s123 = sadd.s32 %s122, 1
    %p126 = scmp.eq.s32.totalorder %s13, 1
    %p127 = scmp.ne.s32.totalorder %s122, %s124
    %p128 = scmp.eq.s32.totalorder %s13, 0
    %p129 = por %p127, %p128
    %p130 = scmp.ne.s32.totalorder %s122, %s124
    %p131 = scmp.eq.s32.totalorder %s18, 1
    %p132 = por %p130, %p131
    %p133 = scmp.ne.s32.totalorder %s124, %s125
    %p134 = scmp.eq.s32.totalorder %s18, 0
    %p135 = por %p133, %p134
    %p136 = scmp.ne.s32.totalorder %s124, %s125
    %p137 = scmp.eq.s32.totalorder %s19, 1
    %p138 = por %p136, %p137
    %p140 = scmp.ne.s32.totalorder %s125, %s139
    %p141 = scmp.eq.s32.totalorder %s19, 0
    %p142 = por %p140, %p141
    %s144 = sadd.s32 %s143, 1
    %p147 = scmp.eq.s32.totalorder %s13, 1
    %p148 = scmp.ne.s32.totalorder %s143, %s145
    %p149 = scmp.eq.s32.totalorder %s13, 0
    %p150 = por %p148, %p149
    %p151 = scmp.ne.s32.totalorder %s143, %s145
    %p152 = scmp.eq.s32.totalorder %s18, 1
    %p153 = por %p151, %p152
    %p154 = scmp.ne.s32.totalorder %s145, %s146
    %p155 = scmp.eq.s32.totalorder %s18, 0
    %p156 = por %p154, %p155
    %p157 = scmp.ne.s32.totalorder %s145, %s146
    %p158 = scmp.eq.s32.totalorder %s19, 1
    %p159 = por %p157, %p158
    %p161 = scmp.ne.s32.totalorder %s146, %s160
    %p162 = scmp.eq.s32.totalorder %s19, 0
    %p163 = por %p161, %p162
    %s165 = sadd.s32 %s164, 1
    %p168 = scmp.eq.s32.totalorder %s13, 1
    %p169 = scmp.ne.s32.totalorder %s164, %s166
    %p170 = scmp.eq.s32.totalorder %s13, 0
    %p171 = por %p169, %p170
    %p172 = scmp.ne.s32.totalorder %s164, %s166
    %p173 = scmp.eq.s32.totalorder %s18, 1
    %p174 = por %p172, %p173
    %p175 = scmp.ne.s32.totalorder %s166, %s167
    %p176 = scmp.eq.s32.totalorder %s18, 0
    %p177 = por %p175, %p176
    %p178 = scmp.ne.s32.totalorder %s166, %s167
    %p179 = scmp.eq.s32.totalorder %s19, 1
    %p180 = por %p178, %p179
    %p182 = scmp.ne.s32.totalorder %s167, %s181
    %p183 = scmp.eq.s32.totalorder %s19, 0
    %p184 = por %p182, %p183
    %s185 = ssub.s32 %s20, %s32
    %s186 = ssub.s32 %s21, %s28
    %s187 = sor.u32 %s185, %s186
    %p188 = scmp.eq.s32.totalorder %s187, 0
    %s190 = sadd.s32 %s189, 1
    %s191 = scalar_select %p188, %s189, %s190
    %p194 = pneg %p188
    %p195 = scmp.eq.s32.totalorder %s13, 1
    %p196 = por %p194, %p195
    %p197 = scmp.ne.s32.totalorder %s189, %s192
    %p198 = scmp.eq.s32.totalorder %s13, 0
    %p199 = por %p197, %p198
    %p200 = scmp.ne.s32.totalorder %s189, %s192
    %p201 = scmp.eq.s32.totalorder %s18, 1
    %p202 = por %p200, %p201
    %p203 = scmp.ne.s32.totalorder %s192, %s193
    %p204 = scmp.eq.s32.totalorder %s18, 0
    %p205 = por %p203, %p204
    %p206 = scmp.ne.s32.totalorder %s192, %s193
    %p207 = scmp.eq.s32.totalorder %s19, 1
    %p208 = por %p206, %p207
    %p210 = scmp.ne.s32.totalorder %s193, %s209
    %p211 = scmp.eq.s32.totalorder %s19, 0
    %p212 = por %p210, %p211
    %p213 = scmp.le.s32.totalorder 1, %s13
    %p214 = scmp.lt.s32.totalorder %s13, 3
    %p215 = pnand %p213, %p214
    %p216 = pneg %p215
    // Predicated region
    $region9: #{tpu_custom_call.1} parent=5 // pred_check
      _
    $region10: #{tpu_custom_call.1} parent=5 // pred_check_branch
      %218 = sbr.rel (%p215) target = $region12
    $region11: #{tpu_custom_call.1} parent=5 // pred_region
      %s219 = ssub.s32 %s13, 1
      // Predicated region
      $region13: #{tpu_custom_call.1} parent=11 // pred_check
        %p220 = pneg %p72
      $region14: #{tpu_custom_call.1} parent=11 // pred_check_branch
        %222 = sbr.rel (%p220) target = $region16
      $region15: #{tpu_custom_call.1} parent=11 // pred_region
        _
      $region16: #{tpu_custom_call.1} parent=11 // pred_fallthru
        _
      // Predicated region
      $region17: #{tpu_custom_call.1} parent=11 // pred_check
        %p223 = pneg %p93
      $region18: #{tpu_custom_call.1} parent=11 // pred_check_branch
        %225 = sbr.rel (%p223) target = $region20
      $region19: #{tpu_custom_call.1} parent=11 // pred_region
        _
      $region20: #{tpu_custom_call.1} parent=11 // pred_fallthru
        _
      // Predicated region
      $region21: #{tpu_custom_call.1} parent=11 // pred_check
        %p226 = pneg %p114
      $region22: #{tpu_custom_call.1} parent=11 // pred_check_branch
        %228 = sbr.rel (%p226) target = $region24
      $region23: #{tpu_custom_call.1} parent=11 // pred_region
        _
      $region24: #{tpu_custom_call.1} parent=11 // pred_fallthru
        _
      // Predicated region
      $region25: #{tpu_custom_call.1} parent=11 // pred_check
        %p229 = pneg %p135
      $region26: #{tpu_custom_call.1} parent=11 // pred_check_branch
        %231 = sbr.rel (%p229) target = $region28
      $region27: #{tpu_custom_call.1} parent=11 // pred_region
        _
      $region28: #{tpu_custom_call.1} parent=11 // pred_fallthru
        _
      // Predicated region
      $region29: #{tpu_custom_call.1} parent=11 // pred_check
        %p232 = pneg %p156
      $region30: #{tpu_custom_call.1} parent=11 // pred_check_branch
        %234 = sbr.rel (%p232) target = $region32
      $region31: #{tpu_custom_call.1} parent=11 // pred_region
        _
      $region32: #{tpu_custom_call.1} parent=11 // pred_fallthru
        _
      // Predicated region
      $region33: #{tpu_custom_call.1} parent=11 // pred_check
        %p235 = pneg %p177
      $region34: #{tpu_custom_call.1} parent=11 // pred_check_branch
        %237 = sbr.rel (%p235) target = $region36
      $region35: #{tpu_custom_call.1} parent=11 // pred_region
        _
      $region36: #{tpu_custom_call.1} parent=11 // pred_fallthru
        _
    $region12: #{tpu_custom_call.1} parent=5 // pred_fallthru
      _
    %p238 = scmp.lt.s32.totalorder %s13, 2
    // Predicated region
    $region37: #{tpu_custom_call.1} parent=5 // pred_check
      %p239 = pneg %p238
    $region38: #{tpu_custom_call.1} parent=5 // pred_check_branch
      %241 = sbr.rel (%p239) target = $region40
    $region39: #{tpu_custom_call.1} parent=5 // pred_region
      // Predicated region
      $region41: #{tpu_custom_call.1} parent=39 // pred_check
        %p242 = pneg %p45
      $region42: #{tpu_custom_call.1} parent=39 // pred_check_branch
        %244 = sbr.rel (%p242) target = $region44
      $region43: #{tpu_custom_call.1} parent=39 // pred_region
        %p245 = scmp.lt.s32.totalorder %s20, 1
        %s246 = scalar_select %p245, %s20, 1
        %s247 = smul.addr %s246, 8
        %s248 = smul.addr %s247, 8
        %s249 = scalar_lea.vmem %s0, %s248
      $region44: #{tpu_custom_call.1} parent=39 // pred_fallthru
        _
    $region40: #{tpu_custom_call.1} parent=5 // pred_fallthru
      _
    %p250 = scmp.le.s32.totalorder 1, %s13
    %p251 = scmp.lt.s32.totalorder %s13, 3
    %p252 = pnand %p250, %p251
    %p253 = pneg %p252
    // Predicated region
    $region45: #{tpu_custom_call.1} parent=5 // pred_check
      _
    $region46: #{tpu_custom_call.1} parent=5 // pred_check_branch
      %255 = sbr.rel (%p252) target = $region48
    $region47: #{tpu_custom_call.1} parent=5 // pred_region
      %s256 = ssub.s32 %s13, 1
      %p257 = scmp.lt.s32.totalorder %s22, 1
      %s258 = scalar_select %p257, %s22, 1
      %s259 = smul.addr %s258, 8
      %s260 = smul.addr %s259, 8
      %s261 = scalar_lea.vmem %s0, %s260
      %p262 = pneg %p51
      %p263 = pneg %p48
      %p264 = pneg %p72
      %p265 = pneg %p69
      %p266 = pneg %p93
      %p267 = pneg %p90
      %p268 = pneg %p114
      %p269 = pneg %p111
      %p270 = pneg %p135
      %p271 = pneg %p132
      %p272 = pneg %p156
      %p273 = pneg %p153
      %p274 = pneg %p177
      %p275 = pneg %p174
      %p276 = pneg %p205
      %p277 = pneg %p202
      %s278 = smul.u32 8, %s23
      %p279 = scmp.lt.s32.totalorder %s22, 1
      %s280 = scalar_select %p279, %s22, 1
      %p281 = scmp.lt.s32.totalorder %s278, 7
      %s282 = scalar_select %p281, %s278, 7
      %s283 = smul.addr %s280, 8
      %s284 = sadd.s32 %s282, %s283
      %s285 = smul.addr %s284, 8
      %s286 = scalar_lea.vmem %s7, %s285
      %p287 = scmp.lt.s32.totalorder %s22, 1
      %s288 = scalar_select %p287, %s22, 1
      %s289 = smul.addr %s288, 8
      %s290 = smul.addr %s289, 8
      %s291 = scalar_lea.vmem %s0, %s290
      %s292 = smul.u32 8, %s23
      %p293 = scmp.lt.s32.totalorder %s22, 1
      %s294 = scalar_select %p293, %s22, 1
      %p295 = scmp.lt.s32.totalorder %s292, 7
      %s296 = scalar_select %p295, %s292, 7
      %s297 = smul.addr %s294, 8
      %s298 = sadd.s32 %s296, %s297
      %s299 = smul.addr %s298, 8
      %s300 = scalar_lea.vmem %s7, %s299
      %s301 = smul.u32 8, %s23
      %v302 = vld [vmem:[%s1] sm:$0xff]
      %v303 = vld [vmem:[%s1 + $0x8] sm:$0xff]
      %v304 = vld [vmem:[%s2] sm:$0x1]
      %s305 = smul.u32 %s23, 64
      %vm306 = vcmask 261120
      %307 = vst.msk [vmem:[#allocation2] sm:$0xff] %vm306, 0.0
      %s308 = scalar_lea.vmem %s291, %s305
      %v309 = vld [vmem:[%s308] sm:$0xff]
      %v310 = vld [vmem:[%s308 + $0x8] sm:$0xff]
      %v311 = vld [vmem:[%s308 + $0x10] sm:$0xff]
      %v312 = vld [vmem:[%s308 + $0x18] sm:$0xff]
      %v313 = vld [vmem:[%s308 + $0x20] sm:$0xff]
      %v314 = vld [vmem:[%s308 + $0x28] sm:$0xff]
      %v315 = vld [vmem:[%s308 + $0x30] sm:$0xff]
      %v316 = vld [vmem:[%s308 + $0x38] sm:$0xff]
      %v318 = vlaneseq
      %v319 = vshrl.u32 %v318, 7
      %v320 = vsub.s32 0, %v319
      %v321 = vrot.slane %v304, %v320
      %vm323 = vcmask 130048
      %v325 = vsel %vm323, %v309, 0
      %v328 = vsel %vm323, %v310, 0
      %v331 = vsel %vm323, %v311, 0
      %v334 = vsel %vm323, %v312, 0
      %v337 = vsel %vm323, %v313, 0
      %v340 = vsel %vm323, %v314, 0
      %v343 = vsel %vm323, %v315, 0
      %v346 = vsel %vm323, %v316, 0
      %348 = vmatprep.subr.mxu0 0.0
      %349 = vmatpush1.msra.mxu0 %v302
      %350 = vmatprep.subr.mxu0 0.0
      %351 = vmatpush1.msra.mxu0 %v303
      %352 = vmatprep.subr.mxu0 0.0
      %353 = vmatpush1.msra.mxu0 0.0
      %354 = vmatprep.subr.mxu0 0.0
      %355 = vmatpush1.msra.mxu0 0.0
      %356 = vmatprep.subr.mxu0 0.0
      %357 = vmatpush1.msra.mxu0 0.0
      %358 = vmatprep.subr.mxu0 0.0
      %359 = vmatpush1.msra.mxu0 0.0
      %360 = vmatprep.subr.mxu0 0.0
      %361 = vmatpush1.msra.mxu0 0.0
      %362 = vmatprep.subr.mxu0 0.0
      %363 = vmatpush1.msra.mxu0 0.0
      %364 = vmatprep.subr.mxu0 0.0
      %365 = vmatpush1.msra.mxu0 0.0
      %366 = vmatprep.subr.mxu0 0.0
      %367 = vmatpush1.msra.mxu0 0.0
      %368 = vmatprep.subr.mxu0 0.0
      %369 = vmatpush1.msra.mxu0 0.0
      %370 = vmatprep.subr.mxu0 0.0
      %371 = vmatpush1.msra.mxu0 0.0
      %372 = vmatprep.subr.mxu0 0.0
      %373 = vmatpush1.msra.mxu0 0.0
      %374 = vmatprep.subr.mxu0 0.0
      %375 = vmatpush1.msra.mxu0 0.0
      %376 = vmatprep.subr.mxu0 0.0
      %377 = vmatpush1.msra.mxu0 0.0
      %378 = vmatprep.subr.mxu0 0.0
      %379 = vmatpush1.msra.mxu0 0.0
      %380 = vmatprep.subr.mxu0 0.0
      %381 = vmatpush1.msra.mxu0 0.0
      %382 = vmatprep.subr.mxu0 0.0
      %383 = vmatpush1.msra.mxu0 0.0
      %384 = vmatprep.subr.mxu0 0.0
      %385 = vmatpush1.msra.mxu0 0.0
      %386 = vmatprep.subr.mxu0 0.0
      %387 = vmatpush1.msra.mxu0 0.0
      %388 = vmatprep.subr.mxu0 0.0
      %389 = vmatpush1.msra.mxu0 0.0
      %390 = vmatprep.subr.mxu0 0.0
      %391 = vmatpush1.msra.mxu0 0.0
      %392 = vmatprep.subr.mxu0 0.0
      %393 = vmatpush1.msra.mxu0 0.0
      %394 = vmatprep.subr.mxu0 0.0
      %395 = vmatpush1.msra.mxu0 0.0
      %396 = vmatprep.subr.mxu0 0.0
      %397 = vmatpush1.msra.mxu0 0.0
      %398 = vmatprep.subr.mxu0 0.0
      %399 = vmatpush1.msra.mxu0 0.0
      %400 = vmatprep.subr.mxu0 0.0
      %401 = vmatpush1.msra.mxu0 0.0
      %402 = vmatprep.subr.mxu0 0.0
      %403 = vmatpush1.msra.mxu0 0.0
      %404 = vmatprep.subr.mxu0 0.0
      %405 = vmatpush1.msra.mxu0 0.0
      %406 = vmatprep.subr.mxu0 0.0
      %407 = vmatpush1.msra.mxu0 0.0
      %408 = vmatprep.subr.mxu0 0.0
      %409 = vmatpush1.msra.mxu0 0.0
      %410 = vmatprep.subr.mxu0 0.0
      %411 = vmatpush1.msra.mxu0 0.0
      %412 = vmatprep.mubr.f32.mxu0 0.0
      %413 = vmatmul.mubr.f32.gmra.mrb[0].mxu0 %v325
      %v414 = vpop.f32.mrb[0].mxu0
      %v415 = vadd.f32 %v321, %v414
      %v416 = vpop.f32.mrb[0].mxu0
      %417 = vmatprep.mubr.f32.mxu0 0.0
      %418 = vmatmul.mubr.f32.gmra.mrb[0].mxu0 %v328
      %v419 = vpop.f32.mrb[0].mxu0
      %v420 = vadd.f32 %v321, %v419
      %v421 = vpop.f32.mrb[0].mxu0
      %422 = vmatprep.mubr.f32.mxu0 0.0
      %423 = vmatmul.mubr.f32.gmra.mrb[0].mxu0 %v331
      %v424 = vpop.f32.mrb[0].mxu0
      %v425 = vadd.f32 %v321, %v424
      %v426 = vpop.f32.mrb[0].mxu0
      %427 = vmatprep.mubr.f32.mxu0 0.0
      %428 = vmatmul.mubr.f32.gmra.mrb[0].mxu0 %v334
      %v429 = vpop.f32.mrb[0].mxu0
      %v430 = vadd.f32 %v321, %v429
      %v431 = vpop.f32.mrb[0].mxu0
      %432 = vmatprep.mubr.f32.mxu0 0.0
      %433 = vmatmul.mubr.f32.gmra.mrb[0].mxu0 %v337
      %v434 = vpop.f32.mrb[0].mxu0
      %v435 = vadd.f32 %v321, %v434
      %v436 = vpop.f32.mrb[0].mxu0
      %437 = vmatprep.mubr.f32.mxu0 0.0
      %438 = vmatmul.mubr.f32.gmra.mrb[0].mxu0 %v340
      %v439 = vpop.f32.mrb[0].mxu0
      %v440 = vadd.f32 %v321, %v439
      %v441 = vpop.f32.mrb[0].mxu0
      %442 = vmatprep.mubr.f32.mxu0 0.0
      %443 = vmatmul.mubr.f32.gmra.mrb[0].mxu0 %v343
      %v444 = vpop.f32.mrb[0].mxu0
      %v445 = vadd.f32 %v321, %v444
      %v446 = vpop.f32.mrb[0].mxu0
      %447 = vmatprep.mubr.f32.mxu0 0.0
      %448 = vmatmul.mubr.f32.gmra.mrb[0].mxu0 %v346
      %v449 = vpop.f32.mrb[0].mxu0
      %v450 = vadd.f32 %v321, %v449
      %v451 = vpop.f32.mrb[0].mxu0
      %452 = vdwg.mxu0
      %453 = vst.msk [vmem:[#allocation2 + $0x8] sm:$0xff] %vm306, %v415
      %454 = vst.msk [vmem:[#allocation2 + $0x10] sm:$0xff] %vm306, %v420
      %455 = vst.msk [vmem:[#allocation2 + $0x18] sm:$0xff] %vm306, %v425
      %456 = vst.msk [vmem:[#allocation2 + $0x20] sm:$0xff] %vm306, %v430
      %457 = vst.msk [vmem:[#allocation2 + $0x28] sm:$0xff] %vm306, %v435
      %458 = vst.msk [vmem:[#allocation2 + $0x30] sm:$0xff] %vm306, %v440
      %459 = vst.msk [vmem:[#allocation2 + $0x38] sm:$0xff] %vm306, %v445
      %460 = vst.msk [vmem:[#allocation2 + $0x40] sm:$0xff] %vm306, %v450
      %461 = vst.msk [vmem:[#allocation2 + $0x48] sm:$0xff] %vm306, 0.0
      %v462 = vld [vmem:[%s3] sm:$0xff]
      %v463 = vld [vmem:[%s3 + $0x8] sm:$0x1]
      %v464 = vld [vmem:[%s4] sm:$0x1]
      %v465 = vld [vmem:[#allocation2] sm:$0xff]
      %v466 = vld [vmem:[#allocation2 + $0x8] sm:$0xff]
      %v467 = vld [vmem:[#allocation2 + $0x10] sm:$0xff]
      %v468 = vld [vmem:[#allocation2 + $0x18] sm:$0xff]
      %v469 = vld [vmem:[#allocation2 + $0x20] sm:$0xff]
      %v470 = vld [vmem:[#allocation2 + $0x28] sm:$0xff]
      %v471 = vld [vmem:[#allocation2 + $0x30] sm:$0xff]
      %v472 = vld [vmem:[#allocation2 + $0x38] sm:$0xff]
      %v473 = vld [vmem:[#allocation2 + $0x40] sm:$0xff]
      %v474 = vld [vmem:[#allocation2 + $0x48] sm:$0xff]
      %v475 = vlaneseq
      %v476 = vshrl.u32 %v475, 7
      %v477 = vadd.s32 %v476, 8
      %v478 = vadd.s32 %v476, 16
      %v479 = vadd.s32 %v476, 24
      %v480 = vadd.s32 %v476, 32
      %v481 = vadd.s32 %v476, 40
      %v482 = vadd.s32 %v476, 48
      %v483 = vadd.s32 %v476, 56
      %v484 = vadd.s32 %v476, 64
      %v485 = vadd.s32 %v476, 72
      %vm486 = vcmp.lt.s32.totalorder %v476, 0
      %v487 = vsub.s32 0, %v476
      %v488 = vsel %vm486, %v487, %v476
      %v489 = vshrl.u32 %v488, 3
      %v490 = vand.u32 %v488, 7
      %v491 = vsub.s32 0, %v490
      %v492 = vsel %vm486, %v491, %v490
      %vm493 = vcmp.lt.s32.totalorder %v477, 0
      %v494 = vsub.s32 0, %v477
      %v495 = vsel %vm493, %v494, %v477
      %v496 = vshrl.u32 %v495, 3
      %v497 = vand.u32 %v495, 7
      %v498 = vsub.s32 0, %v497
      %v499 = vsel %vm493, %v498, %v497
      %vm500 = vcmp.lt.s32.totalorder %v478, 0
      %v501 = vsub.s32 0, %v478
      %v502 = vsel %vm500, %v501, %v478
      %v503 = vshrl.u32 %v502, 3
      %v504 = vand.u32 %v502, 7
      %v505 = vsub.s32 0, %v504
      %v506 = vsel %vm500, %v505, %v504
      %vm507 = vcmp.lt.s32.totalorder %v479, 0
      %v508 = vsub.s32 0, %v479
      %v509 = vsel %vm507, %v508, %v479
      %v510 = vshrl.u32 %v509, 3
      %v511 = vand.u32 %v509, 7
      %v512 = vsub.s32 0, %v511
      %v513 = vsel %vm507, %v512, %v511
      %vm514 = vcmp.lt.s32.totalorder %v480, 0
      %v515 = vsub.s32 0, %v480
      %v516 = vsel %vm514, %v515, %v480
      %v517 = vshrl.u32 %v516, 3
      %v518 = vand.u32 %v516, 7
      %v519 = vsub.s32 0, %v518
      %v520 = vsel %vm514, %v519, %v518
      %vm521 = vcmp.lt.s32.totalorder %v481, 0
      %v522 = vsub.s32 0, %v481
      %v523 = vsel %vm521, %v522, %v481
      %v524 = vshrl.u32 %v523, 3
      %v525 = vand.u32 %v523, 7
      %v526 = vsub.s32 0, %v525
      %v527 = vsel %vm521, %v526, %v525
      %vm528 = vcmp.lt.s32.totalorder %v482, 0
      %v529 = vsub.s32 0, %v482
      %v530 = vsel %vm528, %v529, %v482
      %v531 = vshrl.u32 %v530, 3
      %v532 = vand.u32 %v530, 7
      %v533 = vsub.s32 0, %v532
      %v534 = vsel %vm528, %v533, %v532
      %vm535 = vcmp.lt.s32.totalorder %v483, 0
      %v536 = vsub.s32 0, %v483
      %v537 = vsel %vm535, %v536, %v483
      %v538 = vshrl.u32 %v537, 3
      %v539 = vand.u32 %v537, 7
      %v540 = vsub.s32 0, %v539
      %v541 = vsel %vm535, %v540, %v539
      %vm542 = vcmp.lt.s32.totalorder %v484, 0
      %v543 = vsub.s32 0, %v484
      %v544 = vsel %vm542, %v543, %v484
      %v545 = vshrl.u32 %v544, 3
      %v546 = vand.u32 %v544, 7
      %v547 = vsub.s32 0, %v546
      %v548 = vsel %vm542, %v547, %v546
      %vm549 = vcmp.lt.s32.totalorder %v485, 0
      %v550 = vsub.s32 0, %v485
      %v551 = vsel %vm549, %v550, %v485
      %v552 = vshrl.u32 %v551, 3
      %v553 = vand.u32 %v551, 7
      %v554 = vsub.s32 0, %v553
      %v555 = vsel %vm549, %v554, %v553
      %vm556 = vcmp.ne.s32.totalorder %v492, 0
      %vm557 = vcmp.ne.s32.totalorder %v499, 0
      %vm558 = vcmp.ne.s32.totalorder %v506, 0
      %vm559 = vcmp.ne.s32.totalorder %v513, 0
      %vm560 = vcmp.ne.s32.totalorder %v520, 0
      %vm561 = vcmp.ne.s32.totalorder %v527, 0
      %vm562 = vcmp.ne.s32.totalorder %v534, 0
      %vm563 = vcmp.ne.s32.totalorder %v541, 0
      %vm564 = vcmp.ne.s32.totalorder %v548, 0
      %vm565 = vcmp.ne.s32.totalorder %v555, 0
      %vm566 = vcmp.lt.s32.totalorder %v492, 0
      %vm567 = vcmp.lt.s32.totalorder %v499, 0
      %vm568 = vcmp.lt.s32.totalorder %v506, 0
      %vm569 = vcmp.lt.s32.totalorder %v513, 0
      %vm570 = vcmp.lt.s32.totalorder %v520, 0
      %vm571 = vcmp.lt.s32.totalorder %v527, 0
      %vm572 = vcmp.lt.s32.totalorder %v534, 0
      %vm573 = vcmp.lt.s32.totalorder %v541, 0
      %vm574 = vcmp.lt.s32.totalorder %v548, 0
      %vm575 = vcmp.lt.s32.totalorder %v555, 0
      %vm576 = vmand %vm566, %vm556
      %vm577 = vmand %vm567, %vm557
      %vm578 = vmand %vm568, %vm558
      %vm579 = vmand %vm569, %vm559
      %vm580 = vmand %vm570, %vm560
      %vm581 = vmand %vm571, %vm561
      %vm582 = vmand %vm572, %vm562
      %vm583 = vmand %vm573, %vm563
      %vm584 = vmand %vm574, %vm564
      %vm585 = vmand %vm575, %vm565
      %v586 = vadd.s32 %v492, 8
      %v587 = vadd.s32 %v499, 8
      %v588 = vadd.s32 %v506, 8
      %v589 = vadd.s32 %v513, 8
      %v590 = vadd.s32 %v520, 8
      %v591 = vadd.s32 %v527, 8
      %v592 = vadd.s32 %v534, 8
      %v593 = vadd.s32 %v541, 8
      %v594 = vadd.s32 %v548, 8
      %v595 = vadd.s32 %v555, 8
      %v596 = vsel %vm576, %v586, %v492
      %v597 = vsel %vm577, %v587, %v499
      %v598 = vsel %vm578, %v588, %v506
      %v599 = vsel %vm579, %v589, %v513
      %v600 = vsel %vm580, %v590, %v520
      %v601 = vsel %vm581, %v591, %v527
      %v602 = vsel %vm582, %v592, %v534
      %v603 = vsel %vm583, %v593, %v541
      %v604 = vsel %vm584, %v594, %v548
      %v605 = vsel %vm585, %v595, %v555
      %vm606 = vcmp.gt.s32.totalorder %v596, 0
      %vm607 = vcmp.gt.s32.totalorder %v597, 0
      %vm608 = vcmp.gt.s32.totalorder %v598, 0
      %vm609 = vcmp.gt.s32.totalorder %v599, 0
      %vm610 = vcmp.gt.s32.totalorder %v600, 0
      %vm611 = vcmp.gt.s32.totalorder %v601, 0
      %vm612 = vcmp.gt.s32.totalorder %v602, 0
      %vm613 = vcmp.gt.s32.totalorder %v603, 0
      %vm614 = vcmp.gt.s32.totalorder %v604, 0
      %vm615 = vcmp.gt.s32.totalorder %v605, 0
      %v616 = vsel %vm606, 1, 0
      %v617 = vsel %vm607, 1, 0
      %v618 = vsel %vm608, 1, 0
      %v619 = vsel %vm609, 1, 0
      %v620 = vsel %vm610, 1, 0
      %v621 = vsel %vm611, 1, 0
      %v622 = vsel %vm612, 1, 0
      %v623 = vsel %vm613, 1, 0
      %v624 = vsel %vm614, 1, 0
      %v625 = vsel %vm615, 1, 0
      %v626 = vcvt.s32.f32 %v616
      %v627 = vcvt.s32.f32 %v617
      %v628 = vcvt.s32.f32 %v618
      %v629 = vcvt.s32.f32 %v619
      %v630 = vcvt.s32.f32 %v620
      %v631 = vcvt.s32.f32 %v621
      %v632 = vcvt.s32.f32 %v622
      %v633 = vcvt.s32.f32 %v623
      %v634 = vcvt.s32.f32 %v624
      %v635 = vcvt.s32.f32 %v625
      %vm636 = vcmp.lt.s32.totalorder %v596, 7
      %vm637 = vcmp.lt.s32.totalorder %v597, 7
      %vm638 = vcmp.lt.s32.totalorder %v598, 7
      %vm639 = vcmp.lt.s32.totalorder %v599, 7
      %vm640 = vcmp.lt.s32.totalorder %v600, 7
      %vm641 = vcmp.lt.s32.totalorder %v601, 7
      %vm642 = vcmp.lt.s32.totalorder %v602, 7
      %vm643 = vcmp.lt.s32.totalorder %v603, 7
      %vm644 = vcmp.lt.s32.totalorder %v604, 7
      %vm645 = vcmp.lt.s32.totalorder %v605, 7
      %v646 = vsel %vm636, 1, 0
      %v647 = vsel %vm637, 1, 0
      %v648 = vsel %vm638, 1, 0
      %v649 = vsel %vm639, 1, 0
      %v650 = vsel %vm640, 1, 0
      %v651 = vsel %vm641, 1, 0
      %v652 = vsel %vm642, 1, 0
      %v653 = vsel %vm643, 1, 0
      %v654 = vsel %vm644, 1, 0
      %v655 = vsel %vm645, 1, 0
      %v656 = vcvt.s32.f32 %v646
      %v657 = vcvt.s32.f32 %v647
      %v658 = vcvt.s32.f32 %v648
      %v659 = vcvt.s32.f32 %v649
      %v660 = vcvt.s32.f32 %v650
      %v661 = vcvt.s32.f32 %v651
      %v662 = vcvt.s32.f32 %v652
      %v663 = vcvt.s32.f32 %v653
      %v664 = vcvt.s32.f32 %v654
      %v665 = vcvt.s32.f32 %v655
      %vm676 = vcmask 1040384
      %v677 = vrot.slane %v465, 7
      %v678 = vrot.slane %v466, 7
      %v679 = vsel %vm676, %v677, %v678
      %v680 = vrot.slane %v467, 7
      %v681 = vsel %vm676, %v678, %v680
      %v682 = vrot.slane %v468, 7
      %v683 = vsel %vm676, %v680, %v682
      %v684 = vrot.slane %v469, 7
      %v685 = vsel %vm676, %v682, %v684
      %v686 = vrot.slane %v470, 7
      %v687 = vsel %vm676, %v684, %v686
      %v688 = vrot.slane %v471, 7
      %v689 = vsel %vm676, %v686, %v688
      %v690 = vrot.slane %v472, 7
      %v691 = vsel %vm676, %v688, %v690
      %v692 = vrot.slane %v473, 7
      %v693 = vsel %vm676, %v690, %v692
      %v694 = vrot.slane %v474, 7
      %v695 = vsel %vm676, %v692, %v694
      %v706 = vsel %vm676, 0.0, %v677
      %v707 = vmul.f32 %v706, %v626
      %v708 = vmul.f32 %v679, %v627
      %v709 = vmul.f32 %v681, %v628
      %v710 = vmul.f32 %v683, %v629
      %v711 = vmul.f32 %v685, %v630
      %v712 = vmul.f32 %v687, %v631
      %v713 = vmul.f32 %v689, %v632
      %v714 = vmul.f32 %v691, %v633
      %v715 = vmul.f32 %v693, %v634
      %v716 = vmul.f32 %v695, %v635
      %vm717 = vcmask 1046528
      %v718 = vrot.slane %v465, 1
      %v719 = vrot.slane %v466, 1
      %v720 = vsel %vm717, %v718, %v719
      %v721 = vrot.slane %v467, 1
      %v722 = vsel %vm717, %v719, %v721
      %v723 = vrot.slane %v468, 1
      %v724 = vsel %vm717, %v721, %v723
      %v725 = vrot.slane %v469, 1
      %v726 = vsel %vm717, %v723, %v725
      %v727 = vrot.slane %v470, 1
      %v728 = vsel %vm717, %v725, %v727
      %v729 = vrot.slane %v471, 1
      %v730 = vsel %vm717, %v727, %v729
      %v731 = vrot.slane %v472, 1
      %v732 = vsel %vm717, %v729, %v731
      %v733 = vrot.slane %v473, 1
      %v734 = vsel %vm717, %v731, %v733
      %v735 = vrot.slane %v474, 1
      %v736 = vsel %vm717, %v733, %v735
      %v747 = vsel %vm717, %v735, 0.0
      %v748 = vmul.f32 %v720, %v656
      %v749 = vmul.f32 %v722, %v657
      %v750 = vmul.f32 %v724, %v658
      %v751 = vmul.f32 %v726, %v659
      %v752 = vmul.f32 %v728, %v660
      %v753 = vmul.f32 %v730, %v661
      %v754 = vmul.f32 %v732, %v662
      %v755 = vmul.f32 %v734, %v663
      %v756 = vmul.f32 %v736, %v664
      %v757 = vmul.f32 %v747, %v665
      %v758 = vlaneseq
      %v759 = vshrl.u32 %v758, 7
      %v760 = vsub.s32 0, %v759
      %v761 = vrot.slane %v462, %v760
      %v762 = vmul.f32 %v707, %v761
      %v763 = vmul.f32 %v708, %v761
      %v764 = vmul.f32 %v709, %v761
      %v765 = vmul.f32 %v710, %v761
      %v766 = vmul.f32 %v711, %v761
      %v767 = vmul.f32 %v712, %v761
      %v768 = vmul.f32 %v713, %v761
      %v769 = vmul.f32 %v714, %v761
      %v770 = vadd.f32 %v762, 0.0
      %v771 = vadd.f32 %v763, 0.0
      %v772 = vadd.f32 %v764, 0.0
      %v773 = vadd.f32 %v765, 0.0
      %v774 = vadd.f32 %v766, 0.0
      %v775 = vadd.f32 %v767, 0.0
      %v776 = vadd.f32 %v768, 0.0
      %v777 = vadd.f32 %v769, 0.0
      %v778 = vlaneseq
      %v779 = vshrl.u32 %v778, 7
      %v780 = vsub.s32 1, %v779
      %v781 = vrot.slane %v462, %v780
      %v782 = vmul.f32 %v465, %v781
      %v783 = vmul.f32 %v466, %v781
      %v784 = vmul.f32 %v467, %v781
      %v785 = vmul.f32 %v468, %v781
      %v786 = vmul.f32 %v469, %v781
      %v787 = vmul.f32 %v470, %v781
      %v788 = vmul.f32 %v471, %v781
      %v789 = vmul.f32 %v472, %v781
      %v790 = vadd.f32 %v770, %v782
      %v791 = vadd.f32 %v771, %v783
      %v792 = vadd.f32 %v772, %v784
      %v793 = vadd.f32 %v773, %v785
      %v794 = vadd.f32 %v774, %v786
      %v795 = vadd.f32 %v775, %v787
      %v796 = vadd.f32 %v776, %v788
      %v797 = vadd.f32 %v777, %v789
      %v798 = vlaneseq
      %v799 = vshrl.u32 %v798, 7
      %v800 = vsub.s32 2, %v799
      %v801 = vrot.slane %v462, %v800
      %v802 = vmul.f32 %v748, %v801
      %v803 = vmul.f32 %v749, %v801
      %v804 = vmul.f32 %v750, %v801
      %v805 = vmul.f32 %v751, %v801
      %v806 = vmul.f32 %v752, %v801
      %v807 = vmul.f32 %v753, %v801
      %v808 = vmul.f32 %v754, %v801
      %v809 = vmul.f32 %v755, %v801
      %v810 = vadd.f32 %v790, %v802
      %v811 = vadd.f32 %v791, %v803
      %v812 = vadd.f32 %v792, %v804
      %v813 = vadd.f32 %v793, %v805
      %v814 = vadd.f32 %v794, %v806
      %v815 = vadd.f32 %v795, %v807
      %v816 = vadd.f32 %v796, %v808
      %v817 = vadd.f32 %v797, %v809
      %v818 = vlaneseq
      %v819 = vshrl.u32 %v818, 7
      %v820 = vsub.s32 3, %v819
      %v821 = vrot.slane %v462, %v820
      %v822 = vmul.f32 %v708, %v821
      %v823 = vmul.f32 %v709, %v821
      %v824 = vmul.f32 %v710, %v821
      %v825 = vmul.f32 %v711, %v821
      %v826 = vmul.f32 %v712, %v821
      %v827 = vmul.f32 %v713, %v821
      %v828 = vmul.f32 %v714, %v821
      %v829 = vmul.f32 %v715, %v821
      %v830 = vadd.f32 %v810, %v822
      %v831 = vadd.f32 %v811, %v823
      %v832 = vadd.f32 %v812, %v824
      %v833 = vadd.f32 %v813, %v825
      %v834 = vadd.f32 %v814, %v826
      %v835 = vadd.f32 %v815, %v827
      %v836 = vadd.f32 %v816, %v828
      %v837 = vadd.f32 %v817, %v829
      %v838 = vlaneseq
      %v839 = vshrl.u32 %v838, 7
      %v840 = vsub.s32 4, %v839
      %v841 = vrot.slane %v462, %v840
      %v842 = vmul.f32 %v466, %v841
      %v843 = vmul.f32 %v467, %v841
      %v844 = vmul.f32 %v468, %v841
      %v845 = vmul.f32 %v469, %v841
      %v846 = vmul.f32 %v470, %v841
      %v847 = vmul.f32 %v471, %v841
      %v848 = vmul.f32 %v472, %v841
      %v849 = vmul.f32 %v473, %v841
      %v850 = vadd.f32 %v830, %v842
      %v851 = vadd.f32 %v831, %v843
      %v852 = vadd.f32 %v832, %v844
      %v853 = vadd.f32 %v833, %v845
      %v854 = vadd.f32 %v834, %v846
      %v855 = vadd.f32 %v835, %v847
      %v856 = vadd.f32 %v836, %v848
      %v857 = vadd.f32 %v837, %v849
      %v858 = vlaneseq
      %v859 = vshrl.u32 %v858, 7
      %v860 = vsub.s32 5, %v859
      %v861 = vrot.slane %v462, %v860
      %v862 = vmul.f32 %v749, %v861
      %v863 = vmul.f32 %v750, %v861
      %v864 = vmul.f32 %v751, %v861
      %v865 = vmul.f32 %v752, %v861
      %v866 = vmul.f32 %v753, %v861
      %v867 = vmul.f32 %v754, %v861
      %v868 = vmul.f32 %v755, %v861
      %v869 = vmul.f32 %v756, %v861
      %v870 = vadd.f32 %v850, %v862
      %v871 = vadd.f32 %v851, %v863
      %v872 = vadd.f32 %v852, %v864
      %v873 = vadd.f32 %v853, %v865
      %v874 = vadd.f32 %v854, %v866
      %v875 = vadd.f32 %v855, %v867
      %v876 = vadd.f32 %v856, %v868
      %v877 = vadd.f32 %v857, %v869
      %v878 = vlaneseq
      %v879 = vshrl.u32 %v878, 7
      %v880 = vsub.s32 6, %v879
      %v881 = vrot.slane %v462, %v880
      %v882 = vmul.f32 %v709, %v881
      %v883 = vmul.f32 %v710, %v881
      %v884 = vmul.f32 %v711, %v881
      %v885 = vmul.f32 %v712, %v881
      %v886 = vmul.f32 %v713, %v881
      %v887 = vmul.f32 %v714, %v881
      %v888 = vmul.f32 %v715, %v881
      %v889 = vmul.f32 %v716, %v881
      %v890 = vadd.f32 %v870, %v882
      %v891 = vadd.f32 %v871, %v883
      %v892 = vadd.f32 %v872, %v884
      %v893 = vadd.f32 %v873, %v885
      %v894 = vadd.f32 %v874, %v886
      %v895 = vadd.f32 %v875, %v887
      %v896 = vadd.f32 %v876, %v888
      %v897 = vadd.f32 %v877, %v889
      %v898 = vlaneseq
      %v899 = vshrl.u32 %v898, 7
      %v900 = vsub.s32 7, %v899
      %v901 = vrot.slane %v462, %v900
      %v902 = vmul.f32 %v467, %v901
      %v903 = vmul.f32 %v468, %v901
      %v904 = vmul.f32 %v469, %v901
      %v905 = vmul.f32 %v470, %v901
      %v906 = vmul.f32 %v471, %v901
      %v907 = vmul.f32 %v472, %v901
      %v908 = vmul.f32 %v473, %v901
      %v909 = vmul.f32 %v474, %v901
      %v910 = vadd.f32 %v890, %v902
      %v911 = vadd.f32 %v891, %v903
      %v912 = vadd.f32 %v892, %v904
      %v913 = vadd.f32 %v893, %v905
      %v914 = vadd.f32 %v894, %v906
      %v915 = vadd.f32 %v895, %v907
      %v916 = vadd.f32 %v896, %v908
      %v917 = vadd.f32 %v897, %v909
      %v918 = vlaneseq
      %v919 = vshrl.u32 %v918, 7
      %v920 = vsub.s32 0, %v919
      %v921 = vrot.slane %v463, %v920
      %v922 = vmul.f32 %v750, %v921
      %v923 = vmul.f32 %v751, %v921
      %v924 = vmul.f32 %v752, %v921
      %v925 = vmul.f32 %v753, %v921
      %v926 = vmul.f32 %v754, %v921
      %v927 = vmul.f32 %v755, %v921
      %v928 = vmul.f32 %v756, %v921
      %v929 = vmul.f32 %v757, %v921
      %v930 = vadd.f32 %v910, %v922
      %v931 = vadd.f32 %v911, %v923
      %v932 = vadd.f32 %v912, %v924
      %v933 = vadd.f32 %v913, %v925
      %v934 = vadd.f32 %v914, %v926
      %v935 = vadd.f32 %v915, %v927
      %v936 = vadd.f32 %v916, %v928
      %v937 = vadd.f32 %v917, %v929
      %v939 = vlaneseq
      %v940 = vshrl.u32 %v939, 7
      %v941 = vsub.s32 0, %v940
      %v942 = vrot.slane %v464, %v941
      %v944 = vadd.f32 %v930, %v942
      %v945 = vadd.f32 %v931, %v942
      %v946 = vadd.f32 %v932, %v942
      %v947 = vadd.f32 %v933, %v942
      %v948 = vadd.f32 %v934, %v942
      %v949 = vadd.f32 %v935, %v942
      %v950 = vadd.f32 %v936, %v942
      %v951 = vadd.f32 %v937, %v942
      %v952 = vmul.f32 %v944, 0.70710677
      %v953 = vmul.f32 %v945, 0.70710677
      %v954 = vmul.f32 %v946, 0.70710677
      %v955 = vmul.f32 %v947, 0.70710677
      %v956 = vmul.f32 %v948, 0.70710677
      %v957 = vmul.f32 %v949, 0.70710677
      %v958 = vmul.f32 %v950, 0.70710677
      %v959 = vmul.f32 %v951, 0.70710677
      %v960 = vand.u32 2147483647, %v952
      %v961 = vand.u32 2147483647, %v953
      %v962 = vand.u32 2147483647, %v954
      %v963 = vand.u32 2147483647, %v955
      %v964 = vand.u32 2147483647, %v956
      %v965 = vand.u32 2147483647, %v957
      %v966 = vand.u32 2147483647, %v958
      %v967 = vand.u32 2147483647, %v959
      %v968 = vmul.f32 %v960, 0.3275911
      %v969 = vmul.f32 %v961, 0.3275911
      %v970 = vmul.f32 %v962, 0.3275911
      %v971 = vmul.f32 %v963, 0.3275911
      %v972 = vmul.f32 %v964, 0.3275911
      %v973 = vmul.f32 %v965, 0.3275911
      %v974 = vmul.f32 %v966, 0.3275911
      %v975 = vmul.f32 %v967, 0.3275911
      %v976 = vadd.f32 %v968, 1.0
      %v977 = vadd.f32 %v969, 1.0
      %v978 = vadd.f32 %v970, 1.0
      %v979 = vadd.f32 %v971, 1.0
      %v980 = vadd.f32 %v972, 1.0
      %v981 = vadd.f32 %v973, 1.0
      %v982 = vadd.f32 %v974, 1.0
      %v983 = vadd.f32 %v975, 1.0
      %v984 = vrcp.pop %v976
      %v985 = vmul.f32 1.0, %v984
      %v986 = vrcp.pop %v977
      %v987 = vmul.f32 1.0, %v986
      %v988 = vrcp.pop %v978
      %v989 = vmul.f32 1.0, %v988
      %v990 = vrcp.pop %v979
      %v991 = vmul.f32 1.0, %v990
      %v992 = vrcp.pop %v980
      %v993 = vmul.f32 1.0, %v992
      %v994 = vrcp.pop %v981
      %v995 = vmul.f32 1.0, %v994
      %v996 = vrcp.pop %v982
      %v997 = vmul.f32 1.0, %v996
      %v998 = vrcp.pop %v983
      %v999 = vmul.f32 1.0, %v998
      %v1000 = vmul.f32 %v985, 1.0614054
      %v1001 = vmul.f32 %v987, 1.0614054
      %v1002 = vmul.f32 %v989, 1.0614054
      %v1003 = vmul.f32 %v991, 1.0614054
      %v1004 = vmul.f32 %v993, 1.0614054
      %v1005 = vmul.f32 %v995, 1.0614054
      %v1006 = vmul.f32 %v997, 1.0614054
      %v1007 = vmul.f32 %v999, 1.0614054
      %v1008 = vadd.f32 %v1000, -1.4531521
      %v1009 = vadd.f32 %v1001, -1.4531521
      %v1010 = vadd.f32 %v1002, -1.4531521
      %v1011 = vadd.f32 %v1003, -1.4531521
      %v1012 = vadd.f32 %v1004, -1.4531521
      %v1013 = vadd.f32 %v1005, -1.4531521
      %v1014 = vadd.f32 %v1006, -1.4531521
      %v1015 = vadd.f32 %v1007, -1.4531521
      %v1016 = vmul.f32 %v985, %v1008
      %v1017 = vmul.f32 %v987, %v1009
      %v1018 = vmul.f32 %v989, %v1010
      %v1019 = vmul.f32 %v991, %v1011
      %v1020 = vmul.f32 %v993, %v1012
      %v1021 = vmul.f32 %v995, %v1013
      %v1022 = vmul.f32 %v997, %v1014
      %v1023 = vmul.f32 %v999, %v1015
      %v1024 = vadd.f32 %v1016, 1.4214138
      %v1025 = vadd.f32 %v1017, 1.4214138
      %v1026 = vadd.f32 %v1018, 1.4214138
      %v1027 = vadd.f32 %v1019, 1.4214138
      %v1028 = vadd.f32 %v1020, 1.4214138
      %v1029 = vadd.f32 %v1021, 1.4214138
      %v1030 = vadd.f32 %v1022, 1.4214138
      %v1031 = vadd.f32 %v1023, 1.4214138
      %v1032 = vmul.f32 %v985, %v1024
      %v1033 = vmul.f32 %v987, %v1025
      %v1034 = vmul.f32 %v989, %v1026
      %v1035 = vmul.f32 %v991, %v1027
      %v1036 = vmul.f32 %v993, %v1028
      %v1037 = vmul.f32 %v995, %v1029
      %v1038 = vmul.f32 %v997, %v1030
      %v1039 = vmul.f32 %v999, %v1031
      %v1040 = vadd.f32 %v1032, -0.28449672
      %v1041 = vadd.f32 %v1033, -0.28449672
      %v1042 = vadd.f32 %v1034, -0.28449672
      %v1043 = vadd.f32 %v1035, -0.28449672
      %v1044 = vadd.f32 %v1036, -0.28449672
      %v1045 = vadd.f32 %v1037, -0.28449672
      %v1046 = vadd.f32 %v1038, -0.28449672
      %v1047 = vadd.f32 %v1039, -0.28449672
      %v1048 = vmul.f32 %v985, %v1040
      %v1049 = vmul.f32 %v987, %v1041
      %v1050 = vmul.f32 %v989, %v1042
      %v1051 = vmul.f32 %v991, %v1043
      %v1052 = vmul.f32 %v993, %v1044
      %v1053 = vmul.f32 %v995, %v1045
      %v1054 = vmul.f32 %v997, %v1046
      %v1055 = vmul.f32 %v999, %v1047
      %v1056 = vadd.f32 %v1048, 0.2548296
      %v1057 = vadd.f32 %v1049, 0.2548296
      %v1058 = vadd.f32 %v1050, 0.2548296
      %v1059 = vadd.f32 %v1051, 0.2548296
      %v1060 = vadd.f32 %v1052, 0.2548296
      %v1061 = vadd.f32 %v1053, 0.2548296
      %v1062 = vadd.f32 %v1054, 0.2548296
      %v1063 = vadd.f32 %v1055, 0.2548296
      %v1064 = vmul.f32 %v985, %v1056
      %v1065 = vmul.f32 %v987, %v1057
      %v1066 = vmul.f32 %v989, %v1058
      %v1067 = vmul.f32 %v991, %v1059
      %v1068 = vmul.f32 %v993, %v1060
      %v1069 = vmul.f32 %v995, %v1061
      %v1070 = vmul.f32 %v997, %v1062
      %v1071 = vmul.f32 %v999, %v1063
      %v1072 = vsub.f32 0.0, %v960
      %v1073 = vsub.f32 0.0, %v961
      %v1074 = vsub.f32 0.0, %v962
      %v1075 = vsub.f32 0.0, %v963
      %v1076 = vsub.f32 0.0, %v964
      %v1077 = vsub.f32 0.0, %v965
      %v1078 = vsub.f32 0.0, %v966
      %v1079 = vsub.f32 0.0, %v967
      %v1080 = vmul.f32 %v1072, %v960
      %v1081 = vmul.f32 %v1073, %v961
      %v1082 = vmul.f32 %v1074, %v962
      %v1083 = vmul.f32 %v1075, %v963
      %v1084 = vmul.f32 %v1076, %v964
      %v1085 = vmul.f32 %v1077, %v965
      %v1086 = vmul.f32 %v1078, %v966
      %v1087 = vmul.f32 %v1079, %v967
      %v1088 = vmul.f32 %v1080, 1.442695
      %v1089 = vpow.pop %v1088
      %v1090 = vmul.f32 %v1081, 1.442695
      %v1091 = vpow.pop %v1090
      %v1092 = vmul.f32 %v1082, 1.442695
      %v1093 = vpow.pop %v1092
      %v1094 = vmul.f32 %v1083, 1.442695
      %v1095 = vpow.pop %v1094
      %v1096 = vmul.f32 %v1084, 1.442695
      %v1097 = vpow.pop %v1096
      %v1098 = vmul.f32 %v1085, 1.442695
      %v1099 = vpow.pop %v1098
      %v1100 = vmul.f32 %v1086, 1.442695
      %v1101 = vpow.pop %v1100
      %v1102 = vmul.f32 %v1087, 1.442695
      %v1103 = vpow.pop %v1102
      %v1104 = vmul.f32 %v1064, %v1089
      %v1105 = vmul.f32 %v1065, %v1091
      %v1106 = vmul.f32 %v1066, %v1093
      %v1107 = vmul.f32 %v1067, %v1095
      %v1108 = vmul.f32 %v1068, %v1097
      %v1109 = vmul.f32 %v1069, %v1099
      %v1110 = vmul.f32 %v1070, %v1101
      %v1111 = vmul.f32 %v1071, %v1103
      %v1112 = vsub.f32 1.0, %v1104
      %v1113 = vsub.f32 1.0, %v1105
      %v1114 = vsub.f32 1.0, %v1106
      %v1115 = vsub.f32 1.0, %v1107
      %v1116 = vsub.f32 1.0, %v1108
      %v1117 = vsub.f32 1.0, %v1109
      %v1118 = vsub.f32 1.0, %v1110
      %v1119 = vsub.f32 1.0, %v1111
      %vm1120 = vcmp.lt.f32.partialorder %v952, 0.0
      %vm1121 = vcmp.lt.f32.partialorder %v953, 0.0
      %vm1122 = vcmp.lt.f32.partialorder %v954, 0.0
      %vm1123 = vcmp.lt.f32.partialorder %v955, 0.0
      %vm1124 = vcmp.lt.f32.partialorder %v956, 0.0
      %vm1125 = vcmp.lt.f32.partialorder %v957, 0.0
      %vm1126 = vcmp.lt.f32.partialorder %v958, 0.0
      %vm1127 = vcmp.lt.f32.partialorder %v959, 0.0
      %v1128 = vsub.f32 0.0, %v1112
      %v1129 = vsub.f32 0.0, %v1113
      %v1130 = vsub.f32 0.0, %v1114
      %v1131 = vsub.f32 0.0, %v1115
      %v1132 = vsub.f32 0.0, %v1116
      %v1133 = vsub.f32 0.0, %v1117
      %v1134 = vsub.f32 0.0, %v1118
      %v1135 = vsub.f32 0.0, %v1119
      %v1136 = vsel %vm1120, %v1128, %v1112
      %v1137 = vsel %vm1121, %v1129, %v1113
      %v1138 = vsel %vm1122, %v1130, %v1114
      %v1139 = vsel %vm1123, %v1131, %v1115
      %v1140 = vsel %vm1124, %v1132, %v1116
      %v1141 = vsel %vm1125, %v1133, %v1117
      %v1142 = vsel %vm1126, %v1134, %v1118
      %v1143 = vsel %vm1127, %v1135, %v1119
      %v1144 = vmul.f32 %v944, 0.5
      %v1145 = vmul.f32 %v945, 0.5
      %v1146 = vmul.f32 %v946, 0.5
      %v1147 = vmul.f32 %v947, 0.5
      %v1148 = vmul.f32 %v948, 0.5
      %v1149 = vmul.f32 %v949, 0.5
      %v1150 = vmul.f32 %v950, 0.5
      %v1151 = vmul.f32 %v951, 0.5
      %v1152 = vadd.f32 %v1136, 1.0
      %v1153 = vadd.f32 %v1137, 1.0
      %v1154 = vadd.f32 %v1138, 1.0
      %v1155 = vadd.f32 %v1139, 1.0
      %v1156 = vadd.f32 %v1140, 1.0
      %v1157 = vadd.f32 %v1141, 1.0
      %v1158 = vadd.f32 %v1142, 1.0
      %v1159 = vadd.f32 %v1143, 1.0
      %v1160 = vmul.f32 %v1144, %v1152
      %v1161 = vmul.f32 %v1145, %v1153
      %v1162 = vmul.f32 %v1146, %v1154
      %v1163 = vmul.f32 %v1147, %v1155
      %v1164 = vmul.f32 %v1148, %v1156
      %v1165 = vmul.f32 %v1149, %v1157
      %v1166 = vmul.f32 %v1150, %v1158
      %v1167 = vmul.f32 %v1151, %v1159
      %v1168 = vld [vmem:[%s5] sm:$0xff]
      %v1169 = vld [vmem:[%s5 + $0x8] sm:$0xff]
      %v1170 = vld [vmem:[%s5 + $0x10] sm:$0xff]
      %v1171 = vld [vmem:[%s5 + $0x18] sm:$0xff]
      %v1172 = vld [vmem:[%s6] sm:$0x1]
      %v1174 = vlaneseq
      %v1175 = vshrl.u32 %v1174, 7
      %v1176 = vsub.s32 0, %v1175
      %v1177 = vrot.slane %v1172, %v1176
      %v1180 = vsel %vm306, %v1160, 0
      %v1183 = vsel %vm306, %v1161, 0
      %v1186 = vsel %vm306, %v1162, 0
      %v1189 = vsel %vm306, %v1163, 0
      %v1192 = vsel %vm306, %v1164, 0
      %v1195 = vsel %vm306, %v1165, 0
      %v1198 = vsel %vm306, %v1166, 0
      %v1201 = vsel %vm306, %v1167, 0
      %1203 = vmatprep.subr.mxu0 0.0
      %1204 = vmatpush1.msra.mxu0 %v1168
      %1205 = vmatprep.subr.mxu0 0.0
      %1206 = vmatpush1.msra.mxu0 %v1169
      %1207 = vmatprep.subr.mxu0 0.0
      %1208 = vmatpush1.msra.mxu0 %v1170
      %1209 = vmatprep.subr.mxu0 0.0
      %1210 = vmatpush1.msra.mxu0 %v1171
      %1211 = vmatprep.subr.mxu0 0.0
      %1212 = vmatpush1.msra.mxu0 0.0
      %1213 = vmatprep.subr.mxu0 0.0
      %1214 = vmatpush1.msra.mxu0 0.0
      %1215 = vmatprep.subr.mxu0 0.0
      %1216 = vmatpush1.msra.mxu0 0.0
      %1217 = vmatprep.subr.mxu0 0.0
      %1218 = vmatpush1.msra.mxu0 0.0
      %1219 = vmatprep.subr.mxu0 0.0
      %1220 = vmatpush1.msra.mxu0 0.0
      %1221 = vmatprep.subr.mxu0 0.0
      %1222 = vmatpush1.msra.mxu0 0.0
      %1223 = vmatprep.subr.mxu0 0.0
      %1224 = vmatpush1.msra.mxu0 0.0
      %1225 = vmatprep.subr.mxu0 0.0
      %1226 = vmatpush1.msra.mxu0 0.0
      %1227 = vmatprep.subr.mxu0 0.0
      %1228 = vmatpush1.msra.mxu0 0.0
      %1229 = vmatprep.subr.mxu0 0.0
      %1230 = vmatpush1.msra.mxu0 0.0
      %1231 = vmatprep.subr.mxu0 0.0
      %1232 = vmatpush1.msra.mxu0 0.0
      %1233 = vmatprep.subr.mxu0 0.0
      %1234 = vmatpush1.msra.mxu0 0.0
      %1235 = vmatprep.subr.mxu0 0.0
      %1236 = vmatpush1.msra.mxu0 0.0
      %1237 = vmatprep.subr.mxu0 0.0
      %1238 = vmatpush1.msra.mxu0 0.0
      %1239 = vmatprep.subr.mxu0 0.0
      %1240 = vmatpush1.msra.mxu0 0.0
      %1241 = vmatprep.subr.mxu0 0.0
      %1242 = vmatpush1.msra.mxu0 0.0
      %1243 = vmatprep.subr.mxu0 0.0
      %1244 = vmatpush1.msra.mxu0 0.0
      %1245 = vmatprep.subr.mxu0 0.0
      %1246 = vmatpush1.msra.mxu0 0.0
      %1247 = vmatprep.subr.mxu0 0.0
      %1248 = vmatpush1.msra.mxu0 0.0
      %1249 = vmatprep.subr.mxu0 0.0
      %1250 = vmatpush1.msra.mxu0 0.0
      %1251 = vmatprep.subr.mxu0 0.0
      %1252 = vmatpush1.msra.mxu0 0.0
      %1253 = vmatprep.subr.mxu0 0.0
      %1254 = vmatpush1.msra.mxu0 0.0
      %1255 = vmatprep.subr.mxu0 0.0
      %1256 = vmatpush1.msra.mxu0 0.0
      %1257 = vmatprep.subr.mxu0 0.0
      %1258 = vmatpush1.msra.mxu0 0.0
      %1259 = vmatprep.subr.mxu0 0.0
      %1260 = vmatpush1.msra.mxu0 0.0
      %1261 = vmatprep.subr.mxu0 0.0
      %1262 = vmatpush1.msra.mxu0 0.0
      %1263 = vmatprep.subr.mxu0 0.0
      %1264 = vmatpush1.msra.mxu0 0.0
      %1265 = vmatprep.subr.mxu0 0.0
      %1266 = vmatpush1.msra.mxu0 0.0
      %1267 = vmatprep.mubr.f32.mxu0 0.0
      %1268 = vmatmul.mubr.f32.gmra.mrb[0].mxu0 %v1180
      %v1269 = vpop.f32.mrb[0].mxu0
      %v1270 = vadd.f32 %v1177, %v1269
      %v1271 = vpop.f32.mrb[0].mxu0
      %1272 = vmatprep.mubr.f32.mxu0 0.0
      %1273 = vmatmul.mubr.f32.gmra.mrb[0].mxu0 %v1183
      %v1274 = vpop.f32.mrb[0].mxu0
      %v1275 = vadd.f32 %v1177, %v1274
      %v1276 = vpop.f32.mrb[0].mxu0
      %1277 = vmatprep.mubr.f32.mxu0 0.0
      %1278 = vmatmul.mubr.f32.gmra.mrb[0].mxu0 %v1186
      %v1279 = vpop.f32.mrb[0].mxu0
      %v1280 = vadd.f32 %v1177, %v1279
      %v1281 = vpop.f32.mrb[0].mxu0
      %1282 = vmatprep.mubr.f32.mxu0 0.0
      %1283 = vmatmul.mubr.f32.gmra.mrb[0].mxu0 %v1189
      %v1284 = vpop.f32.mrb[0].mxu0
      %v1285 = vadd.f32 %v1177, %v1284
      %v1286 = vpop.f32.mrb[0].mxu0
      %1287 = vmatprep.mubr.f32.mxu0 0.0
      %1288 = vmatmul.mubr.f32.gmra.mrb[0].mxu0 %v1192
      %v1289 = vpop.f32.mrb[0].mxu0
      %v1290 = vadd.f32 %v1177, %v1289
      %v1291 = vpop.f32.mrb[0].mxu0
      %1292 = vmatprep.mubr.f32.mxu0 0.0
      %1293 = vmatmul.mubr.f32.gmra.mrb[0].mxu0 %v1195
      %v1294 = vpop.f32.mrb[0].mxu0
      %v1295 = vadd.f32 %v1177, %v1294
      %v1296 = vpop.f32.mrb[0].mxu0
      %1297 = vmatprep.mubr.f32.mxu0 0.0
      %1298 = vmatmul.mubr.f32.gmra.mrb[0].mxu0 %v1198
      %v1299 = vpop.f32.mrb[0].mxu0
      %v1300 = vadd.f32 %v1177, %v1299
      %v1301 = vpop.f32.mrb[0].mxu0
      %1302 = vmatprep.mubr.f32.mxu0 0.0
      %1303 = vmatmul.mubr.f32.gmra.mrb[0].mxu0 %v1201
      %v1304 = vpop.f32.mrb[0].mxu0
      %v1305 = vadd.f32 %v1177, %v1304
      %v1306 = vpop.f32.mrb[0].mxu0
      %1307 = vdwg.mxu0
      %1308 = vst.msk [vmem:[%s300] sm:$0xff] %vm323, %v1270
      %1309 = vst.msk [vmem:[%s300 + $0x8] sm:$0xff] %vm323, %v1275
      %1310 = vst.msk [vmem:[%s300 + $0x10] sm:$0xff] %vm323, %v1280
      %1311 = vst.msk [vmem:[%s300 + $0x18] sm:$0xff] %vm323, %v1285
      %1312 = vst.msk [vmem:[%s300 + $0x20] sm:$0xff] %vm323, %v1290
      %1313 = vst.msk [vmem:[%s300 + $0x28] sm:$0xff] %vm323, %v1295
      %1314 = vst.msk [vmem:[%s300 + $0x30] sm:$0xff] %vm323, %v1300
      %1315 = vst.msk [vmem:[%s300 + $0x38] sm:$0xff] %vm323, %v1305
      %s1316 = smul.u32 8, %s23
      %p1317 = scmp.lt.s32.totalorder %s22, 1
      %s1318 = scalar_select %p1317, %s22, 1
      %p1319 = scmp.lt.s32.totalorder %s1316, 7
      %s1320 = scalar_select %p1319, %s1316, 7
      %s1321 = smul.addr %s1318, 8
      %s1322 = sadd.s32 %s1320, %s1321
      %s1323 = smul.addr %s1322, 8
      %s1324 = scalar_lea.vmem %s7, %s1323
      // Predicated region
      $region49: #{tpu_custom_call.1} parent=47 // pred_check
        %p1325 = pneg %p202
      $region50: #{tpu_custom_call.1} parent=47 // pred_check_branch
        %1327 = sbr.rel (%p1325) target = $region52
      $region51: #{tpu_custom_call.1} parent=47 // pred_region
        %s1328 = smul.u32 8, %s23
      $region52: #{tpu_custom_call.1} parent=47 // pred_fallthru
        _
    $region48: #{tpu_custom_call.1} parent=5 // pred_fallthru
      _
    %p1329 = scmp.le.s32.totalorder 2, %s13
    // Predicated region
    $region53: #{tpu_custom_call.1} parent=5 // pred_check
      %p1330 = pneg %p1329
    $region54: #{tpu_custom_call.1} parent=5 // pred_check_branch
      %1332 = sbr.rel (%p1330) target = $region56
    $region55: #{tpu_custom_call.1} parent=5 // pred_region
      %s1333 = ssub.s32 %s13, 2
      // Predicated region
      $region57: #{tpu_custom_call.1} parent=55 // pred_check
        %p1334 = pneg %p208
      $region58: #{tpu_custom_call.1} parent=55 // pred_check_branch
        %1336 = sbr.rel (%p1334) target = $region60
      $region59: #{tpu_custom_call.1} parent=55 // pred_region
        %s1337 = smul.u32 8, %s25
        %p1338 = scmp.lt.s32.totalorder %s24, 1
        %s1339 = scalar_select %p1338, %s24, 1
        %p1340 = scmp.lt.s32.totalorder %s1337, 7
        %s1341 = scalar_select %p1340, %s1337, 7
        %s1342 = smul.addr %s1339, 8
        %s1343 = sadd.s32 %s1341, %s1342
        %s1344 = smul.addr %s1343, 8
        %s1345 = scalar_lea.vmem %s7, %s1344
      $region60: #{tpu_custom_call.1} parent=55 // pred_fallthru
        _
    $region56: #{tpu_custom_call.1} parent=5 // pred_fallthru
      _
  $region6: #{tpu_custom_call.1} parent=0 // loop_footer
    %s17 = sadd.s32 1, %s13
  $region7: #{tpu_custom_call.1} parent=0 // loop_footer_branch
    %12 = sbr.rel target = $region3
  $region8: #{tpu_custom_call.1} parent=0 // loop_exit
    _

// kernel: tpu_custom_call.1
$region0: #{tpu_custom_call.1}
  #allocation0 [shape = 'u32[]', space=smem, size = 0x4, offset = 0x4, fixed_abs, tag = 'smem constant byte address 0x4 - core index']
  #allocation1 [shape = 'u32[144,128]{1,0:T(1,128)}', space=vmem, size = 0x12000, scoped, tag = 'internal scratch']
  #allocation2 [shape = 'f32[80,32]{1,0:T(8,128)}', space=vmem, size = 0xa000, scoped, tag = 'scratch operand']
  %s0 = inlined_call_operand.vmem [shape: f32[2,64,16], index: 0, kind: input, shape index: {}]
  %s1 = inlined_call_operand.vmem [shape: f32[16,32], index: 1, kind: input, shape index: {}]
  %s2 = inlined_call_operand.vmem [shape: f32[1,32], index: 2, kind: input, shape index: {}]
  %s3 = inlined_call_operand.vmem [shape: f32[9,32], index: 3, kind: input, shape index: {}]
  %s4 = inlined_call_operand.vmem [shape: f32[1,32], index: 4, kind: input, shape index: {}]
  %s5 = inlined_call_operand.vmem [shape: f32[32,16], index: 5, kind: input, shape index: {}]
  %s6 = inlined_call_operand.vmem [shape: f32[1,16], index: 6, kind: input, shape index: {}]
  %s7 = inlined_call_operand.vmem [shape: f32[2,64,16], index: 7, kind: output, shape index: {}]
  %s8 = sld [smem:[#allocation0]]
  $region61: #{tpu_custom_call.1} parent=0
    _
  %s10 = ssub.s32 1, %s8
  %s11 = scalar_select 0, %s10, %s8
  loop: start=0, step=1, limit=4
  $region2: #{tpu_custom_call.1} parent=0 // loop_pre_header
    _
  $region3: #{tpu_custom_call.1} parent=0 // loop_header
    %s13 = sphi 0, %s17
    %p14 = scmp.ge.s32.totalorder %s13, 4
    %s20 = sphi 0, %s32
    %s21 = sphi 0, %s28
    %s22 = sphi 0, %s20
    %s23 = sphi 0, %s21
    %s24 = sphi 0, %s22
    %s25 = sphi 0, %s23
    %s35 = sphi 0, %s37
    %s38 = sphi 0, %s35
    %s39 = sphi 0, %s38
    %s55 = sphi 0, %s39
    %s59 = sphi 0, %s59
    %s61 = sphi 0, %s59
    %s62 = sphi 0, %s61
    %s76 = sphi 0, %s62
    %s80 = sphi 0, %s80
    %s82 = sphi 0, %s80
    %s83 = sphi 0, %s82
    %s97 = sphi 0, %s83
    %s101 = sphi 0, %s101
    %s103 = sphi 0, %s101
    %s104 = sphi 0, %s103
    %s118 = sphi 0, %s104
    %s122 = sphi 0, %s122
    %s124 = sphi 0, %s122
    %s125 = sphi 0, %s124
    %s139 = sphi 0, %s125
    %s143 = sphi 0, %s143
    %s145 = sphi 0, %s143
    %s146 = sphi 0, %s145
    %s160 = sphi 0, %s146
    %s164 = sphi 0, %s164
    %s166 = sphi 0, %s164
    %s167 = sphi 0, %s166
    %s181 = sphi 0, %s167
    %s189 = sphi 0, %s191
    %s192 = sphi 0, %s189
    %s193 = sphi 0, %s192
    %s209 = sphi 0, %s193
  $region4: #{tpu_custom_call.1} parent=0 // loop_header_branch
    %16 = sbr.rel (%p14) target = $region8
  $region5: #{tpu_custom_call.1} parent=0 // loop_body
    %s18 = ssub.s32 %s13, 1
    %s19 = ssub.s32 %s13, 2
    %s26 = sadd.s32 1, %s21
    %p27 = scmp.ge.s32.totalorder %s26, 1
    %s28 = scalar_select %p27, 0, %s26
    %s29 = sadd.s32 1, %s20
    %s30 = scalar_select %p27, %s29, %s20
    %p31 = scmp.ge.s32.totalorder %s30, 2
    %s32 = scalar_select %p31, 0, %s30
    %s33 = ssub.s32 %s20, %s32
    %p34 = scmp.eq.s32.totalorder %s33, 0
    %s36 = sadd.s32 %s35, 1
    %s37 = scalar_select %p34, %s35, %s36
    %p40 = pneg %p34
    %p41 = scmp.eq.s32.totalorder %s13, 1
    %p42 = por %p40, %p41
    %p43 = scmp.ne.s32.totalorder %s35, %s38
    %p44 = scmp.eq.s32.totalorder %s13, 0
    %p45 = por %p43, %p44
    %p46 = scmp.ne.s32.totalorder %s35, %s38
    %p47 = scmp.eq.s32.totalorder %s18, 1
    %p48 = por %p46, %p47
    %p49 = scmp.ne.s32.totalorder %s38, %s39
    %p50 = scmp.eq.s32.totalorder %s18, 0
    %p51 = por %p49, %p50
    %p52 = scmp.ne.s32.totalorder %s38, %s39
    %p53 = scmp.eq.s32.totalorder %s19, 1
    %p54 = por %p52, %p53
    %p56 = scmp.ne.s32.totalorder %s39, %s55
    %p57 = scmp.eq.s32.totalorder %s19, 0
    %p58 = por %p56, %p57
    %s60 = sadd.s32 %s59, 1
    %p63 = scmp.eq.s32.totalorder %s13, 1
    %p64 = scmp.ne.s32.totalorder %s59, %s61
    %p65 = scmp.eq.s32.totalorder %s13, 0
    %p66 = por %p64, %p65
    %p67 = scmp.ne.s32.totalorder %s59, %s61
    %p68 = scmp.eq.s32.totalorder %s18, 1
    %p69 = por %p67, %p68
    %p70 = scmp.ne.s32.totalorder %s61, %s62
    %p71 = scmp.eq.s32.totalorder %s18, 0
    %p72 = por %p70, %p71
    %p73 = scmp.ne.s32.totalorder %s61, %s62
    %p74 = scmp.eq.s32.totalorder %s19, 1
    %p75 = por %p73, %p74
    %p77 = scmp.ne.s32.totalorder %s62, %s76
    %p78 = scmp.eq.s32.totalorder %s19, 0
    %p79 = por %p77, %p78
    %s81 = sadd.s32 %s80, 1
    %p84 = scmp.eq.s32.totalorder %s13, 1
    %p85 = scmp.ne.s32.totalorder %s80, %s82
    %p86 = scmp.eq.s32.totalorder %s13, 0
    %p87 = por %p85, %p86
    %p88 = scmp.ne.s32.totalorder %s80, %s82
    %p89 = scmp.eq.s32.totalorder %s18, 1
    %p90 = por %p88, %p89
    %p91 = scmp.ne.s32.totalorder %s82, %s83
    %p92 = scmp.eq.s32.totalorder %s18, 0
    %p93 = por %p91, %p92
    %p94 = scmp.ne.s32.totalorder %s82, %s83
    %p95 = scmp.eq.s32.totalorder %s19, 1
    %p96 = por %p94, %p95
    %p98 = scmp.ne.s32.totalorder %s83, %s97
    %p99 = scmp.eq.s32.totalorder %s19, 0
    %p100 = por %p98, %p99
    %s102 = sadd.s32 %s101, 1
    %p105 = scmp.eq.s32.totalorder %s13, 1
    %p106 = scmp.ne.s32.totalorder %s101, %s103
    %p107 = scmp.eq.s32.totalorder %s13, 0
    %p108 = por %p106, %p107
    %p109 = scmp.ne.s32.totalorder %s101, %s103
    %p110 = scmp.eq.s32.totalorder %s18, 1
    %p111 = por %p109, %p110
    %p112 = scmp.ne.s32.totalorder %s103, %s104
    %p113 = scmp.eq.s32.totalorder %s18, 0
    %p114 = por %p112, %p113
    %p115 = scmp.ne.s32.totalorder %s103, %s104
    %p116 = scmp.eq.s32.totalorder %s19, 1
    %p117 = por %p115, %p116
    %p119 = scmp.ne.s32.totalorder %s104, %s118
    %p120 = scmp.eq.s32.totalorder %s19, 0
    %p121 = por %p119, %p120
    %s123 = sadd.s32 %s122, 1
    %p126 = scmp.eq.s32.totalorder %s13, 1
    %p127 = scmp.ne.s32.totalorder %s122, %s124
    %p128 = scmp.eq.s32.totalorder %s13, 0
    %p129 = por %p127, %p128
    %p130 = scmp.ne.s32.totalorder %s122, %s124
    %p131 = scmp.eq.s32.totalorder %s18, 1
    %p132 = por %p130, %p131
    %p133 = scmp.ne.s32.totalorder %s124, %s125
    %p134 = scmp.eq.s32.totalorder %s18, 0
    %p135 = por %p133, %p134
    %p136 = scmp.ne.s32.totalorder %s124, %s125
    %p137 = scmp.eq.s32.totalorder %s19, 1
    %p138 = por %p136, %p137
    %p140 = scmp.ne.s32.totalorder %s125, %s139
    %p141 = scmp.eq.s32.totalorder %s19, 0
    %p142 = por %p140, %p141
    %s144 = sadd.s32 %s143, 1
    %p147 = scmp.eq.s32.totalorder %s13, 1
    %p148 = scmp.ne.s32.totalorder %s143, %s145
    %p149 = scmp.eq.s32.totalorder %s13, 0
    %p150 = por %p148, %p149
    %p151 = scmp.ne.s32.totalorder %s143, %s145
    %p152 = scmp.eq.s32.totalorder %s18, 1
    %p153 = por %p151, %p152
    %p154 = scmp.ne.s32.totalorder %s145, %s146
    %p155 = scmp.eq.s32.totalorder %s18, 0
    %p156 = por %p154, %p155
    %p157 = scmp.ne.s32.totalorder %s145, %s146
    %p158 = scmp.eq.s32.totalorder %s19, 1
    %p159 = por %p157, %p158
    %p161 = scmp.ne.s32.totalorder %s146, %s160
    %p162 = scmp.eq.s32.totalorder %s19, 0
    %p163 = por %p161, %p162
    %s165 = sadd.s32 %s164, 1
    %p168 = scmp.eq.s32.totalorder %s13, 1
    %p169 = scmp.ne.s32.totalorder %s164, %s166
    %p170 = scmp.eq.s32.totalorder %s13, 0
    %p171 = por %p169, %p170
    %p172 = scmp.ne.s32.totalorder %s164, %s166
    %p173 = scmp.eq.s32.totalorder %s18, 1
    %p174 = por %p172, %p173
    %p175 = scmp.ne.s32.totalorder %s166, %s167
    %p176 = scmp.eq.s32.totalorder %s18, 0
    %p177 = por %p175, %p176
    %p178 = scmp.ne.s32.totalorder %s166, %s167
    %p179 = scmp.eq.s32.totalorder %s19, 1
    %p180 = por %p178, %p179
    %p182 = scmp.ne.s32.totalorder %s167, %s181
    %p183 = scmp.eq.s32.totalorder %s19, 0
    %p184 = por %p182, %p183
    %s185 = ssub.s32 %s20, %s32
    %s186 = ssub.s32 %s21, %s28
    %s187 = sor.u32 %s185, %s186
    %p188 = scmp.eq.s32.totalorder %s187, 0
    %s190 = sadd.s32 %s189, 1
    %s191 = scalar_select %p188, %s189, %s190
    %p194 = pneg %p188
    %p195 = scmp.eq.s32.totalorder %s13, 1
    %p196 = por %p194, %p195
    %p197 = scmp.ne.s32.totalorder %s189, %s192
    %p198 = scmp.eq.s32.totalorder %s13, 0
    %p199 = por %p197, %p198
    %p200 = scmp.ne.s32.totalorder %s189, %s192
    %p201 = scmp.eq.s32.totalorder %s18, 1
    %p202 = por %p200, %p201
    %p203 = scmp.ne.s32.totalorder %s192, %s193
    %p204 = scmp.eq.s32.totalorder %s18, 0
    %p205 = por %p203, %p204
    %p206 = scmp.ne.s32.totalorder %s192, %s193
    %p207 = scmp.eq.s32.totalorder %s19, 1
    %p208 = por %p206, %p207
    %p210 = scmp.ne.s32.totalorder %s193, %s209
    %p211 = scmp.eq.s32.totalorder %s19, 0
    %p212 = por %p210, %p211
    %p213 = scmp.le.s32.totalorder 1, %s13
    %p214 = scmp.lt.s32.totalorder %s13, 3
    %p215 = pnand %p213, %p214
    %p216 = pneg %p215
    // Predicated region
    $region9: #{tpu_custom_call.1} parent=5 // pred_check
      _
    $region10: #{tpu_custom_call.1} parent=5 // pred_check_branch
      %218 = sbr.rel (%p215) target = $region12
    $region11: #{tpu_custom_call.1} parent=5 // pred_region
      %s219 = ssub.s32 %s13, 1
      // Predicated region
      $region13: #{tpu_custom_call.1} parent=11 // pred_check
        %p220 = pneg %p72
      $region14: #{tpu_custom_call.1} parent=11 // pred_check_branch
        %222 = sbr.rel (%p220) target = $region16
      $region15: #{tpu_custom_call.1} parent=11 // pred_region
        _
      $region16: #{tpu_custom_call.1} parent=11 // pred_fallthru
        _
      // Predicated region
      $region17: #{tpu_custom_call.1} parent=11 // pred_check
        %p223 = pneg %p93
      $region18: #{tpu_custom_call.1} parent=11 // pred_check_branch
        %225 = sbr.rel (%p223) target = $region20
      $region19: #{tpu_custom_call.1} parent=11 // pred_region
        _
      $region20: #{tpu_custom_call.1} parent=11 // pred_fallthru
        _
      // Predicated region
      $region21: #{tpu_custom_call.1} parent=11 // pred_check
        %p226 = pneg %p114
      $region22: #{tpu_custom_call.1} parent=11 // pred_check_branch
        %228 = sbr.rel (%p226) target = $region24
      $region23: #{tpu_custom_call.1} parent=11 // pred_region
        _
      $region24: #{tpu_custom_call.1} parent=11 // pred_fallthru
        _
      // Predicated region
      $region25: #{tpu_custom_call.1} parent=11 // pred_check
        %p229 = pneg %p135
      $region26: #{tpu_custom_call.1} parent=11 // pred_check_branch
        %231 = sbr.rel (%p229) target = $region28
      $region27: #{tpu_custom_call.1} parent=11 // pred_region
        _
      $region28: #{tpu_custom_call.1} parent=11 // pred_fallthru
        _
      // Predicated region
      $region29: #{tpu_custom_call.1} parent=11 // pred_check
        %p232 = pneg %p156
      $region30: #{tpu_custom_call.1} parent=11 // pred_check_branch
        %234 = sbr.rel (%p232) target = $region32
      $region31: #{tpu_custom_call.1} parent=11 // pred_region
        _
      $region32: #{tpu_custom_call.1} parent=11 // pred_fallthru
        _
      // Predicated region
      $region33: #{tpu_custom_call.1} parent=11 // pred_check
        %p235 = pneg %p177
      $region34: #{tpu_custom_call.1} parent=11 // pred_check_branch
        %237 = sbr.rel (%p235) target = $region36
      $region35: #{tpu_custom_call.1} parent=11 // pred_region
        _
      $region36: #{tpu_custom_call.1} parent=11 // pred_fallthru
        _
    $region12: #{tpu_custom_call.1} parent=5 // pred_fallthru
      _
    %p238 = scmp.lt.s32.totalorder %s13, 2
    // Predicated region
    $region37: #{tpu_custom_call.1} parent=5 // pred_check
      %p239 = pneg %p238
    $region38: #{tpu_custom_call.1} parent=5 // pred_check_branch
      %241 = sbr.rel (%p239) target = $region40
    $region39: #{tpu_custom_call.1} parent=5 // pred_region
      // Predicated region
      $region41: #{tpu_custom_call.1} parent=39 // pred_check
        %p242 = pneg %p45
      $region42: #{tpu_custom_call.1} parent=39 // pred_check_branch
        %244 = sbr.rel (%p242) target = $region44
      $region43: #{tpu_custom_call.1} parent=39 // pred_region
        %p245 = scmp.lt.s32.totalorder %s20, 1
        %s246 = scalar_select %p245, %s20, 1
        %s247 = smul.addr %s246, 8
        %s248 = smul.addr %s247, 8
        %s249 = scalar_lea.vmem %s0, %s248
      $region44: #{tpu_custom_call.1} parent=39 // pred_fallthru
        _
    $region40: #{tpu_custom_call.1} parent=5 // pred_fallthru
      _
    %p250 = scmp.le.s32.totalorder 1, %s13
    %p251 = scmp.lt.s32.totalorder %s13, 3
    %p252 = pnand %p250, %p251
    %p253 = pneg %p252
    // Predicated region
    $region45: #{tpu_custom_call.1} parent=5 // pred_check
      _
    $region46: #{tpu_custom_call.1} parent=5 // pred_check_branch
      %255 = sbr.rel (%p252) target = $region48
    $region47: #{tpu_custom_call.1} parent=5 // pred_region
      %s256 = ssub.s32 %s13, 1
      %p257 = scmp.lt.s32.totalorder %s22, 1
      %s258 = scalar_select %p257, %s22, 1
      %s259 = smul.addr %s258, 8
      %s260 = smul.addr %s259, 8
      %s261 = scalar_lea.vmem %s0, %s260
      %p262 = pneg %p51
      %p263 = pneg %p48
      %p264 = pneg %p72
      %p265 = pneg %p69
      %p266 = pneg %p93
      %p267 = pneg %p90
      %p268 = pneg %p114
      %p269 = pneg %p111
      %p270 = pneg %p135
      %p271 = pneg %p132
      %p272 = pneg %p156
      %p273 = pneg %p153
      %p274 = pneg %p177
      %p275 = pneg %p174
      %p276 = pneg %p205
      %p277 = pneg %p202
      %s278 = smul.u32 8, %s23
      %p279 = scmp.lt.s32.totalorder %s22, 1
      %s280 = scalar_select %p279, %s22, 1
      %p281 = scmp.lt.s32.totalorder %s278, 7
      %s282 = scalar_select %p281, %s278, 7
      %s283 = smul.addr %s280, 8
      %s284 = sadd.s32 %s282, %s283
      %s285 = smul.addr %s284, 8
      %s286 = scalar_lea.vmem %s7, %s285
      %p287 = scmp.lt.s32.totalorder %s22, 1
      %s288 = scalar_select %p287, %s22, 1
      %s289 = smul.addr %s288, 8
      %s290 = smul.addr %s289, 8
      %s291 = scalar_lea.vmem %s0, %s290
      %s292 = smul.u32 8, %s23
      %p293 = scmp.lt.s32.totalorder %s22, 1
      %s294 = scalar_select %p293, %s22, 1
      %p295 = scmp.lt.s32.totalorder %s292, 7
      %s296 = scalar_select %p295, %s292, 7
      %s297 = smul.addr %s294, 8
      %s298 = sadd.s32 %s296, %s297
      %s299 = smul.addr %s298, 8
      %s300 = scalar_lea.vmem %s7, %s299
      %s301 = smul.u32 8, %s23
      %v302 = vld [vmem:[%s1] sm:$0xff]
      %v303 = vld [vmem:[%s1 + $0x8] sm:$0xff]
      %v304 = vld [vmem:[%s2] sm:$0x1]
      %s305 = smul.u32 %s23, 64
      %vm306 = vcmask 261120
      %307 = vst.msk [vmem:[#allocation2] sm:$0xff] %vm306, 0.0
      %s308 = scalar_lea.vmem %s291, %s305
      %v309 = vld [vmem:[%s308] sm:$0xff]
      %v310 = vld [vmem:[%s308 + $0x8] sm:$0xff]
      %v311 = vld [vmem:[%s308 + $0x10] sm:$0xff]
      %v312 = vld [vmem:[%s308 + $0x18] sm:$0xff]
      %v313 = vld [vmem:[%s308 + $0x20] sm:$0xff]
      %v314 = vld [vmem:[%s308 + $0x28] sm:$0xff]
      %v315 = vld [vmem:[%s308 + $0x30] sm:$0xff]
      %v316 = vld [vmem:[%s308 + $0x38] sm:$0xff]
      %v318 = vlaneseq
      %v319 = vshrl.u32 %v318, 7
      %v320 = vsub.s32 0, %v319
      %v321 = vrot.slane %v304, %v320
      %vm323 = vcmask 130048
      %v325 = vsel %vm323, %v309, 0
      %v328 = vsel %vm323, %v310, 0
      %v331 = vsel %vm323, %v311, 0
      %v334 = vsel %vm323, %v312, 0
      %v337 = vsel %vm323, %v313, 0
      %v340 = vsel %vm323, %v314, 0
      %v343 = vsel %vm323, %v315, 0
      %v346 = vsel %vm323, %v316, 0
      %348 = vmatprep.subr.mxu0 0.0
      %349 = vmatpush1.msra.mxu0 %v302
      %350 = vmatprep.subr.mxu0 0.0
      %351 = vmatpush1.msra.mxu0 %v303
      %352 = vmatprep.subr.mxu0 0.0
      %353 = vmatpush1.msra.mxu0 0.0
      %354 = vmatprep.subr.mxu0 0.0
      %355 = vmatpush1.msra.mxu0 0.0
      %356 = vmatprep.subr.mxu0 0.0
      %357 = vmatpush1.msra.mxu0 0.0
      %358 = vmatprep.subr.mxu0 0.0
      %359 = vmatpush1.msra.mxu0 0.0
      %360 = vmatprep.subr.mxu0 0.0
      %361 = vmatpush1.msra.mxu0 0.0
      %362 = vmatprep.subr.mxu0 0.0
      %363 = vmatpush1.msra.mxu0 0.0
      %364 = vmatprep.subr.mxu0 0.0
      %365 = vmatpush1.msra.mxu0 0.0
      %366 = vmatprep.subr.mxu0 0.0
      %367 = vmatpush1.msra.mxu0 0.0
      %368 = vmatprep.subr.mxu0 0.0
      %369 = vmatpush1.msra.mxu0 0.0
      %370 = vmatprep.subr.mxu0 0.0
      %371 = vmatpush1.msra.mxu0 0.0
      %372 = vmatprep.subr.mxu0 0.0
      %373 = vmatpush1.msra.mxu0 0.0
      %374 = vmatprep.subr.mxu0 0.0
      %375 = vmatpush1.msra.mxu0 0.0
      %376 = vmatprep.subr.mxu0 0.0
      %377 = vmatpush1.msra.mxu0 0.0
      %378 = vmatprep.subr.mxu0 0.0
      %379 = vmatpush1.msra.mxu0 0.0
      %380 = vmatprep.subr.mxu0 0.0
      %381 = vmatpush1.msra.mxu0 0.0
      %382 = vmatprep.subr.mxu0 0.0
      %383 = vmatpush1.msra.mxu0 0.0
      %384 = vmatprep.subr.mxu0 0.0
      %385 = vmatpush1.msra.mxu0 0.0
      %386 = vmatprep.subr.mxu0 0.0
      %387 = vmatpush1.msra.mxu0 0.0
      %388 = vmatprep.subr.mxu0 0.0
      %389 = vmatpush1.msra.mxu0 0.0
      %390 = vmatprep.subr.mxu0 0.0
      %391 = vmatpush1.msra.mxu0 0.0
      %392 = vmatprep.subr.mxu0 0.0
      %393 = vmatpush1.msra.mxu0 0.0
      %394 = vmatprep.subr.mxu0 0.0
      %395 = vmatpush1.msra.mxu0 0.0
      %396 = vmatprep.subr.mxu0 0.0
      %397 = vmatpush1.msra.mxu0 0.0
      %398 = vmatprep.subr.mxu0 0.0
      %399 = vmatpush1.msra.mxu0 0.0
      %400 = vmatprep.subr.mxu0 0.0
      %401 = vmatpush1.msra.mxu0 0.0
      %402 = vmatprep.subr.mxu0 0.0
      %403 = vmatpush1.msra.mxu0 0.0
      %404 = vmatprep.subr.mxu0 0.0
      %405 = vmatpush1.msra.mxu0 0.0
      %406 = vmatprep.subr.mxu0 0.0
      %407 = vmatpush1.msra.mxu0 0.0
      %408 = vmatprep.subr.mxu0 0.0
      %409 = vmatpush1.msra.mxu0 0.0
      %410 = vmatprep.subr.mxu0 0.0
      %411 = vmatpush1.msra.mxu0 0.0
      %412 = vmatprep.mubr.f32.mxu0 0.0
      %413 = vmatmul.mubr.f32.gmra.mrb[0].mxu0 %v325
      %v414 = vpop.f32.mrb[0].mxu0
      %v415 = vadd.f32 %v321, %v414
      %v416 = vpop.f32.mrb[0].mxu0
      %417 = vmatprep.mubr.f32.mxu0 0.0
      %418 = vmatmul.mubr.f32.gmra.mrb[0].mxu0 %v328
      %v419 = vpop.f32.mrb[0].mxu0
      %v420 = vadd.f32 %v321, %v419
      %v421 = vpop.f32.mrb[0].mxu0
      %422 = vmatprep.mubr.f32.mxu0 0.0
      %423 = vmatmul.mubr.f32.gmra.mrb[0].mxu0 %v331
      %v424 = vpop.f32.mrb[0].mxu0
      %v425 = vadd.f32 %v321, %v424
      %v426 = vpop.f32.mrb[0].mxu0
      %427 = vmatprep.mubr.f32.mxu0 0.0
      %428 = vmatmul.mubr.f32.gmra.mrb[0].mxu0 %v334
      %v429 = vpop.f32.mrb[0].mxu0
      %v430 = vadd.f32 %v321, %v429
      %v431 = vpop.f32.mrb[0].mxu0
      %432 = vmatprep.mubr.f32.mxu0 0.0
      %433 = vmatmul.mubr.f32.gmra.mrb[0].mxu0 %v337
      %v434 = vpop.f32.mrb[0].mxu0
      %v435 = vadd.f32 %v321, %v434
      %v436 = vpop.f32.mrb[0].mxu0
      %437 = vmatprep.mubr.f32.mxu0 0.0
      %438 = vmatmul.mubr.f32.gmra.mrb[0].mxu0 %v340
      %v439 = vpop.f32.mrb[0].mxu0
      %v440 = vadd.f32 %v321, %v439
      %v441 = vpop.f32.mrb[0].mxu0
      %442 = vmatprep.mubr.f32.mxu0 0.0
      %443 = vmatmul.mubr.f32.gmra.mrb[0].mxu0 %v343
      %v444 = vpop.f32.mrb[0].mxu0
      %v445 = vadd.f32 %v321, %v444
      %v446 = vpop.f32.mrb[0].mxu0
      %447 = vmatprep.mubr.f32.mxu0 0.0
      %448 = vmatmul.mubr.f32.gmra.mrb[0].mxu0 %v346
      %v449 = vpop.f32.mrb[0].mxu0
      %v450 = vadd.f32 %v321, %v449
      %v451 = vpop.f32.mrb[0].mxu0
      %452 = vdwg.mxu0
      %453 = vst.msk [vmem:[#allocation2 + $0x8] sm:$0xff] %vm306, %v415
      %454 = vst.msk [vmem:[#allocation2 + $0x10] sm:$0xff] %vm306, %v420
      %455 = vst.msk [vmem:[#allocation2 + $0x18] sm:$0xff] %vm306, %v425
      %456 = vst.msk [vmem:[#allocation2 + $0x20] sm:$0xff] %vm306, %v430
      %457 = vst.msk [vmem:[#allocation2 + $0x28] sm:$0xff] %vm306, %v435
      %458 = vst.msk [vmem:[#allocation2 + $0x30] sm:$0xff] %vm306, %v440
      %459 = vst.msk [vmem:[#allocation2 + $0x38] sm:$0xff] %vm306, %v445
      %460 = vst.msk [vmem:[#allocation2 + $0x40] sm:$0xff] %vm306, %v450
      %461 = vst.msk [vmem:[#allocation2 + $0x48] sm:$0xff] %vm306, 0.0
      %v462 = vld [vmem:[%s3] sm:$0xff]
      %v463 = vld [vmem:[%s3 + $0x8] sm:$0x1]
      %v464 = vld [vmem:[%s4] sm:$0x1]
      %v465 = vld [vmem:[#allocation2] sm:$0xff]
      %v466 = vld [vmem:[#allocation2 + $0x8] sm:$0xff]
      %v467 = vld [vmem:[#allocation2 + $0x10] sm:$0xff]
      %v468 = vld [vmem:[#allocation2 + $0x18] sm:$0xff]
      %v469 = vld [vmem:[#allocation2 + $0x20] sm:$0xff]
      %v470 = vld [vmem:[#allocation2 + $0x28] sm:$0xff]
      %v471 = vld [vmem:[#allocation2 + $0x30] sm:$0xff]
      %v472 = vld [vmem:[#allocation2 + $0x38] sm:$0xff]
      %v473 = vld [vmem:[#allocation2 + $0x40] sm:$0xff]
      %v474 = vld [vmem:[#allocation2 + $0x48] sm:$0xff]
      %v475 = vlaneseq
      %v476 = vshrl.u32 %v475, 7
      %v477 = vadd.s32 %v476, 8
      %v478 = vadd.s32 %v476, 16
      %v479 = vadd.s32 %v476, 24
      %v480 = vadd.s32 %v476, 32
      %v481 = vadd.s32 %v476, 40
      %v482 = vadd.s32 %v476, 48
      %v483 = vadd.s32 %v476, 56
      %v484 = vadd.s32 %v476, 64
      %v485 = vadd.s32 %v476, 72
      %vm486 = vcmp.lt.s32.totalorder %v476, 0
      %v487 = vsub.s32 0, %v476
      %v488 = vsel %vm486, %v487, %v476
      %v489 = vshrl.u32 %v488, 3
      %v490 = vand.u32 %v488, 7
      %v491 = vsub.s32 0, %v490
      %v492 = vsel %vm486, %v491, %v490
      %vm493 = vcmp.lt.s32.totalorder %v477, 0
      %v494 = vsub.s32 0, %v477
      %v495 = vsel %vm493, %v494, %v477
      %v496 = vshrl.u32 %v495, 3
      %v497 = vand.u32 %v495, 7
      %v498 = vsub.s32 0, %v497
      %v499 = vsel %vm493, %v498, %v497
      %vm500 = vcmp.lt.s32.totalorder %v478, 0
      %v501 = vsub.s32 0, %v478
      %v502 = vsel %vm500, %v501, %v478
      %v503 = vshrl.u32 %v502, 3
      %v504 = vand.u32 %v502, 7
      %v505 = vsub.s32 0, %v504
      %v506 = vsel %vm500, %v505, %v504
      %vm507 = vcmp.lt.s32.totalorder %v479, 0
      %v508 = vsub.s32 0, %v479
      %v509 = vsel %vm507, %v508, %v479
      %v510 = vshrl.u32 %v509, 3
      %v511 = vand.u32 %v509, 7
      %v512 = vsub.s32 0, %v511
      %v513 = vsel %vm507, %v512, %v511
      %vm514 = vcmp.lt.s32.totalorder %v480, 0
      %v515 = vsub.s32 0, %v480
      %v516 = vsel %vm514, %v515, %v480
      %v517 = vshrl.u32 %v516, 3
      %v518 = vand.u32 %v516, 7
      %v519 = vsub.s32 0, %v518
      %v520 = vsel %vm514, %v519, %v518
      %vm521 = vcmp.lt.s32.totalorder %v481, 0
      %v522 = vsub.s32 0, %v481
      %v523 = vsel %vm521, %v522, %v481
      %v524 = vshrl.u32 %v523, 3
      %v525 = vand.u32 %v523, 7
      %v526 = vsub.s32 0, %v525
      %v527 = vsel %vm521, %v526, %v525
      %vm528 = vcmp.lt.s32.totalorder %v482, 0
      %v529 = vsub.s32 0, %v482
      %v530 = vsel %vm528, %v529, %v482
      %v531 = vshrl.u32 %v530, 3
      %v532 = vand.u32 %v530, 7
      %v533 = vsub.s32 0, %v532
      %v534 = vsel %vm528, %v533, %v532
      %vm535 = vcmp.lt.s32.totalorder %v483, 0
      %v536 = vsub.s32 0, %v483
      %v537 = vsel %vm535, %v536, %v483
      %v538 = vshrl.u32 %v537, 3
      %v539 = vand.u32 %v537, 7
      %v540 = vsub.s32 0, %v539
      %v541 = vsel %vm535, %v540, %v539
      %vm542 = vcmp.lt.s32.totalorder %v484, 0
      %v543 = vsub.s32 0, %v484
      %v544 = vsel %vm542, %v543, %v484
      %v545 = vshrl.u32 %v544, 3
      %v546 = vand.u32 %v544, 7
      %v547 = vsub.s32 0, %v546
      %v548 = vsel %vm542, %v547, %v546
      %vm549 = vcmp.lt.s32.totalorder %v485, 0
      %v550 = vsub.s32 0, %v485
      %v551 = vsel %vm549, %v550, %v485
      %v552 = vshrl.u32 %v551, 3
      %v553 = vand.u32 %v551, 7
      %v554 = vsub.s32 0, %v553
      %v555 = vsel %vm549, %v554, %v553
      %vm556 = vcmp.ne.s32.totalorder %v492, 0
      %vm557 = vcmp.ne.s32.totalorder %v499, 0
      %vm558 = vcmp.ne.s32.totalorder %v506, 0
      %vm559 = vcmp.ne.s32.totalorder %v513, 0
      %vm560 = vcmp.ne.s32.totalorder %v520, 0
      %vm561 = vcmp.ne.s32.totalorder %v527, 0
      %vm562 = vcmp.ne.s32.totalorder %v534, 0
      %vm563 = vcmp.ne.s32.totalorder %v541, 0
      %vm564 = vcmp.ne.s32.totalorder %v548, 0
      %vm565 = vcmp.ne.s32.totalorder %v555, 0
      %vm566 = vcmp.lt.s32.totalorder %v492, 0
      %vm567 = vcmp.lt.s32.totalorder %v499, 0
      %vm568 = vcmp.lt.s32.totalorder %v506, 0
      %vm569 = vcmp.lt.s32.totalorder %v513, 0
      %vm570 = vcmp.lt.s32.totalorder %v520, 0
      %vm571 = vcmp.lt.s32.totalorder %v527, 0
      %vm572 = vcmp.lt.s32.totalorder %v534, 0
      %vm573 = vcmp.lt.s32.totalorder %v541, 0
      %vm574 = vcmp.lt.s32.totalorder %v548, 0
      %vm575 = vcmp.lt.s32.totalorder %v555, 0
      %vm576 = vmand %vm566, %vm556
      %vm577 = vmand %vm567, %vm557
      %vm578 = vmand %vm568, %vm558
      %vm579 = vmand %vm569, %vm559
      %vm580 = vmand %vm570, %vm560
      %vm581 = vmand %vm571, %vm561
      %vm582 = vmand %vm572, %vm562
      %vm583 = vmand %vm573, %vm563
      %vm584 = vmand %vm574, %vm564
      %vm585 = vmand %vm575, %vm565
      %v586 = vadd.s32 %v492, 8
      %v587 = vadd.s32 %v499, 8
      %v588 = vadd.s32 %v506, 8
      %v589 = vadd.s32 %v513, 8
      %v590 = vadd.s32 %v520, 8
      %v591 = vadd.s32 %v527, 8
      %v592 = vadd.s32 %v534, 8
      %v593 = vadd.s32 %v541, 8
      %v594 = vadd.s32 %v548, 8
      %v595 = vadd.s32 %v555, 8
      %v596 = vsel %vm576, %v586, %v492
      %v597 = vsel %vm577, %v587, %v499
      %v598 = vsel %vm578, %v588, %v506
      %v599 = vsel %vm579, %v589, %v513
      %v600 = vsel %vm580, %v590, %v520
      %v601 = vsel %vm581, %v591, %v527
      %v602 = vsel %vm582, %v592, %v534
      %v603 = vsel %vm583, %v593, %v541
      %v604 = vsel %vm584, %v594, %v548
      %v605 = vsel %vm585, %v595, %v555
      %vm606 = vcmp.gt.s32.totalorder %v596, 0
      %vm607 = vcmp.gt.s32.totalorder %v597, 0
      %vm608 = vcmp.gt.s32.totalorder %v598, 0
      %vm609 = vcmp.gt.s32.totalorder %v599, 0
      %vm610 = vcmp.gt.s32.totalorder %v600, 0
      %vm611 = vcmp.gt.s32.totalorder %v601, 0
      %vm612 = vcmp.gt.s32.totalorder %v602, 0
      %vm613 = vcmp.gt.s32.totalorder %v603, 0
      %vm614 = vcmp.gt.s32.totalorder %v604, 0
      %vm615 = vcmp.gt.s32.totalorder %v605, 0
      %v616 = vsel %vm606, 1, 0
      %v617 = vsel %vm607, 1, 0
      %v618 = vsel %vm608, 1, 0
      %v619 = vsel %vm609, 1, 0
      %v620 = vsel %vm610, 1, 0
      %v621 = vsel %vm611, 1, 0
      %v622 = vsel %vm612, 1, 0
      %v623 = vsel %vm613, 1, 0
      %v624 = vsel %vm614, 1, 0
      %v625 = vsel %vm615, 1, 0
      %v626 = vcvt.s32.f32 %v616
      %v627 = vcvt.s32.f32 %v617
      %v628 = vcvt.s32.f32 %v618
      %v629 = vcvt.s32.f32 %v619
      %v630 = vcvt.s32.f32 %v620
      %v631 = vcvt.s32.f32 %v621
      %v632 = vcvt.s32.f32 %v622
      %v633 = vcvt.s32.f32 %v623
      %v634 = vcvt.s32.f32 %v624
      %v635 = vcvt.s32.f32 %v625
      %vm636 = vcmp.lt.s32.totalorder %v596, 7
      %vm637 = vcmp.lt.s32.totalorder %v597, 7
      %vm638 = vcmp.lt.s32.totalorder %v598, 7
      %vm639 = vcmp.lt.s32.totalorder %v599, 7
      %vm640 = vcmp.lt.s32.totalorder %v600, 7
      %vm641 = vcmp.lt.s32.totalorder %v601, 7
      %vm642 = vcmp.lt.s32.totalorder %v602, 7
      %vm643 = vcmp.lt.s32.totalorder %v603, 7
      %vm644 = vcmp.lt.s32.totalorder %v604, 7
      %vm645 = vcmp.lt.s32.totalorder %v605, 7
      %v646 = vsel %vm636, 1, 0
      %v647 = vsel %vm637, 1, 0
      %v648 = vsel %vm638, 1, 0
      %v649 = vsel %vm639, 1, 0
      %v650 = vsel %vm640, 1, 0
      %v651 = vsel %vm641, 1, 0
      %v652 = vsel %vm642, 1, 0
      %v653 = vsel %vm643, 1, 0
      %v654 = vsel %vm644, 1, 0
      %v655 = vsel %vm645, 1, 0
      %v656 = vcvt.s32.f32 %v646
      %v657 = vcvt.s32.f32 %v647
      %v658 = vcvt.s32.f32 %v648
      %v659 = vcvt.s32.f32 %v649
      %v660 = vcvt.s32.f32 %v650
      %v661 = vcvt.s32.f32 %v651
      %v662 = vcvt.s32.f32 %v652
      %v663 = vcvt.s32.f32 %v653
      %v664 = vcvt.s32.f32 %v654
      %v665 = vcvt.s32.f32 %v655
      %vm676 = vcmask 1040384
      %v677 = vrot.slane %v465, 7
      %v678 = vrot.slane %v466, 7
      %v679 = vsel %vm676, %v677, %v678
      %v680 = vrot.slane %v467, 7
      %v681 = vsel %vm676, %v678, %v680
      %v682 = vrot.slane %v468, 7
      %v683 = vsel %vm676, %v680, %v682
      %v684 = vrot.slane %v469, 7
      %v685 = vsel %vm676, %v682, %v684
      %v686 = vrot.slane %v470, 7
      %v687 = vsel %vm676, %v684, %v686
      %v688 = vrot.slane %v471, 7
      %v689 = vsel %vm676, %v686, %v688
      %v690 = vrot.slane %v472, 7
      %v691 = vsel %vm676, %v688, %v690
      %v692 = vrot.slane %v473, 7
      %v693 = vsel %vm676, %v690, %v692
      %v694 = vrot.slane %v474, 7
      %v695 = vsel %vm676, %v692, %v694
      %v706 = vsel %vm676, 0.0, %v677
      %v707 = vmul.f32 %v706, %v626
      %v708 = vmul.f32 %v679, %v627
      %v709 = vmul.f32 %v681, %v628
      %v710 = vmul.f32 %v683, %v629
      %v711 = vmul.f32 %v685, %v630
      %v712 = vmul.f32 %v687, %v631
      %v713 = vmul.f32 %v689, %v632
      %v714 = vmul.f32 %v691, %v633
      %v715 = vmul.f32 %v693, %v634
      %v716 = vmul.f32 %v695, %v635
      %vm717 = vcmask 1046528
      %v718 = vrot.slane %v465, 1
      %v719 = vrot.slane %v466, 1
      %v720 = vsel %vm717, %v718, %v719
      %v721 = vrot.slane %v467, 1
      %v722 = vsel %vm717, %v719, %v721
      %v723 = vrot.slane %v468, 1
      %v724 = vsel %vm717, %v721, %v723
      %v725 = vrot.slane %v469, 1
      %v726 = vsel %vm717, %v723, %v725
      %v727 = vrot.slane %v470, 1
      %v728 = vsel %vm717, %v725, %v727
      %v729 = vrot.slane %v471, 1
      %v730 = vsel %vm717, %v727, %v729
      %v731 = vrot.slane %v472, 1
      %v732 = vsel %vm717, %v729, %v731
      %v733 = vrot.slane %v473, 1
      %v734 = vsel %vm717, %v731, %v733
      %v735 = vrot.slane %v474, 1
      %v736 = vsel %vm717, %v733, %v735
      %v747 = vsel %vm717, %v735, 0.0
      %v748 = vmul.f32 %v720, %v656
      %v749 = vmul.f32 %v722, %v657
      %v750 = vmul.f32 %v724, %v658
      %v751 = vmul.f32 %v726, %v659
      %v752 = vmul.f32 %v728, %v660
      %v753 = vmul.f32 %v730, %v661
      %v754 = vmul.f32 %v732, %v662
      %v755 = vmul.f32 %v734, %v663
      %v756 = vmul.f32 %v736, %v664
      %v757 = vmul.f32 %v747, %v665
      %v758 = vlaneseq
      %v759 = vshrl.u32 %v758, 7
      %v760 = vsub.s32 0, %v759
      %v761 = vrot.slane %v462, %v760
      %v762 = vmul.f32 %v707, %v761
      %v763 = vmul.f32 %v708, %v761
      %v764 = vmul.f32 %v709, %v761
      %v765 = vmul.f32 %v710, %v761
      %v766 = vmul.f32 %v711, %v761
      %v767 = vmul.f32 %v712, %v761
      %v768 = vmul.f32 %v713, %v761
      %v769 = vmul.f32 %v714, %v761
      %v770 = vadd.f32 %v762, 0.0
      %v771 = vadd.f32 %v763, 0.0
      %v772 = vadd.f32 %v764, 0.0
      %v773 = vadd.f32 %v765, 0.0
      %v774 = vadd.f32 %v766, 0.0
      %v775 = vadd.f32 %v767, 0.0
      %v776 = vadd.f32 %v768, 0.0
      %v777 = vadd.f32 %v769, 0.0
      %v778 = vlaneseq
      %v779 = vshrl.u32 %v778, 7
      %v780 = vsub.s32 1, %v779
      %v781 = vrot.slane %v462, %v780
      %v782 = vmul.f32 %v465, %v781
      %v783 = vmul.f32 %v466, %v781
      %v784 = vmul.f32 %v467, %v781
      %v785 = vmul.f32 %v468, %v781
      %v786 = vmul.f32 %v469, %v781
      %v787 = vmul.f32 %v470, %v781
      %v788 = vmul.f32 %v471, %v781
      %v789 = vmul.f32 %v472, %v781
      %v790 = vadd.f32 %v770, %v782
      %v791 = vadd.f32 %v771, %v783
      %v792 = vadd.f32 %v772, %v784
      %v793 = vadd.f32 %v773, %v785
      %v794 = vadd.f32 %v774, %v786
      %v795 = vadd.f32 %v775, %v787
      %v796 = vadd.f32 %v776, %v788
      %v797 = vadd.f32 %v777, %v789
      %v798 = vlaneseq
      %v799 = vshrl.u32 %v798, 7
      %v800 = vsub.s32 2, %v799
      %v801 = vrot.slane %v462, %v800
      %v802 = vmul.f32 %v748, %v801
      %v803 = vmul.f32 %v749, %v801
      %v804 = vmul.f32 %v750, %v801
      %v805 = vmul.f32 %v751, %v801
      %v806 = vmul.f32 %v752, %v801
      %v807 = vmul.f32 %v753, %v801
      %v808 = vmul.f32 %v754, %v801
      %v809 = vmul.f32 %v755, %v801
      %v810 = vadd.f32 %v790, %v802
      %v811 = vadd.f32 %v791, %v803
      %v812 = vadd.f32 %v792, %v804
      %v813 = vadd.f32 %v793, %v805
      %v814 = vadd.f32 %v794, %v806
      %v815 = vadd.f32 %v795, %v807
      %v816 = vadd.f32 %v796, %v808
      %v817 = vadd.f32 %v797, %v809
      %v818 = vlaneseq
      %v819 = vshrl.u32 %v818, 7
      %v820 = vsub.s32 3, %v819
      %v821 = vrot.slane %v462, %v820
      %v822 = vmul.f32 %v708, %v821
      %v823 = vmul.f32 %v709, %v821
      %v824 = vmul.f32 %v710, %v821
      %v825 = vmul.f32 %v711, %v821
      %v826 = vmul.f32 %v712, %v821
      %v827 = vmul.f32 %v713, %v821
      %v828 = vmul.f32 %v714, %v821
      %v829 = vmul.f32 %v715, %v821
      %v830 = vadd.f32 %v810, %v822
      %v831 = vadd.f32 %v811, %v823
      %v832 = vadd.f32 %v812, %v824
      %v833 = vadd.f32 %v813, %v825
      %v834 = vadd.f32 %v814, %v826
      %v835 = vadd.f32 %v815, %v827
      %v836 = vadd.f32 %v816, %v828
      %v837 = vadd.f32 %v817, %v829
      %v838 = vlaneseq
      %v839 = vshrl.u32 %v838, 7
      %v840 = vsub.s32 4, %v839
      %v841 = vrot.slane %v462, %v840
      %v842 = vmul.f32 %v466, %v841
      %v843 = vmul.f32 %v467, %v841
      %v844 = vmul.f32 %v468, %v841
      %v845 = vmul.f32 %v469, %v841
      %v846 = vmul.f32 %v470, %v841
      %v847 = vmul.f32 %v471, %v841
      %v848 = vmul.f32 %v472, %v841
      %v849 = vmul.f32 %v473, %v841
      %v850 = vadd.f32 %v830, %v842
      %v851 = vadd.f32 %v831, %v843
      %v852 = vadd.f32 %v832, %v844
      %v853 = vadd.f32 %v833, %v845
      %v854 = vadd.f32 %v834, %v846
      %v855 = vadd.f32 %v835, %v847
      %v856 = vadd.f32 %v836, %v848
      %v857 = vadd.f32 %v837, %v849
      %v858 = vlaneseq
      %v859 = vshrl.u32 %v858, 7
      %v860 = vsub.s32 5, %v859
      %v861 = vrot.slane %v462, %v860
      %v862 = vmul.f32 %v749, %v861
      %v863 = vmul.f32 %v750, %v861
      %v864 = vmul.f32 %v751, %v861
      %v865 = vmul.f32 %v752, %v861
      %v866 = vmul.f32 %v753, %v861
      %v867 = vmul.f32 %v754, %v861
      %v868 = vmul.f32 %v755, %v861
      %v869 = vmul.f32 %v756, %v861
      %v870 = vadd.f32 %v850, %v862
      %v871 = vadd.f32 %v851, %v863
      %v872 = vadd.f32 %v852, %v864
      %v873 = vadd.f32 %v853, %v865
      %v874 = vadd.f32 %v854, %v866
      %v875 = vadd.f32 %v855, %v867
      %v876 = vadd.f32 %v856, %v868
      %v877 = vadd.f32 %v857, %v869
      %v878 = vlaneseq
      %v879 = vshrl.u32 %v878, 7
      %v880 = vsub.s32 6, %v879
      %v881 = vrot.slane %v462, %v880
      %v882 = vmul.f32 %v709, %v881
      %v883 = vmul.f32 %v710, %v881
      %v884 = vmul.f32 %v711, %v881
      %v885 = vmul.f32 %v712, %v881
      %v886 = vmul.f32 %v713, %v881
      %v887 = vmul.f32 %v714, %v881
      %v888 = vmul.f32 %v715, %v881
      %v889 = vmul.f32 %v716, %v881
      %v890 = vadd.f32 %v870, %v882
      %v891 = vadd.f32 %v871, %v883
      %v892 = vadd.f32 %v872, %v884
      %v893 = vadd.f32 %v873, %v885
      %v894 = vadd.f32 %v874, %v886
      %v895 = vadd.f32 %v875, %v887
      %v896 = vadd.f32 %v876, %v888
      %v897 = vadd.f32 %v877, %v889
      %v898 = vlaneseq
      %v899 = vshrl.u32 %v898, 7
      %v900 = vsub.s32 7, %v899
      %v901 = vrot.slane %v462, %v900
      %v902 = vmul.f32 %v467, %v901
      %v903 = vmul.f32 %v468, %v901
      %v904 = vmul.f32 %v469, %v901
      %v905 = vmul.f32 %v470, %v901
      %v906 = vmul.f32 %v471, %v901
      %v907 = vmul.f32 %v472, %v901
      %v908 = vmul.f32 %v473, %v901
      %v909 = vmul.f32 %v474, %v901
      %v910 = vadd.f32 %v890, %v902
      %v911 = vadd.f32 %v891, %v903
      %v912 = vadd.f32 %v892, %v904
      %v913 = vadd.f32 %v893, %v905
      %v914 = vadd.f32 %v894, %v906
      %v915 = vadd.f32 %v895, %v907
      %v916 = vadd.f32 %v896, %v908
      %v917 = vadd.f32 %v897, %v909
      %v918 = vlaneseq
      %v919 = vshrl.u32 %v918, 7
      %v920 = vsub.s32 0, %v919
      %v921 = vrot.slane %v463, %v920
      %v922 = vmul.f32 %v750, %v921
      %v923 = vmul.f32 %v751, %v921
      %v924 = vmul.f32 %v752, %v921
      %v925 = vmul.f32 %v753, %v921
      %v926 = vmul.f32 %v754, %v921
      %v927 = vmul.f32 %v755, %v921
      %v928 = vmul.f32 %v756, %v921
      %v929 = vmul.f32 %v757, %v921
      %v930 = vadd.f32 %v910, %v922
      %v931 = vadd.f32 %v911, %v923
      %v932 = vadd.f32 %v912, %v924
      %v933 = vadd.f32 %v913, %v925
      %v934 = vadd.f32 %v914, %v926
      %v935 = vadd.f32 %v915, %v927
      %v936 = vadd.f32 %v916, %v928
      %v937 = vadd.f32 %v917, %v929
      %v939 = vlaneseq
      %v940 = vshrl.u32 %v939, 7
      %v941 = vsub.s32 0, %v940
      %v942 = vrot.slane %v464, %v941
      %v944 = vadd.f32 %v930, %v942
      %v945 = vadd.f32 %v931, %v942
      %v946 = vadd.f32 %v932, %v942
      %v947 = vadd.f32 %v933, %v942
      %v948 = vadd.f32 %v934, %v942
      %v949 = vadd.f32 %v935, %v942
      %v950 = vadd.f32 %v936, %v942
      %v951 = vadd.f32 %v937, %v942
      %v952 = vmul.f32 %v944, 0.70710677
      %v953 = vmul.f32 %v945, 0.70710677
      %v954 = vmul.f32 %v946, 0.70710677
      %v955 = vmul.f32 %v947, 0.70710677
      %v956 = vmul.f32 %v948, 0.70710677
      %v957 = vmul.f32 %v949, 0.70710677
      %v958 = vmul.f32 %v950, 0.70710677
      %v959 = vmul.f32 %v951, 0.70710677
      %v960 = vand.u32 2147483647, %v952
      %v961 = vand.u32 2147483647, %v953
      %v962 = vand.u32 2147483647, %v954
      %v963 = vand.u32 2147483647, %v955
      %v964 = vand.u32 2147483647, %v956
      %v965 = vand.u32 2147483647, %v957
      %v966 = vand.u32 2147483647, %v958
      %v967 = vand.u32 2147483647, %v959
      %v968 = vmul.f32 %v960, 0.3275911
      %v969 = vmul.f32 %v961, 0.3275911
      %v970 = vmul.f32 %v962, 0.3275911
      %v971 = vmul.f32 %v963, 0.3275911
      %v972 = vmul.f32 %v964, 0.3275911
      %v973 = vmul.f32 %v965, 0.3275911
      %v974 = vmul.f32 %v966, 0.3275911
      %v975 = vmul.f32 %v967, 0.3275911
      %v976 = vadd.f32 %v968, 1.0
      %v977 = vadd.f32 %v969, 1.0
      %v978 = vadd.f32 %v970, 1.0
      %v979 = vadd.f32 %v971, 1.0
      %v980 = vadd.f32 %v972, 1.0
      %v981 = vadd.f32 %v973, 1.0
      %v982 = vadd.f32 %v974, 1.0
      %v983 = vadd.f32 %v975, 1.0
      %v984 = vrcp.pop %v976
      %v985 = vmul.f32 1.0, %v984
      %v986 = vrcp.pop %v977
      %v987 = vmul.f32 1.0, %v986
      %v988 = vrcp.pop %v978
      %v989 = vmul.f32 1.0, %v988
      %v990 = vrcp.pop %v979
      %v991 = vmul.f32 1.0, %v990
      %v992 = vrcp.pop %v980
      %v993 = vmul.f32 1.0, %v992
      %v994 = vrcp.pop %v981
      %v995 = vmul.f32 1.0, %v994
      %v996 = vrcp.pop %v982
      %v997 = vmul.f32 1.0, %v996
      %v998 = vrcp.pop %v983
      %v999 = vmul.f32 1.0, %v998
      %v1000 = vmul.f32 %v985, 1.0614054
      %v1001 = vmul.f32 %v987, 1.0614054
      %v1002 = vmul.f32 %v989, 1.0614054
      %v1003 = vmul.f32 %v991, 1.0614054
      %v1004 = vmul.f32 %v993, 1.0614054
      %v1005 = vmul.f32 %v995, 1.0614054
      %v1006 = vmul.f32 %v997, 1.0614054
      %v1007 = vmul.f32 %v999, 1.0614054
      %v1008 = vadd.f32 %v1000, -1.4531521
      %v1009 = vadd.f32 %v1001, -1.4531521
      %v1010 = vadd.f32 %v1002, -1.4531521
      %v1011 = vadd.f32 %v1003, -1.4531521
      %v1012 = vadd.f32 %v1004, -1.4531521
      %v1013 = vadd.f32 %v1005, -1.4531521
      %v1014 = vadd.f32 %v1006, -1.4531521
      %v1015 = vadd.f32 %v1007, -1.4531521
      %v1016 = vmul.f32 %v985, %v1008
      %v1017 = vmul.f32 %v987, %v1009
      %v1018 = vmul.f32 %v989, %v1010
      %v1019 = vmul.f32 %v991, %v1011
      %v1020 = vmul.f32 %v993, %v1012
      %v1021 = vmul.f32 %v995, %v1013
      %v1022 = vmul.f32 %v997, %v1014
      %v1023 = vmul.f32 %v999, %v1015
      %v1024 = vadd.f32 %v1016, 1.4214138
      %v1025 = vadd.f32 %v1017, 1.4214138
      %v1026 = vadd.f32 %v1018, 1.4214138
      %v1027 = vadd.f32 %v1019, 1.4214138
      %v1028 = vadd.f32 %v1020, 1.4214138
      %v1029 = vadd.f32 %v1021, 1.4214138
      %v1030 = vadd.f32 %v1022, 1.4214138
      %v1031 = vadd.f32 %v1023, 1.4214138
      %v1032 = vmul.f32 %v985, %v1024
      %v1033 = vmul.f32 %v987, %v1025
      %v1034 = vmul.f32 %v989, %v1026
      %v1035 = vmul.f32 %v991, %v1027
      %v1036 = vmul.f32 %v993, %v1028
      %v1037 = vmul.f32 %v995, %v1029
      %v1038 = vmul.f32 %v997, %v1030
      %v1039 = vmul.f32 %v999, %v1031
      %v1040 = vadd.f32 %v1032, -0.28449672
      %v1041 = vadd.f32 %v1033, -0.28449672
      %v1042 = vadd.f32 %v1034, -0.28449672
      %v1043 = vadd.f32 %v1035, -0.28449672
      %v1044 = vadd.f32 %v1036, -0.28449672
      %v1045 = vadd.f32 %v1037, -0.28449672
      %v1046 = vadd.f32 %v1038, -0.28449672
      %v1047 = vadd.f32 %v1039, -0.28449672
      %v1048 = vmul.f32 %v985, %v1040
      %v1049 = vmul.f32 %v987, %v1041
      %v1050 = vmul.f32 %v989, %v1042
      %v1051 = vmul.f32 %v991, %v1043
      %v1052 = vmul.f32 %v993, %v1044
      %v1053 = vmul.f32 %v995, %v1045
      %v1054 = vmul.f32 %v997, %v1046
      %v1055 = vmul.f32 %v999, %v1047
      %v1056 = vadd.f32 %v1048, 0.2548296
      %v1057 = vadd.f32 %v1049, 0.2548296
      %v1058 = vadd.f32 %v1050, 0.2548296
      %v1059 = vadd.f32 %v1051, 0.2548296
      %v1060 = vadd.f32 %v1052, 0.2548296
      %v1061 = vadd.f32 %v1053, 0.2548296
      %v1062 = vadd.f32 %v1054, 0.2548296
      %v1063 = vadd.f32 %v1055, 0.2548296
      %v1064 = vmul.f32 %v985, %v1056
      %v1065 = vmul.f32 %v987, %v1057
      %v1066 = vmul.f32 %v989, %v1058
      %v1067 = vmul.f32 %v991, %v1059
      %v1068 = vmul.f32 %v993, %v1060
      %v1069 = vmul.f32 %v995, %v1061
      %v1070 = vmul.f32 %v997, %v1062
      %v1071 = vmul.f32 %v999, %v1063
      %v1072 = vsub.f32 0.0, %v960
      %v1073 = vsub.f32 0.0, %v961
      %v1074 = vsub.f32 0.0, %v962
      %v1075 = vsub.f32 0.0, %v963
      %v1076 = vsub.f32 0.0, %v964
      %v1077 = vsub.f32 0.0, %v965
      %v1078 = vsub.f32 0.0, %v966
      %v1079 = vsub.f32 0.0, %v967
      %v1080 = vmul.f32 %v1072, %v960
      %v1081 = vmul.f32 %v1073, %v961
      %v1082 = vmul.f32 %v1074, %v962
      %v1083 = vmul.f32 %v1075, %v963
      %v1084 = vmul.f32 %v1076, %v964
      %v1085 = vmul.f32 %v1077, %v965
      %v1086 = vmul.f32 %v1078, %v966
      %v1087 = vmul.f32 %v1079, %v967
      %v1088 = vmul.f32 %v1080, 1.442695
      %v1089 = vpow.pop %v1088
      %v1090 = vmul.f32 %v1081, 1.442695
      %v1091 = vpow.pop %v1090
      %v1092 = vmul.f32 %v1082, 1.442695
      %v1093 = vpow.pop %v1092
      %v1094 = vmul.f32 %v1083, 1.442695
      %v1095 = vpow.pop %v1094
      %v1096 = vmul.f32 %v1084, 1.442695
      %v1097 = vpow.pop %v1096
      %v1098 = vmul.f32 %v1085, 1.442695
      %v1099 = vpow.pop %v1098
      %v1100 = vmul.f32 %v1086, 1.442695
      %v1101 = vpow.pop %v1100
      %v1102 = vmul.f32 %v1087, 1.442695
      %v1103 = vpow.pop %v1102
      %v1104 = vmul.f32 %v1064, %v1089
      %v1105 = vmul.f32 %v1065, %v1091
      %v1106 = vmul.f32 %v1066, %v1093
      %v1107 = vmul.f32 %v1067, %v1095
      %v1108 = vmul.f32 %v1068, %v1097
      %v1109 = vmul.f32 %v1069, %v1099
      %v1110 = vmul.f32 %v1070, %v1101
      %v1111 = vmul.f32 %v1071, %v1103
      %v1112 = vsub.f32 1.0, %v1104
      %v1113 = vsub.f32 1.0, %v1105
      %v1114 = vsub.f32 1.0, %v1106
      %v1115 = vsub.f32 1.0, %v1107
      %v1116 = vsub.f32 1.0, %v1108
      %v1117 = vsub.f32 1.0, %v1109
      %v1118 = vsub.f32 1.0, %v1110
      %v1119 = vsub.f32 1.0, %v1111
      %vm1120 = vcmp.lt.f32.partialorder %v952, 0.0
      %vm1121 = vcmp.lt.f32.partialorder %v953, 0.0
      %vm1122 = vcmp.lt.f32.partialorder %v954, 0.0
      %vm1123 = vcmp.lt.f32.partialorder %v955, 0.0
      %vm1124 = vcmp.lt.f32.partialorder %v956, 0.0
      %vm1125 = vcmp.lt.f32.partialorder %v957, 0.0
      %vm1126 = vcmp.lt.f32.partialorder %v958, 0.0
      %vm1127 = vcmp.lt.f32.partialorder %v959, 0.0
      %v1128 = vsub.f32 0.0, %v1112
      %v1129 = vsub.f32 0.0, %v1113
      %v1130 = vsub.f32 0.0, %v1114
      %v1131 = vsub.f32 0.0, %v1115
      %v1132 = vsub.f32 0.0, %v1116
      %v1133 = vsub.f32 0.0, %v1117
      %v1134 = vsub.f32 0.0, %v1118
      %v1135 = vsub.f32 0.0, %v1119
      %v1136 = vsel %vm1120, %v1128, %v1112
      %v1137 = vsel %vm1121, %v1129, %v1113
      %v1138 = vsel %vm1122, %v1130, %v1114
      %v1139 = vsel %vm1123, %v1131, %v1115
      %v1140 = vsel %vm1124, %v1132, %v1116
      %v1141 = vsel %vm1125, %v1133, %v1117
      %v1142 = vsel %vm1126, %v1134, %v1118
      %v1143 = vsel %vm1127, %v1135, %v1119
      %v1144 = vmul.f32 %v944, 0.5
      %v1145 = vmul.f32 %v945, 0.5
      %v1146 = vmul.f32 %v946, 0.5
      %v1147 = vmul.f32 %v947, 0.5
      %v1148 = vmul.f32 %v948, 0.5
      %v1149 = vmul.f32 %v949, 0.5
      %v1150 = vmul.f32 %v950, 0.5
      %v1151 = vmul.f32 %v951, 0.5
      %v1152 = vadd.f32 %v1136, 1.0
      %v1153 = vadd.f32 %v1137, 1.0
      %v1154 = vadd.f32 %v1138, 1.0
      %v1155 = vadd.f32 %v1139, 1.0
      %v1156 = vadd.f32 %v1140, 1.0
      %v1157 = vadd.f32 %v1141, 1.0
      %v1158 = vadd.f32 %v1142, 1.0
      %v1159 = vadd.f32 %v1143, 1.0
      %v1160 = vmul.f32 %v1144, %v1152
      %v1161 = vmul.f32 %v1145, %v1153
      %v1162 = vmul.f32 %v1146, %v1154
      %v1163 = vmul.f32 %v1147, %v1155
      %v1164 = vmul.f32 %v1148, %v1156
      %v1165 = vmul.f32 %v1149, %v1157
      %v1166 = vmul.f32 %v1150, %v1158
      %v1167 = vmul.f32 %v1151, %v1159
      %v1168 = vld [vmem:[%s5] sm:$0xff]
      %v1169 = vld [vmem:[%s5 + $0x8] sm:$0xff]
      %v1170 = vld [vmem:[%s5 + $0x10] sm:$0xff]
      %v1171 = vld [vmem:[%s5 + $0x18] sm:$0xff]
      %v1172 = vld [vmem:[%s6] sm:$0x1]
      %v1174 = vlaneseq
      %v1175 = vshrl.u32 %v1174, 7
      %v1176 = vsub.s32 0, %v1175
      %v1177 = vrot.slane %v1172, %v1176
      %v1180 = vsel %vm306, %v1160, 0
      %v1183 = vsel %vm306, %v1161, 0
      %v1186 = vsel %vm306, %v1162, 0
      %v1189 = vsel %vm306, %v1163, 0
      %v1192 = vsel %vm306, %v1164, 0
      %v1195 = vsel %vm306, %v1165, 0
      %v1198 = vsel %vm306, %v1166, 0
      %v1201 = vsel %vm306, %v1167, 0
      %1203 = vmatprep.subr.mxu0 0.0
      %1204 = vmatpush1.msra.mxu0 %v1168
      %1205 = vmatprep.subr.mxu0 0.0
      %1206 = vmatpush1.msra.mxu0 %v1169
      %1207 = vmatprep.subr.mxu0 0.0
      %1208 = vmatpush1.msra.mxu0 %v1170
      %1209 = vmatprep.subr.mxu0 0.0
      %1210 = vmatpush1.msra.mxu0 %v1171
      %1211 = vmatprep.subr.mxu0 0.0
      %1212 = vmatpush1.msra.mxu0 0.0
      %1213 = vmatprep.subr.mxu0 0.0
      %1214 = vmatpush1.msra.mxu0 0.0
      %1215 = vmatprep.subr.mxu0 0.0
      %1216 = vmatpush1.msra.mxu0 0.0
      %1217 = vmatprep.subr.mxu0 0.0
      %1218 = vmatpush1.msra.mxu0 0.0
      %1219 = vmatprep.subr.mxu0 0.0
      %1220 = vmatpush1.msra.mxu0 0.0
      %1221 = vmatprep.subr.mxu0 0.0
      %1222 = vmatpush1.msra.mxu0 0.0
      %1223 = vmatprep.subr.mxu0 0.0
      %1224 = vmatpush1.msra.mxu0 0.0
      %1225 = vmatprep.subr.mxu0 0.0
      %1226 = vmatpush1.msra.mxu0 0.0
      %1227 = vmatprep.subr.mxu0 0.0
      %1228 = vmatpush1.msra.mxu0 0.0
      %1229 = vmatprep.subr.mxu0 0.0
      %1230 = vmatpush1.msra.mxu0 0.0
      %1231 = vmatprep.subr.mxu0 0.0
      %1232 = vmatpush1.msra.mxu0 0.0
      %1233 = vmatprep.subr.mxu0 0.0
      %1234 = vmatpush1.msra.mxu0 0.0
      %1235 = vmatprep.subr.mxu0 0.0
      %1236 = vmatpush1.msra.mxu0 0.0
      %1237 = vmatprep.subr.mxu0 0.0
      %1238 = vmatpush1.msra.mxu0 0.0
      %1239 = vmatprep.subr.mxu0 0.0
      %1240 = vmatpush1.msra.mxu0 0.0
      %1241 = vmatprep.subr.mxu0 0.0
      %1242 = vmatpush1.msra.mxu0 0.0
      %1243 = vmatprep.subr.mxu0 0.0
      %1244 = vmatpush1.msra.mxu0 0.0
      %1245 = vmatprep.subr.mxu0 0.0
      %1246 = vmatpush1.msra.mxu0 0.0
      %1247 = vmatprep.subr.mxu0 0.0
      %1248 = vmatpush1.msra.mxu0 0.0
      %1249 = vmatprep.subr.mxu0 0.0
      %1250 = vmatpush1.msra.mxu0 0.0
      %1251 = vmatprep.subr.mxu0 0.0
      %1252 = vmatpush1.msra.mxu0 0.0
      %1253 = vmatprep.subr.mxu0 0.0
      %1254 = vmatpush1.msra.mxu0 0.0
      %1255 = vmatprep.subr.mxu0 0.0
      %1256 = vmatpush1.msra.mxu0 0.0
      %1257 = vmatprep.subr.mxu0 0.0
      %1258 = vmatpush1.msra.mxu0 0.0
      %1259 = vmatprep.subr.mxu0 0.0
      %1260 = vmatpush1.msra.mxu0 0.0
      %1261 = vmatprep.subr.mxu0 0.0
      %1262 = vmatpush1.msra.mxu0 0.0
      %1263 = vmatprep.subr.mxu0 0.0
      %1264 = vmatpush1.msra.mxu0 0.0
      %1265 = vmatprep.subr.mxu0 0.0
      %1266 = vmatpush1.msra.mxu0 0.0
      %1267 = vmatprep.mubr.f32.mxu0 0.0
      %1268 = vmatmul.mubr.f32.gmra.mrb[0].mxu0 %v1180
      %v1269 = vpop.f32.mrb[0].mxu0
      %v1270 = vadd.f32 %v1177, %v1269
      %v1271 = vpop.f32.mrb[0].mxu0
      %1272 = vmatprep.mubr.f32.mxu0 0.0
      %1273 = vmatmul.mubr.f32.gmra.mrb[0].mxu0 %v1183
      %v1274 = vpop.f32.mrb[0].mxu0
      %v1275 = vadd.f32 %v1177, %v1274
      %v1276 = vpop.f32.mrb[0].mxu0
      %1277 = vmatprep.mubr.f32.mxu0 0.0
      %1278 = vmatmul.mubr.f32.gmra.mrb[0].mxu0 %v1186
      %v1279 = vpop.f32.mrb[0].mxu0
      %v1280 = vadd.f32 %v1177, %v1279
      %v1281 = vpop.f32.mrb[0].mxu0
      %1282 = vmatprep.mubr.f32.mxu0 0.0
      %1283 = vmatmul.mubr.f32.gmra.mrb[0].mxu0 %v1189
      %v1284 = vpop.f32.mrb[0].mxu0
      %v1285 = vadd.f32 %v1177, %v1284
      %v1286 = vpop.f32.mrb[0].mxu0
      %1287 = vmatprep.mubr.f32.mxu0 0.0
      %1288 = vmatmul.mubr.f32.gmra.mrb[0].mxu0 %v1192
      %v1289 = vpop.f32.mrb[0].mxu0
      %v1290 = vadd.f32 %v1177, %v1289
      %v1291 = vpop.f32.mrb[0].mxu0
      %1292 = vmatprep.mubr.f32.mxu0 0.0
      %1293 = vmatmul.mubr.f32.gmra.mrb[0].mxu0 %v1195
      %v1294 = vpop.f32.mrb[0].mxu0
      %v1295 = vadd.f32 %v1177, %v1294
      %v1296 = vpop.f32.mrb[0].mxu0
      %1297 = vmatprep.mubr.f32.mxu0 0.0
      %1298 = vmatmul.mubr.f32.gmra.mrb[0].mxu0 %v1198
      %v1299 = vpop.f32.mrb[0].mxu0
      %v1300 = vadd.f32 %v1177, %v1299
      %v1301 = vpop.f32.mrb[0].mxu0
      %1302 = vmatprep.mubr.f32.mxu0 0.0
      %1303 = vmatmul.mubr.f32.gmra.mrb[0].mxu0 %v1201
      %v1304 = vpop.f32.mrb[0].mxu0
      %v1305 = vadd.f32 %v1177, %v1304
      %v1306 = vpop.f32.mrb[0].mxu0
      %1307 = vdwg.mxu0
      %1308 = vst.msk [vmem:[%s300] sm:$0xff] %vm323, %v1270
      %1309 = vst.msk [vmem:[%s300 + $0x8] sm:$0xff] %vm323, %v1275
      %1310 = vst.msk [vmem:[%s300 + $0x10] sm:$0xff] %vm323, %v1280
      %1311 = vst.msk [vmem:[%s300 + $0x18] sm:$0xff] %vm323, %v1285
      %1312 = vst.msk [vmem:[%s300 + $0x20] sm:$0xff] %vm323, %v1290
      %1313 = vst.msk [vmem:[%s300 + $0x28] sm:$0xff] %vm323, %v1295
      %1314 = vst.msk [vmem:[%s300 + $0x30] sm:$0xff] %vm323, %v1300
      %1315 = vst.msk [vmem:[%s300 + $0x38] sm:$0xff] %vm323, %v1305
      %s1316 = smul.u32 8, %s23
      %p1317 = scmp.lt.s32.totalorder %s22, 1
      %s1318 = scalar_select %p1317, %s22, 1
      %p1319 = scmp.lt.s32.totalorder %s1316, 7
      %s1320 = scalar_select %p1319, %s1316, 7
      %s1321 = smul.addr %s1318, 8
      %s1322 = sadd.s32 %s1320, %s1321
      %s1323 = smul.addr %s1322, 8
      %s1324 = scalar_lea.vmem %s7, %s1323
      // Predicated region
      $region49: #{tpu_custom_call.1} parent=47 // pred_check
        %p1325 = pneg %p202
      $region50: #{tpu_custom_call.1} parent=47 // pred_check_branch
        %1327 = sbr.rel (%p1325) target = $region52
      $region51: #{tpu_custom_call.1} parent=47 // pred_region
        %s1328 = smul.u32 8, %s23
      $region52: #{tpu_custom_call.1} parent=47 // pred_fallthru
        _
    $region48: #{tpu_custom_call.1} parent=5 // pred_fallthru
      _
    %p1329 = scmp.le.s32.totalorder 2, %s13
    // Predicated region
    $region53: #{tpu_custom_call.1} parent=5 // pred_check
      %p1330 = pneg %p1329
    $region54: #{tpu_custom_call.1} parent=5 // pred_check_branch
      %1332 = sbr.rel (%p1330) target = $region56
    $region55: #{tpu_custom_call.1} parent=5 // pred_region
      %s1333 = ssub.s32 %s13, 2
      // Predicated region
      $region57: #{tpu_custom_call.1} parent=55 // pred_check
        %p1334 = pneg %p208
      $region58: #{tpu_custom_call.1} parent=55 // pred_check_branch
        %1336 = sbr.rel (%p1334) target = $region60
      $region59: #{tpu_custom_call.1} parent=55 // pred_region
        %s1337 = smul.u32 8, %s25
        %p1338 = scmp.lt.s32.totalorder %s24, 1
        %s1339 = scalar_select %p1338, %s24, 1
        %p1340 = scmp.lt.s32.totalorder %s1337, 7
        %s1341 = scalar_select %p1340, %s1337, 7
        %s1342 = smul.addr %s1339, 8
        %s1343 = sadd.s32 %s1341, %s1342
        %s1344 = smul.addr %s1343, 8
        %s1345 = scalar_lea.vmem %s7, %s1344
      $region60: #{tpu_custom_call.1} parent=55 // pred_fallthru
        _
    $region56: #{tpu_custom_call.1} parent=5 // pred_fallthru
      _
  $region6: #{tpu_custom_call.1} parent=0 // loop_footer
    %s17 = sadd.s32 1, %s13
  $region7: #{tpu_custom_call.1} parent=0 // loop_footer_branch
    %12 = sbr.rel target = $region3
  $region8: #{tpu_custom_call.1} parent=0 // loop_exit
    _

</llo_original>
